<compile_context>
chip_gen: v7x
topology: tpu7x:2x2x1
jax: 0.10.0
libtpu: 0.0.40
codegen_flags: <defaults>
</compile_context>

<pallas_src>
import numpy as np

import jax
import jax.numpy as jnp
from jax.experimental import pallas as pl
from jax.experimental.pallas import tpu as pltpu


# --------------------------------------------------------------------------- #
# Kernel
# --------------------------------------------------------------------------- #
def _inception_kernel(x_ref, w_ref, b_ref, o_ref, p_ref, acc_ref):
    """Fused 1x1 + 3x3 conv (+ folded BN, ReLU, channel concat) for one image.

    x_ref  : (1, (H+3)*(W+2), Cin) bf16  row-flattened, spatially padded NHWC image
    w_ref  : (3, Cin, 3*F2)        bf16  per-dy folded weights, dx-major column blocks
    b_ref  : (1, F2)               f32   folded BN biases [path1 | path2]
    o_ref  : (1, H*(W+2), F2)      bf16  'wide' output rows (wrapper drops 2 cols/row)
    p_ref  : (H*(W+2)+2, 3*F2)     f32   scratch: per-dy shifted products
    acc_ref: (H*(W+2), F2)         f32   scratch: accumulator
    """
    R, F2 = acc_ref.shape                 # R = H*(W+2)
    Wp = (x_ref.shape[1] - R) // 3        # = W + 2  (x rows = (H+3)*(W+2))

    acc_ref[...] = jnp.zeros_like(acc_ref)

    # In-kernel im2col: 3 row-shifted MXU dots, then 3 dx-shifted accumulations
    # per dy.  Everything stays in VMEM; no (M, 9*Cin) HBM intermediate.
    for dy in range(3):
        a = x_ref[0, dy * Wp: dy * Wp + R + 2, :]                 # (R+2, Cin) bf16
        p_ref[...] = jnp.dot(a, w_ref[dy],
                             preferred_element_type=jnp.float32)  # (R+2, 3*F2) f32
        for dx in range(3):
            acc_ref[...] += p_ref[dx: dx + R, dx * F2: (dx + 1) * F2]

    # Folded-BN bias + ReLU epilogue, single lane-dense (F2 = 2*filters) bf16 store.
    o_ref[0] = jnp.maximum(acc_ref[...] + b_ref[...], 0.0).astype(o_ref.dtype)


# --------------------------------------------------------------------------- #
# VMEM accounting (lane/sublane-padding aware, generation aware)
# --------------------------------------------------------------------------- #
def _padded_buf_bytes(shape, dtype):
    """VMEM bytes of one buffer under Mosaic (sublane, 128)-lane tiling."""
    itemsize = np.dtype(dtype).itemsize
    sublane = max(8, 32 // itemsize)          # f32 -> 8, bf16 -> 16
    s = (1, 1) + tuple(int(d) for d in shape)
    lead = 1
    for d in s[:-2]:
        lead *= d
    rows = -(-s[-2] // sublane) * sublane
    lanes = -(-s[-1] // 128) * 128
    return lead * rows * lanes * itemsize


def _vmem_limit_and_check(x_blk, w_shape, b_shape, o_blk, p_shape, acc_shape):
    need = (2 * _padded_buf_bytes(x_blk, jnp.bfloat16)      # streamed input (double-buffered)
            + 2 * _padded_buf_bytes(o_blk, jnp.bfloat16)    # streamed output (double-buffered)
            + 2 * _padded_buf_bytes(w_shape, jnp.bfloat16)  # resident weight (2 bufs by default)
            + 2 * _padded_buf_bytes(b_shape, jnp.float32)   # resident bias
            + _padded_buf_bytes(p_shape, jnp.float32)       # p scratch
            + _padded_buf_bytes(acc_shape, jnp.float32))    # accumulator scratch
    try:
        cap = pltpu.get_tpu_info().vmem_capacity_bytes      # 64 MiB (v7x) / 128 MiB (v5e/v6e)
    except Exception:
        cap = 64 * 1024 * 1024                              # conservative fallback
    limit = min(int(cap * 0.625), 48 * 1024 * 1024)         # ~40 MiB on v7x, 48 MiB elsewhere
    if need > limit:
        raise ValueError(
            f"per-image block needs ~{need} bytes of VMEM (> limit {limit}); "
            "split H into halo'd row blocks before calling the kernel")
    return limit


# --------------------------------------------------------------------------- #
# Wrapper
# --------------------------------------------------------------------------- #
def mix2_inception_block_c(x, params, *, out_dtype=jnp.bfloat16):
    """x: (N, Cin, H, W) float32.  Returns (N, 2*filters, H, W) in `out_dtype`."""
    w_packed, bias = params["w_packed"], params["bias"]     # (3, Cin, 3*F2) bf16, (1, F2) f32
    N, Cin, H, W = x.shape
    three, Cw, F2x3 = w_packed.shape
    assert three == 3 and Cw == Cin, (w_packed.shape, Cin)
    F2 = F2x3 // 3
    Wp = W + 2
    R = H * Wp                                               # 'wide' output rows per image

    # Glue (cheap, XLA): NCHW -> NHWC in bf16, pad 1 top / 2 bottom / 1 left /
    # 1 right (the extra bottom row keeps the dy=2 shifted window in-bounds),
    # then flatten the spatial rows.  This is ~1.3x the raw activation bytes,
    # not the old 9x im2col expansion.
    x_nhwc = jnp.transpose(x, (0, 2, 3, 1)).astype(jnp.bfloat16)      # (N, H, W, Cin)
    x_pad = jnp.pad(x_nhwc, ((0, 0), (1, 2), (1, 1), (0, 0)))         # (N, H+3, W+2, Cin)
    x_flat = x_pad.reshape(N, (H + 3) * Wp, Cin)                      # (N, (H+3)*(W+2), Cin)

    vmem_limit = _vmem_limit_and_check(
        x_blk=(1, (H + 3) * Wp, Cin),
        w_shape=(3, Cin, F2x3),
        b_shape=(1, F2),
        o_blk=(1, R, F2),
        p_shape=(R + 2, F2x3),
        acc_shape=(R, F2),
    )

    cost = pl.CostEstimate(
        flops=2 * N * 3 * (R + 2) * Cin * F2x3,
        transcendentals=0,
        bytes_accessed=(x_flat.size * 2 + w_packed.size * 2
                        + bias.size * 4 + N * R * F2 * 2),
    )

    out_wide = pl.pallas_call(
        _inception_kernel,
        out_shape=jax.ShapeDtypeStruct((N, R, F2), jnp.bfloat16),
        grid_spec=pltpu.PrefetchScalarGridSpec(
            num_scalar_prefetch=0,
            grid=(N,),                                                 # one image per step
            in_specs=[
                pl.BlockSpec((1, (H + 3) * Wp, Cin), lambda n: (n, 0, 0)),  # padded image
                pl.BlockSpec((3, Cin, F2x3), lambda n: (0, 0, 0)),          # folded weights
                pl.BlockSpec((1, F2), lambda n: (0, 0)),                    # folded biases
            ],
            out_specs=pl.BlockSpec((1, R, F2), lambda n: (n, 0, 0)),
            scratch_shapes=[
                pltpu.VMEM((R + 2, F2x3), jnp.float32),   # per-dy product
                pltpu.VMEM((R, F2), jnp.float32),         # f32 accumulator
            ],
        ),
        compiler_params=pltpu.CompilerParams(
            dimension_semantics=("parallel",),            # images are independent (v7x 2 TCs)
            vmem_limit_bytes=vmem_limit),
        cost_estimate=cost,
    )(x_flat, w_packed, bias)

    # Stay in bf16 through the reshape / column-drop / NHWC->NCHW transpose.
    out = out_wide.reshape(N, H, Wp, F2)[:, :, :W, :]                  # drop 2 garbage cols/row
    return jnp.transpose(out, (0, 3, 1, 2)).astype(out_dtype)          # (N, 2F, H, W)


# --------------------------------------------------------------------------- #
# Parameters (synthetic, deterministic) + pure-JAX reference
# --------------------------------------------------------------------------- #
def make_params(key, in_channels, filters):
    """Conv weights + folded (inference-mode) BN, packed for the fused kernel."""
    ks = jax.random.split(key, 8)
    eps = 1e-5
    Cin, F = in_channels, filters

    # conv weights (bias=False, matching nn.Conv2d(..., bias=False))
    w1 = jax.random.normal(ks[0], (Cin, F), jnp.float32) * 0.1            # 1x1 path
    w3 = jax.random.normal(ks[1], (3, 3, Cin, F), jnp.float32) * 0.1      # 3x3 path (HWIO)
    # BatchNorm (inference) parameters per path
    g1 = jax.random.uniform(ks[2], (F,), jnp.float32, 0.5, 1.5)
    b1 = jax.random.normal(ks[3], (F,), jnp.float32) * 0.1
    m1 = jax.random.normal(ks[4], (F,), jnp.float32) * 0.1
    v1 = jax.random.uniform(ks[5], (F,), jnp.float32, 0.5, 1.5)
    g2 = jax.random.uniform(ks[6], (F,), jnp.float32, 0.5, 1.5)
    b2 = jax.random.normal(ks[7], (F,), jnp.float32) * 0.1
    m2 = jnp.zeros((F,), jnp.float32)
    v2 = jnp.ones((F,), jnp.float32)

    s1 = g1 / jnp.sqrt(v1 + eps)
    c1 = b1 - m1 * s1
    s2 = g2 / jnp.sqrt(v2 + eps)
    c2 = b2 - m2 * s2

    F2 = 2 * F
    # Per-tap folded weights: tap (dy, dx) -> (Cin, F2) with columns [1x1 | 3x3].
    # The 1x1 path lives only in the centre tap (dy=1, dx=1).
    w_taps = jnp.zeros((3, 3, Cin, F2), jnp.float32)
    w_taps = w_taps.at[1, 1, :, :F].set(w1 * s1[None, :])
    w_taps = w_taps.at[:, :, :, F:].set(w3 * s2[None, None, None, :])
    # Pack as (3, Cin, 3*F2): row = dy, columns = [dx=0 | dx=1 | dx=2], each F2 wide.
    w_packed = jnp.transpose(w_taps, (0, 2, 1, 3)).reshape(3, Cin, 3 * F2)
    bias = jnp.concatenate([c1, c2])[None, :]                             # (1, F2) f32

    params = {"w_packed": w_packed.astype(jnp.bfloat16), "bias": bias}
    ref_params = {"w1": w1, "w3_hwio": w3, "s1": s1, "c1": c1, "s2": s2, "c2": c2}
    return params, ref_params


def reference_forward(x, rp):
    """Pure-JAX f32 reference (lax.conv) of the same forward pass."""
    N, Cin, H, W = x.shape
    F = rp["w1"].shape[1]
    x_nhwc = jnp.transpose(x, (0, 2, 3, 1))
    dn = ("NHWC", "HWIO", "NHWC")
    y1 = jax.lax.conv_general_dilated(
        x_nhwc, rp["w1"].reshape(1, 1, Cin, F), (1, 1), "SAME",
        dimension_numbers=dn)
    y2 = jax.lax.conv_general_dilated(
        x_nhwc, rp["w3_hwio"], (1, 1), "SAME", dimension_numbers=dn)
    p1 = jnp.maximum(y1 * rp["s1"] + rp["c1"], 0.0)
    p2 = jnp.maximum(y2 * rp["s2"] + rp["c2"], 0.0)
    out = jnp.concatenate([p1, p2], axis=-1)
    return jnp.transpose(out, (0, 3, 1, 2))


# --------------------------------------------------------------------------- #
# Demo / self-check
# --------------------------------------------------------------------------- #
if __name__ == "__main__":
    N, Cin, H, W = 2, 4, 16, 16
    filters = 64

    key = jax.random.PRNGKey(0)
    kx, kp = jax.random.split(key)
    x = jax.random.normal(kx, (N, Cin, H, W), jnp.float32)
    params, ref_params = make_params(kp, Cin, filters)

    fwd = jax.jit(mix2_inception_block_c)
    out = jax.block_until_ready(fwd(x, params))

    ref = jax.block_until_ready(reference_forward(x, ref_params))
    assert out.shape == (N, 2 * filters, H, W), out.shape

    out_f32 = out.astype(jnp.float32)
    max_err = float(jnp.max(jnp.abs(out_f32 - ref)))
    # bf16 weights/activations/output in the kernel vs f32 reference -> relaxed tolerance.
    assert jnp.allclose(out_f32, ref, rtol=4e-2, atol=4e-2), max_err
    print("KERNEL_OK")
</pallas_src>

<mosaic_0001>
module attributes {stable_mosaic.version = 11 : i64} {
  func.func @_inception_kernel(%arg0: i32, %arg1: memref<1x342x4xbf16, #tpu.memory_space<vmem>>, %arg2: memref<3x4x384xbf16, #tpu.memory_space<vmem>>, %arg3: memref<1x128xf32, #tpu.memory_space<vmem>>, %arg4: memref<1x288x128xbf16, #tpu.memory_space<vmem>>, %arg5: memref<290x384xf32, #tpu.memory_space<vmem>>, %arg6: memref<288x128xf32, #tpu.memory_space<vmem>>) attributes {dimension_semantics = [#tpu.dimension_semantics<parallel>], iteration_bounds = array<i64: 2>, scalar_prefetch = 0 : i64, scratch_operands = 2 : i64, tpu.core_type = #tpu.core_type<tc>, window_params = [{transform_indices = @transform_0, window_bounds = array<i64: 1, 342, 4>}, {pipeline_mode = #tpu.pipeline_mode<synchronous>, transform_indices = @transform_1, window_bounds = array<i64: 3, 4, 384>}, {pipeline_mode = #tpu.pipeline_mode<synchronous>, transform_indices = @transform_2, window_bounds = array<i64: 1, 128>}, {transform_indices = @transform_3, window_bounds = array<i64: 1, 288, 128>}]} {
    %cst = arith.constant 0.000000e+00 : f32
    %0 = vector.broadcast %cst : f32 to vector<288x128xf32>
    %c0 = arith.constant 0 : index
    %c0_0 = arith.constant 0 : index
    %1 = vector.load %arg6[%c0, %c0_0] : memref<288x128xf32, #tpu.memory_space<vmem>>, vector<288x128xf32>
    tpu.vector_store %arg6[%c0, %c0_0], %0 {strides = array<i32>} : memref<288x128xf32, #tpu.memory_space<vmem>>, vector<288x128xf32>,
    %c0_1 = arith.constant 0 : index
    %c0_2 = arith.constant 0 : index
    %c0_3 = arith.constant 0 : index
    %2 = vector.load %arg1[%c0_1, %c0_2, %c0_3] : memref<1x342x4xbf16, #tpu.memory_space<vmem>>, vector<1x290x4xbf16>
    %3 = vector.shape_cast %2 : vector<1x290x4xbf16> to vector<290x4xbf16>
    %c0_4 = arith.constant 0 : index
    %c0_5 = arith.constant 0 : index
    %c0_6 = arith.constant 0 : index
    %4 = vector.load %arg2[%c0_4, %c0_5, %c0_6] : memref<3x4x384xbf16, #tpu.memory_space<vmem>>, vector<1x4x384xbf16>
    %5 = vector.shape_cast %4 : vector<1x4x384xbf16> to vector<4x384xbf16>
    %cst_7 = arith.constant dense<0.000000e+00> : vector<290x384xf32>
    %6 = tpu.matmul %3, %5, %cst_7 {dimension_numbers = #tpu.dot_dimension_numbers<[1], [0], [0], [1], [0, 0, 1, 1], [], []>} : vector<290x4xbf16>, vector<4x384xbf16>, vector<290x384xf32> -> vector<290x384xf32>
    %c0_8 = arith.constant 0 : index
    %c0_9 = arith.constant 0 : index
    %7 = vector.load %arg5[%c0_8, %c0_9] : memref<290x384xf32, #tpu.memory_space<vmem>>, vector<290x384xf32>
    tpu.vector_store %arg5[%c0_8, %c0_9], %6 {strides = array<i32>} : memref<290x384xf32, #tpu.memory_space<vmem>>, vector<290x384xf32>,
    %c0_10 = arith.constant 0 : index
    %c0_11 = arith.constant 0 : index
    %8 = vector.load %arg6[%c0_10, %c0_11] : memref<288x128xf32, #tpu.memory_space<vmem>>, vector<288x128xf32>
    %c0_12 = arith.constant 0 : index
    %c0_13 = arith.constant 0 : index
    %9 = vector.load %arg5[%c0_12, %c0_13] : memref<290x384xf32, #tpu.memory_space<vmem>>, vector<288x128xf32>
    %10 = arith.addf %8, %9 : vector<288x128xf32>
    %c0_14 = arith.constant 0 : index
    %c0_15 = arith.constant 0 : index
    %11 = vector.load %arg6[%c0_14, %c0_15] : memref<288x128xf32, #tpu.memory_space<vmem>>, vector<288x128xf32>
    tpu.vector_store %arg6[%c0_14, %c0_15], %10 {strides = array<i32>} : memref<288x128xf32, #tpu.memory_space<vmem>>, vector<288x128xf32>,
    %c0_16 = arith.constant 0 : index
    %c0_17 = arith.constant 0 : index
    %12 = vector.load %arg6[%c0_16, %c0_17] : memref<288x128xf32, #tpu.memory_space<vmem>>, vector<288x128xf32>
    %c1 = arith.constant 1 : index
    %c128 = arith.constant 128 : index
    %13 = vector.load %arg5[%c1, %c128] : memref<290x384xf32, #tpu.memory_space<vmem>>, vector<288x128xf32>
    %14 = arith.addf %12, %13 : vector<288x128xf32>
    %c0_18 = arith.constant 0 : index
    %c0_19 = arith.constant 0 : index
    %15 = vector.load %arg6[%c0_18, %c0_19] : memref<288x128xf32, #tpu.memory_space<vmem>>, vector<288x128xf32>
    tpu.vector_store %arg6[%c0_18, %c0_19], %14 {strides = array<i32>} : memref<288x128xf32, #tpu.memory_space<vmem>>, vector<288x128xf32>,
    %c0_20 = arith.constant 0 : index
    %c0_21 = arith.constant 0 : index
    %16 = vector.load %arg6[%c0_20, %c0_21] : memref<288x128xf32, #tpu.memory_space<vmem>>, vector<288x128xf32>
    %c2 = arith.constant 2 : index
    %c256 = arith.constant 256 : index
    %17 = vector.load %arg5[%c2, %c256] : memref<290x384xf32, #tpu.memory_space<vmem>>, vector<288x128xf32>
    %18 = arith.addf %16, %17 : vector<288x128xf32>
    %c0_22 = arith.constant 0 : index
    %c0_23 = arith.constant 0 : index
    %19 = vector.load %arg6[%c0_22, %c0_23] : memref<288x128xf32, #tpu.memory_space<vmem>>, vector<288x128xf32>
    tpu.vector_store %arg6[%c0_22, %c0_23], %18 {strides = array<i32>} : memref<288x128xf32, #tpu.memory_space<vmem>>, vector<288x128xf32>,
    %c0_24 = arith.constant 0 : index
    %c18 = arith.constant 18 : index
    %c0_25 = arith.constant 0 : index
    %20 = vector.load %arg1[%c0_24, %c18, %c0_25] : memref<1x342x4xbf16, #tpu.memory_space<vmem>>, vector<1x290x4xbf16>
    %21 = vector.shape_cast %20 : vector<1x290x4xbf16> to vector<290x4xbf16>
    %c1_26 = arith.constant 1 : index
    %c0_27 = arith.constant 0 : index
    %c0_28 = arith.constant 0 : index
    %22 = vector.load %arg2[%c1_26, %c0_27, %c0_28] : memref<3x4x384xbf16, #tpu.memory_space<vmem>>, vector<1x4x384xbf16>
    %23 = vector.shape_cast %22 : vector<1x4x384xbf16> to vector<4x384xbf16>
    %cst_29 = arith.constant dense<0.000000e+00> : vector<290x384xf32>
    %24 = tpu.matmul %21, %23, %cst_29 {dimension_numbers = #tpu.dot_dimension_numbers<[1], [0], [0], [1], [0, 0, 1, 1], [], []>} : vector<290x4xbf16>, vector<4x384xbf16>, vector<290x384xf32> -> vector<290x384xf32>
    %c0_30 = arith.constant 0 : index
    %c0_31 = arith.constant 0 : index
    %25 = vector.load %arg5[%c0_30, %c0_31] : memref<290x384xf32, #tpu.memory_space<vmem>>, vector<290x384xf32>
    tpu.vector_store %arg5[%c0_30, %c0_31], %24 {strides = array<i32>} : memref<290x384xf32, #tpu.memory_space<vmem>>, vector<290x384xf32>,
    %c0_32 = arith.constant 0 : index
    %c0_33 = arith.constant 0 : index
    %26 = vector.load %arg6[%c0_32, %c0_33] : memref<288x128xf32, #tpu.memory_space<vmem>>, vector<288x128xf32>
    %c0_34 = arith.constant 0 : index
    %c0_35 = arith.constant 0 : index
    %27 = vector.load %arg5[%c0_34, %c0_35] : memref<290x384xf32, #tpu.memory_space<vmem>>, vector<288x128xf32>
    %28 = arith.addf %26, %27 : vector<288x128xf32>
    %c0_36 = arith.constant 0 : index
    %c0_37 = arith.constant 0 : index
    %29 = vector.load %arg6[%c0_36, %c0_37] : memref<288x128xf32, #tpu.memory_space<vmem>>, vector<288x128xf32>
    tpu.vector_store %arg6[%c0_36, %c0_37], %28 {strides = array<i32>} : memref<288x128xf32, #tpu.memory_space<vmem>>, vector<288x128xf32>,
    %c0_38 = arith.constant 0 : index
    %c0_39 = arith.constant 0 : index
    %30 = vector.load %arg6[%c0_38, %c0_39] : memref<288x128xf32, #tpu.memory_space<vmem>>, vector<288x128xf32>
    %c1_40 = arith.constant 1 : index
    %c128_41 = arith.constant 128 : index
    %31 = vector.load %arg5[%c1_40, %c128_41] : memref<290x384xf32, #tpu.memory_space<vmem>>, vector<288x128xf32>
    %32 = arith.addf %30, %31 : vector<288x128xf32>
    %c0_42 = arith.constant 0 : index
    %c0_43 = arith.constant 0 : index
    %33 = vector.load %arg6[%c0_42, %c0_43] : memref<288x128xf32, #tpu.memory_space<vmem>>, vector<288x128xf32>
    tpu.vector_store %arg6[%c0_42, %c0_43], %32 {strides = array<i32>} : memref<288x128xf32, #tpu.memory_space<vmem>>, vector<288x128xf32>,
    %c0_44 = arith.constant 0 : index
    %c0_45 = arith.constant 0 : index
    %34 = vector.load %arg6[%c0_44, %c0_45] : memref<288x128xf32, #tpu.memory_space<vmem>>, vector<288x128xf32>
    %c2_46 = arith.constant 2 : index
    %c256_47 = arith.constant 256 : index
    %35 = vector.load %arg5[%c2_46, %c256_47] : memref<290x384xf32, #tpu.memory_space<vmem>>, vector<288x128xf32>
    %36 = arith.addf %34, %35 : vector<288x128xf32>
    %c0_48 = arith.constant 0 : index
    %c0_49 = arith.constant 0 : index
    %37 = vector.load %arg6[%c0_48, %c0_49] : memref<288x128xf32, #tpu.memory_space<vmem>>, vector<288x128xf32>
    tpu.vector_store %arg6[%c0_48, %c0_49], %36 {strides = array<i32>} : memref<288x128xf32, #tpu.memory_space<vmem>>, vector<288x128xf32>,
    %c0_50 = arith.constant 0 : index
    %c36 = arith.constant 36 : index
    %c0_51 = arith.constant 0 : index
    %38 = vector.load %arg1[%c0_50, %c36, %c0_51] : memref<1x342x4xbf16, #tpu.memory_space<vmem>>, vector<1x290x4xbf16>
    %39 = vector.shape_cast %38 : vector<1x290x4xbf16> to vector<290x4xbf16>
    %c2_52 = arith.constant 2 : index
    %c0_53 = arith.constant 0 : index
    %c0_54 = arith.constant 0 : index
    %40 = vector.load %arg2[%c2_52, %c0_53, %c0_54] : memref<3x4x384xbf16, #tpu.memory_space<vmem>>, vector<1x4x384xbf16>
    %41 = vector.shape_cast %40 : vector<1x4x384xbf16> to vector<4x384xbf16>
    %cst_55 = arith.constant dense<0.000000e+00> : vector<290x384xf32>
    %42 = tpu.matmul %39, %41, %cst_55 {dimension_numbers = #tpu.dot_dimension_numbers<[1], [0], [0], [1], [0, 0, 1, 1], [], []>} : vector<290x4xbf16>, vector<4x384xbf16>, vector<290x384xf32> -> vector<290x384xf32>
    %c0_56 = arith.constant 0 : index
    %c0_57 = arith.constant 0 : index
    %43 = vector.load %arg5[%c0_56, %c0_57] : memref<290x384xf32, #tpu.memory_space<vmem>>, vector<290x384xf32>
    tpu.vector_store %arg5[%c0_56, %c0_57], %42 {strides = array<i32>} : memref<290x384xf32, #tpu.memory_space<vmem>>, vector<290x384xf32>,
    %c0_58 = arith.constant 0 : index
    %c0_59 = arith.constant 0 : index
    %44 = vector.load %arg6[%c0_58, %c0_59] : memref<288x128xf32, #tpu.memory_space<vmem>>, vector<288x128xf32>
    %c0_60 = arith.constant 0 : index
    %c0_61 = arith.constant 0 : index
    %45 = vector.load %arg5[%c0_60, %c0_61] : memref<290x384xf32, #tpu.memory_space<vmem>>, vector<288x128xf32>
    %46 = arith.addf %44, %45 : vector<288x128xf32>
    %c0_62 = arith.constant 0 : index
    %c0_63 = arith.constant 0 : index
    %47 = vector.load %arg6[%c0_62, %c0_63] : memref<288x128xf32, #tpu.memory_space<vmem>>, vector<288x128xf32>
    tpu.vector_store %arg6[%c0_62, %c0_63], %46 {strides = array<i32>} : memref<288x128xf32, #tpu.memory_space<vmem>>, vector<288x128xf32>,
    %c0_64 = arith.constant 0 : index
    %c0_65 = arith.constant 0 : index
    %48 = vector.load %arg6[%c0_64, %c0_65] : memref<288x128xf32, #tpu.memory_space<vmem>>, vector<288x128xf32>
    %c1_66 = arith.constant 1 : index
    %c128_67 = arith.constant 128 : index
    %49 = vector.load %arg5[%c1_66, %c128_67] : memref<290x384xf32, #tpu.memory_space<vmem>>, vector<288x128xf32>
    %50 = arith.addf %48, %49 : vector<288x128xf32>
    %c0_68 = arith.constant 0 : index
    %c0_69 = arith.constant 0 : index
    %51 = vector.load %arg6[%c0_68, %c0_69] : memref<288x128xf32, #tpu.memory_space<vmem>>, vector<288x128xf32>
    tpu.vector_store %arg6[%c0_68, %c0_69], %50 {strides = array<i32>} : memref<288x128xf32, #tpu.memory_space<vmem>>, vector<288x128xf32>,
    %c0_70 = arith.constant 0 : index
    %c0_71 = arith.constant 0 : index
    %52 = vector.load %arg6[%c0_70, %c0_71] : memref<288x128xf32, #tpu.memory_space<vmem>>, vector<288x128xf32>
    %c2_72 = arith.constant 2 : index
    %c256_73 = arith.constant 256 : index
    %53 = vector.load %arg5[%c2_72, %c256_73] : memref<290x384xf32, #tpu.memory_space<vmem>>, vector<288x128xf32>
    %54 = arith.addf %52, %53 : vector<288x128xf32>
    %c0_74 = arith.constant 0 : index
    %c0_75 = arith.constant 0 : index
    %55 = vector.load %arg6[%c0_74, %c0_75] : memref<288x128xf32, #tpu.memory_space<vmem>>, vector<288x128xf32>
    tpu.vector_store %arg6[%c0_74, %c0_75], %54 {strides = array<i32>} : memref<288x128xf32, #tpu.memory_space<vmem>>, vector<288x128xf32>,
    %c0_76 = arith.constant 0 : index
    %c0_77 = arith.constant 0 : index
    %56 = vector.load %arg6[%c0_76, %c0_77] : memref<288x128xf32, #tpu.memory_space<vmem>>, vector<288x128xf32>
    %c0_78 = arith.constant 0 : index
    %c0_79 = arith.constant 0 : index
    %57 = vector.load %arg3[%c0_78, %c0_79] : memref<1x128xf32, #tpu.memory_space<vmem>>, vector<1x128xf32>
    %58 = vector.broadcast %57 : vector<1x128xf32> to vector<288x128xf32>
    %59 = arith.addf %56, %58 : vector<288x128xf32>
    %cst_80 = arith.constant 0.000000e+00 : f32
    %60 = vector.broadcast %cst_80 : f32 to vector<288x128xf32>
    %61 = arith.maximumf %59, %60 : vector<288x128xf32>
    %62 = arith.truncf %61 : vector<288x128xf32> to vector<288x128xbf16>
    %c0_81 = arith.constant 0 : index
    %c0_82 = arith.constant 0 : index
    %c0_83 = arith.constant 0 : index
    %63 = vector.load %arg4[%c0_81, %c0_82, %c0_83] : memref<1x288x128xbf16, #tpu.memory_space<vmem>>, vector<1x288x128xbf16>
    %64 = vector.shape_cast %63 : vector<1x288x128xbf16> to vector<288x128xbf16>
    %65 = vector.shape_cast %62 : vector<288x128xbf16> to vector<1x288x128xbf16>
    tpu.vector_store %arg4[%c0_81, %c0_82, %c0_83], %65 {strides = array<i32>} : memref<1x288x128xbf16, #tpu.memory_space<vmem>>, vector<1x288x128xbf16>,
    return
  }
  func.func @transform_0(%arg0: i32) -> (i32, i32, i32) {
    %c0_i32 = arith.constant 0 : i32
    %c0_i32_0 = arith.constant 0 : i32
    %c0_i32_1 = arith.constant 0 : i32
    return %arg0, %c0_i32, %c0_i32_0 : i32, i32, i32
  }
  func.func @transform_1(%arg0: i32) -> (i32, i32, i32) {
    %c0_i32 = arith.constant 0 : i32
    %c0_i32_0 = arith.constant 0 : i32
    %c0_i32_1 = arith.constant 0 : i32
    %c0_i32_2 = arith.constant 0 : i32
    return %c0_i32, %c0_i32_0, %c0_i32_1 : i32, i32, i32
  }
  func.func @transform_2(%arg0: i32) -> (i32, i32) {
    %c0_i32 = arith.constant 0 : i32
    %c0_i32_0 = arith.constant 0 : i32
    %c0_i32_1 = arith.constant 0 : i32
    return %c0_i32, %c0_i32_0 : i32, i32
  }
  func.func @transform_3(%arg0: i32) -> (i32, i32, i32) {
    %c0_i32 = arith.constant 0 : i32
    %c0_i32_0 = arith.constant 0 : i32
    %c0_i32_1 = arith.constant 0 : i32
    return %arg0, %c0_i32, %c0_i32_0 : i32, i32, i32
  }
}

</mosaic_0001>

<llo_original>
// kernel: mix2_inception_block_c.1
$region0: #{mix2_inception_block_c.1}
  #allocation0 [shape = 'u32[]', space=smem, size = 0x4, offset = 0x4, fixed_abs, tag = 'smem constant byte address 0x4 - core index']
  #allocation1 [shape = 'u32[144,128]{1,0:T(1,128)}', space=vmem, size = 0x12000, scoped, tag = 'internal scratch']
  #allocation2 [shape = 'f32[290,384]{1,0:T(8,128)}', space=vmem, size = 0x6f000, scoped, tag = 'scratch operand']
  #allocation3 [shape = 'f32[288,128]{1,0:T(8,128)}', space=vmem, size = 0x24000, scoped, tag = 'scratch operand']
  %s0 = inlined_call_operand.vmem [shape: bf16[2,342,4], index: 0, kind: input, shape index: {}]
  %s1 = inlined_call_operand.vmem [shape: bf16[3,4,384], index: 1, kind: input, shape index: {}]
  %s2 = inlined_call_operand.vmem [shape: f32[1,128], index: 2, kind: input, shape index: {}]
  %s3 = inlined_call_operand.vmem [shape: bf16[2,288,128], index: 3, kind: output, shape index: {}]
  %s4 = sld [smem:[#allocation0]]
  $region45: #{mix2_inception_block_c.1} parent=0
    _
  %s6 = ssub.s32 1, %s4
  %s7 = scalar_select 0, %s6, %s4
  loop: start=0, step=1, limit=4
  $region2: #{mix2_inception_block_c.1} parent=0 // loop_pre_header
    _
  $region3: #{mix2_inception_block_c.1} parent=0 // loop_header
    %s9 = sphi 0, %s13
    %p10 = scmp.ge.s32.totalorder %s9, 4
    %s19 = sphi 0, %s21
    %s22 = sphi 0, %s19
    %s23 = sphi 0, %s22
    %s39 = sphi 0, %s23
    %s43 = sphi 0, %s43
    %s45 = sphi 0, %s43
    %s46 = sphi 0, %s45
    %s60 = sphi 0, %s46
    %s64 = sphi 0, %s64
    %s66 = sphi 0, %s64
    %s67 = sphi 0, %s66
    %s81 = sphi 0, %s67
    %s87 = sphi 0, %s89
    %s90 = sphi 0, %s87
    %s91 = sphi 0, %s90
    %s107 = sphi 0, %s91
  $region4: #{mix2_inception_block_c.1} parent=0 // loop_header_branch
    %12 = sbr.rel (%p10) target = $region8
  $region5: #{mix2_inception_block_c.1} parent=0 // loop_body
    %s14 = ssub.s32 %s9, 1
    %s15 = ssub.s32 %s9, 2
    %s16 = sadd.s32 %s9, 1
    %s17 = ssub.s32 %s9, %s16
    %p18 = scmp.eq.s32.totalorder %s17, 0
    %s20 = sadd.s32 %s19, 1
    %s21 = scalar_select %p18, %s19, %s20
    %p24 = pneg %p18
    %p25 = scmp.eq.s32.totalorder %s9, 1
    %p26 = por %p24, %p25
    %p27 = scmp.ne.s32.totalorder %s19, %s22
    %p28 = scmp.eq.s32.totalorder %s9, 0
    %p29 = por %p27, %p28
    %p30 = scmp.ne.s32.totalorder %s19, %s22
    %p31 = scmp.eq.s32.totalorder %s14, 1
    %p32 = por %p30, %p31
    %p33 = scmp.ne.s32.totalorder %s22, %s23
    %p34 = scmp.eq.s32.totalorder %s14, 0
    %p35 = por %p33, %p34
    %p36 = scmp.ne.s32.totalorder %s22, %s23
    %p37 = scmp.eq.s32.totalorder %s15, 1
    %p38 = por %p36, %p37
    %p40 = scmp.ne.s32.totalorder %s23, %s39
    %p41 = scmp.eq.s32.totalorder %s15, 0
    %p42 = por %p40, %p41
    %s44 = sadd.s32 %s43, 1
    %p47 = scmp.eq.s32.totalorder %s9, 1
    %p48 = scmp.ne.s32.totalorder %s43, %s45
    %p49 = scmp.eq.s32.totalorder %s9, 0
    %p50 = por %p48, %p49
    %p51 = scmp.ne.s32.totalorder %s43, %s45
    %p52 = scmp.eq.s32.totalorder %s14, 1
    %p53 = por %p51, %p52
    %p54 = scmp.ne.s32.totalorder %s45, %s46
    %p55 = scmp.eq.s32.totalorder %s14, 0
    %p56 = por %p54, %p55
    %p57 = scmp.ne.s32.totalorder %s45, %s46
    %p58 = scmp.eq.s32.totalorder %s15, 1
    %p59 = por %p57, %p58
    %p61 = scmp.ne.s32.totalorder %s46, %s60
    %p62 = scmp.eq.s32.totalorder %s15, 0
    %p63 = por %p61, %p62
    %s65 = sadd.s32 %s64, 1
    %p68 = scmp.eq.s32.totalorder %s9, 1
    %p69 = scmp.ne.s32.totalorder %s64, %s66
    %p70 = scmp.eq.s32.totalorder %s9, 0
    %p71 = por %p69, %p70
    %p72 = scmp.ne.s32.totalorder %s64, %s66
    %p73 = scmp.eq.s32.totalorder %s14, 1
    %p74 = por %p72, %p73
    %p75 = scmp.ne.s32.totalorder %s66, %s67
    %p76 = scmp.eq.s32.totalorder %s14, 0
    %p77 = por %p75, %p76
    %p78 = scmp.ne.s32.totalorder %s66, %s67
    %p79 = scmp.eq.s32.totalorder %s15, 1
    %p80 = por %p78, %p79
    %p82 = scmp.ne.s32.totalorder %s67, %s81
    %p83 = scmp.eq.s32.totalorder %s15, 0
    %p84 = por %p82, %p83
    %s85 = ssub.s32 %s9, %s16
    %p86 = scmp.eq.s32.totalorder %s85, 0
    %s88 = sadd.s32 %s87, 1
    %s89 = scalar_select %p86, %s87, %s88
    %p92 = pneg %p86
    %p93 = scmp.eq.s32.totalorder %s9, 1
    %p94 = por %p92, %p93
    %p95 = scmp.ne.s32.totalorder %s87, %s90
    %p96 = scmp.eq.s32.totalorder %s9, 0
    %p97 = por %p95, %p96
    %p98 = scmp.ne.s32.totalorder %s87, %s90
    %p99 = scmp.eq.s32.totalorder %s14, 1
    %p100 = por %p98, %p99
    %p101 = scmp.ne.s32.totalorder %s90, %s91
    %p102 = scmp.eq.s32.totalorder %s14, 0
    %p103 = por %p101, %p102
    %p104 = scmp.ne.s32.totalorder %s90, %s91
    %p105 = scmp.eq.s32.totalorder %s15, 1
    %p106 = por %p104, %p105
    %p108 = scmp.ne.s32.totalorder %s91, %s107
    %p109 = scmp.eq.s32.totalorder %s15, 0
    %p110 = por %p108, %p109
    %p111 = scmp.le.s32.totalorder 1, %s9
    %p112 = scmp.lt.s32.totalorder %s9, 3
    %p113 = pnand %p111, %p112
    %p114 = pneg %p113
    // Predicated region
    $region9: #{mix2_inception_block_c.1} parent=5 // pred_check
      _
    $region10: #{mix2_inception_block_c.1} parent=5 // pred_check_branch
      %116 = sbr.rel (%p113) target = $region12
    $region11: #{mix2_inception_block_c.1} parent=5 // pred_region
      %s117 = ssub.s32 %s9, 1
      // Predicated region
      $region13: #{mix2_inception_block_c.1} parent=11 // pred_check
        %p118 = pneg %p56
      $region14: #{mix2_inception_block_c.1} parent=11 // pred_check_branch
        %120 = sbr.rel (%p118) target = $region16
      $region15: #{mix2_inception_block_c.1} parent=11 // pred_region
        _
      $region16: #{mix2_inception_block_c.1} parent=11 // pred_fallthru
        _
      // Predicated region
      $region17: #{mix2_inception_block_c.1} parent=11 // pred_check
        %p121 = pneg %p77
      $region18: #{mix2_inception_block_c.1} parent=11 // pred_check_branch
        %123 = sbr.rel (%p121) target = $region20
      $region19: #{mix2_inception_block_c.1} parent=11 // pred_region
        _
      $region20: #{mix2_inception_block_c.1} parent=11 // pred_fallthru
        _
    $region12: #{mix2_inception_block_c.1} parent=5 // pred_fallthru
      _
    %p124 = scmp.lt.s32.totalorder %s9, 2
    // Predicated region
    $region21: #{mix2_inception_block_c.1} parent=5 // pred_check
      %p125 = pneg %p124
    $region22: #{mix2_inception_block_c.1} parent=5 // pred_check_branch
      %127 = sbr.rel (%p125) target = $region24
    $region23: #{mix2_inception_block_c.1} parent=5 // pred_region
      // Predicated region
      $region25: #{mix2_inception_block_c.1} parent=23 // pred_check
        %p128 = pneg %p29
      $region26: #{mix2_inception_block_c.1} parent=23 // pred_check_branch
        %130 = sbr.rel (%p128) target = $region28
      $region27: #{mix2_inception_block_c.1} parent=23 // pred_region
        %p131 = scmp.lt.s32.totalorder %s9, 1
        %s132 = scalar_select %p131, %s9, 1
        %s133 = smul.addr %s132, 43
        %s134 = smul.addr %s133, 4
        %s135 = scalar_lea.vmem %s0, %s134
      $region28: #{mix2_inception_block_c.1} parent=23 // pred_fallthru
        _
    $region24: #{mix2_inception_block_c.1} parent=5 // pred_fallthru
      _
    %p136 = scmp.le.s32.totalorder 1, %s9
    %p137 = scmp.lt.s32.totalorder %s9, 3
    %p138 = pnand %p136, %p137
    %p139 = pneg %p138
    // Predicated region
    $region29: #{mix2_inception_block_c.1} parent=5 // pred_check
      _
    $region30: #{mix2_inception_block_c.1} parent=5 // pred_check_branch
      %141 = sbr.rel (%p138) target = $region32
    $region31: #{mix2_inception_block_c.1} parent=5 // pred_region
      %s142 = ssub.s32 %s9, 1
      %p143 = scmp.lt.s32.totalorder %s14, 1
      %s144 = scalar_select %p143, %s14, 1
      %s145 = smul.addr %s144, 43
      %s146 = smul.addr %s145, 4
      %s147 = scalar_lea.vmem %s0, %s146
      %p148 = pneg %p35
      %p149 = pneg %p32
      %p150 = pneg %p56
      %p151 = pneg %p53
      %p152 = pneg %p77
      %p153 = pneg %p74
      %p154 = pneg %p103
      %p155 = pneg %p100
      %p156 = scmp.lt.s32.totalorder %s14, 1
      %s157 = scalar_select %p156, %s14, 1
      %s158 = smul.addr %s157, 36
      %s159 = smul.addr %s158, 4
      %s160 = scalar_lea.vmem %s3, %s159
      %p161 = scmp.lt.s32.totalorder %s14, 1
      %s162 = scalar_select %p161, %s14, 1
      %s163 = smul.addr %s162, 43
      %s164 = smul.addr %s163, 4
      %s165 = scalar_lea.vmem %s0, %s164
      %p166 = scmp.lt.s32.totalorder %s14, 1
      %s167 = scalar_select %p166, %s14, 1
      %s168 = smul.addr %s167, 36
      %s169 = smul.addr %s168, 4
      %s170 = scalar_lea.vmem %s3, %s169
      %172 = vst [vmem:[#allocation3] sm:$0xff] 0.0
      %173 = vst [vmem:[#allocation3 + $0x8] sm:$0xff] 0.0
      %174 = vst [vmem:[#allocation3 + $0x10] sm:$0xff] 0.0
      %175 = vst [vmem:[#allocation3 + $0x18] sm:$0xff] 0.0
      %176 = vst [vmem:[#allocation3 + $0x20] sm:$0xff] 0.0
      %177 = vst [vmem:[#allocation3 + $0x28] sm:$0xff] 0.0
      %178 = vst [vmem:[#allocation3 + $0x30] sm:$0xff] 0.0
      %179 = vst [vmem:[#allocation3 + $0x38] sm:$0xff] 0.0
      %180 = vst [vmem:[#allocation3 + $0x40] sm:$0xff] 0.0
      %181 = vst [vmem:[#allocation3 + $0x48] sm:$0xff] 0.0
      %182 = vst [vmem:[#allocation3 + $0x50] sm:$0xff] 0.0
      %183 = vst [vmem:[#allocation3 + $0x58] sm:$0xff] 0.0
      %184 = vst [vmem:[#allocation3 + $0x60] sm:$0xff] 0.0
      %185 = vst [vmem:[#allocation3 + $0x68] sm:$0xff] 0.0
      %186 = vst [vmem:[#allocation3 + $0x70] sm:$0xff] 0.0
      %187 = vst [vmem:[#allocation3 + $0x78] sm:$0xff] 0.0
      %188 = vst [vmem:[#allocation3 + $0x80] sm:$0xff] 0.0
      %189 = vst [vmem:[#allocation3 + $0x88] sm:$0xff] 0.0
      %190 = vst [vmem:[#allocation3 + $0x90] sm:$0xff] 0.0
      %191 = vst [vmem:[#allocation3 + $0x98] sm:$0xff] 0.0
      %192 = vst [vmem:[#allocation3 + $0xa0] sm:$0xff] 0.0
      %193 = vst [vmem:[#allocation3 + $0xa8] sm:$0xff] 0.0
      %194 = vst [vmem:[#allocation3 + $0xb0] sm:$0xff] 0.0
      %195 = vst [vmem:[#allocation3 + $0xb8] sm:$0xff] 0.0
      %196 = vst [vmem:[#allocation3 + $0xc0] sm:$0xff] 0.0
      %197 = vst [vmem:[#allocation3 + $0xc8] sm:$0xff] 0.0
      %198 = vst [vmem:[#allocation3 + $0xd0] sm:$0xff] 0.0
      %199 = vst [vmem:[#allocation3 + $0xd8] sm:$0xff] 0.0
      %200 = vst [vmem:[#allocation3 + $0xe0] sm:$0xff] 0.0
      %201 = vst [vmem:[#allocation3 + $0xe8] sm:$0xff] 0.0
      %202 = vst [vmem:[#allocation3 + $0xf0] sm:$0xff] 0.0
      %203 = vst [vmem:[#allocation3 + $0xf8] sm:$0xff] 0.0
      %204 = vst [vmem:[#allocation3 + $0x100] sm:$0xff] 0.0
      %205 = vst [vmem:[#allocation3 + $0x108] sm:$0xff] 0.0
      %206 = vst [vmem:[#allocation3 + $0x110] sm:$0xff] 0.0
      %207 = vst [vmem:[#allocation3 + $0x118] sm:$0xff] 0.0
      %v208 = vld [vmem:[%s165] sm:$0xf]
      %v209 = vld [vmem:[%s165 + $0x4] sm:$0xf]
      %v210 = vld [vmem:[%s165 + $0x8] sm:$0xf]
      %v211 = vld [vmem:[%s165 + $0xc] sm:$0xf]
      %v212 = vld [vmem:[%s165 + $0x10] sm:$0xf]
      %v213 = vld [vmem:[%s165 + $0x14] sm:$0xf]
      %v214 = vld [vmem:[%s165 + $0x18] sm:$0xf]
      %v215 = vld [vmem:[%s165 + $0x1c] sm:$0xf]
      %v216 = vld [vmem:[%s165 + $0x20] sm:$0xf]
      %v217 = vld [vmem:[%s165 + $0x24] sm:$0xf]
      %v218 = vld [vmem:[%s165 + $0x28] sm:$0xf]
      %v219 = vld [vmem:[%s165 + $0x2c] sm:$0xf]
      %v220 = vld [vmem:[%s165 + $0x30] sm:$0xf]
      %v221 = vld [vmem:[%s165 + $0x34] sm:$0xf]
      %v222 = vld [vmem:[%s165 + $0x38] sm:$0xf]
      %v223 = vld [vmem:[%s165 + $0x3c] sm:$0xf]
      %v224 = vld [vmem:[%s165 + $0x40] sm:$0xf]
      %v225 = vld [vmem:[%s165 + $0x44] sm:$0xf]
      %v226 = vld [vmem:[%s165 + $0x48] sm:$0xf]
      %v227 = vld [vmem:[%s165 + $0x4c] sm:$0xf]
      %v228 = vld [vmem:[%s165 + $0x50] sm:$0xf]
      %v229 = vld [vmem:[%s165 + $0x54] sm:$0xf]
      %v230 = vld [vmem:[%s165 + $0x58] sm:$0xf]
      %v231 = vld [vmem:[%s165 + $0x5c] sm:$0xf]
      %v232 = vld [vmem:[%s165 + $0x60] sm:$0xf]
      %v233 = vld [vmem:[%s165 + $0x64] sm:$0xf]
      %v234 = vld [vmem:[%s165 + $0x68] sm:$0xf]
      %v235 = vld [vmem:[%s165 + $0x6c] sm:$0xf]
      %v236 = vld [vmem:[%s165 + $0x70] sm:$0xf]
      %v237 = vld [vmem:[%s165 + $0x74] sm:$0xf]
      %v238 = vld [vmem:[%s165 + $0x78] sm:$0xf]
      %v239 = vld [vmem:[%s165 + $0x7c] sm:$0xf]
      %v240 = vld [vmem:[%s165 + $0x80] sm:$0xf]
      %v241 = vld [vmem:[%s165 + $0x84] sm:$0xf]
      %v242 = vld [vmem:[%s165 + $0x88] sm:$0xf]
      %v243 = vld [vmem:[%s165 + $0x8c] sm:$0xf]
      %v244 = vld [vmem:[%s165 + $0x90] sm:$0x1]
      %v245 = vld [vmem:[%s1] sm:$0x3f]
      %v283 = vunpack.c.l.b16 %v208
      %v284 = vunpack.c.l.b16 %v209
      %v285 = vunpack.c.l.b16 %v210
      %v286 = vunpack.c.l.b16 %v211
      %v287 = vunpack.c.l.b16 %v212
      %v288 = vunpack.c.l.b16 %v213
      %v289 = vunpack.c.l.b16 %v214
      %v290 = vunpack.c.l.b16 %v215
      %v291 = vunpack.c.l.b16 %v216
      %v292 = vunpack.c.l.b16 %v217
      %v293 = vunpack.c.l.b16 %v218
      %v294 = vunpack.c.l.b16 %v219
      %v295 = vunpack.c.l.b16 %v220
      %v296 = vunpack.c.l.b16 %v221
      %v297 = vunpack.c.l.b16 %v222
      %v298 = vunpack.c.l.b16 %v223
      %v299 = vunpack.c.l.b16 %v224
      %v300 = vunpack.c.l.b16 %v225
      %v301 = vunpack.c.l.b16 %v226
      %v302 = vunpack.c.l.b16 %v227
      %v303 = vunpack.c.l.b16 %v228
      %v304 = vunpack.c.l.b16 %v229
      %v305 = vunpack.c.l.b16 %v230
      %v306 = vunpack.c.l.b16 %v231
      %v307 = vunpack.c.l.b16 %v232
      %v308 = vunpack.c.l.b16 %v233
      %v309 = vunpack.c.l.b16 %v234
      %v310 = vunpack.c.l.b16 %v235
      %v311 = vunpack.c.l.b16 %v236
      %v312 = vunpack.c.l.b16 %v237
      %v313 = vunpack.c.l.b16 %v238
      %v314 = vunpack.c.l.b16 %v239
      %v315 = vunpack.c.l.b16 %v240
      %v316 = vunpack.c.l.b16 %v241
      %v317 = vunpack.c.l.b16 %v242
      %v318 = vunpack.c.l.b16 %v243
      %v319 = vunpack.c.l.b16 %v244
      %v320 = vpack.c.b16 %v284, %v283
      %v321 = vpack.c.b16 %v286, %v285
      %v322 = vpack.c.b16 %v288, %v287
      %v323 = vpack.c.b16 %v290, %v289
      %v324 = vpack.c.b16 %v292, %v291
      %v325 = vpack.c.b16 %v294, %v293
      %v326 = vpack.c.b16 %v296, %v295
      %v327 = vpack.c.b16 %v298, %v297
      %v328 = vpack.c.b16 %v300, %v299
      %v329 = vpack.c.b16 %v302, %v301
      %v330 = vpack.c.b16 %v304, %v303
      %v331 = vpack.c.b16 %v306, %v305
      %v332 = vpack.c.b16 %v308, %v307
      %v333 = vpack.c.b16 %v310, %v309
      %v334 = vpack.c.b16 %v312, %v311
      %v335 = vpack.c.b16 %v314, %v313
      %v336 = vpack.c.b16 %v316, %v315
      %v337 = vpack.c.b16 %v318, %v317
      %v338 = vpack.c.b16 %v319, %v319
      %v340 = vcombine.high %v245, %v245
      %v342 = vunpack.c.l.s4 1983009808
      %v343 = vunpack.c.0.s8 %v342
      %v344 = vlaneseq
      %v345 = vshrl.u32 %v344, 7
      %v346 = vsub.s32 %v343, %v345
      %v347 = vrot.slane %v245, %v346
      %v349 = vunpack.c.l.s4 1983009808
      %v350 = vunpack.c.0.s8 %v349
      %v351 = vlaneseq
      %v352 = vshrl.u32 %v351, 7
      %v353 = vsub.s32 %v350, %v352
      %v354 = vrot.slane %v340, %v353
      %v355 = vcombine.high %v347, %v347
      %vm356 = vcmask 31744
      %v358 = vsel %vm356, %v320, 0
      %v361 = vsel %vm356, %v321, 0
      %v364 = vsel %vm356, %v322, 0
      %v367 = vsel %vm356, %v323, 0
      %v370 = vsel %vm356, %v324, 0
      %v373 = vsel %vm356, %v325, 0
      %v376 = vsel %vm356, %v326, 0
      %v379 = vsel %vm356, %v327, 0
      %v382 = vsel %vm356, %v328, 0
      %v385 = vsel %vm356, %v329, 0
      %v388 = vsel %vm356, %v330, 0
      %v391 = vsel %vm356, %v331, 0
      %v394 = vsel %vm356, %v332, 0
      %v397 = vsel %vm356, %v333, 0
      %v400 = vsel %vm356, %v334, 0
      %v403 = vsel %vm356, %v335, 0
      %v406 = vsel %vm356, %v336, 0
      %v409 = vsel %vm356, %v337, 0
      %v412 = vsel %vm356, %v338, 0
      %vm414 = vcmask 1041408
      %v416 = vsel %vm414, %v347, 0
      %v419 = vsel %vm414, %v355, 0
      %v422 = vsel %vm414, %v354, 0
      %424 = vmatprep.subr.bf16.mxu0 %v419
      %425 = vmatpush1.bf16.msra.mxu0 %v416
      %426 = vmatprep.subr.bf16.mxu0 0
      %427 = vmatpush1.bf16.msra.mxu0 0
      %428 = vmatprep.subr.bf16.mxu0 0
      %429 = vmatpush1.bf16.msra.mxu0 0
      %430 = vmatprep.subr.bf16.mxu0 0
      %431 = vmatpush1.bf16.msra.mxu0 0
      %432 = vmatprep.subr.bf16.mxu0 0
      %433 = vmatpush1.bf16.msra.mxu0 0
      %434 = vmatprep.subr.bf16.mxu0 0
      %435 = vmatpush1.bf16.msra.mxu0 0
      %436 = vmatprep.subr.bf16.mxu0 0
      %437 = vmatpush1.bf16.msra.mxu0 0
      %438 = vmatprep.subr.bf16.mxu0 0
      %439 = vmatpush1.bf16.msra.mxu0 0
      %440 = vmatprep.subr.bf16.mxu0 0
      %441 = vmatpush1.bf16.msra.mxu0 0
      %442 = vmatprep.subr.bf16.mxu0 0
      %443 = vmatpush1.bf16.msra.mxu0 0
      %444 = vmatprep.subr.bf16.mxu0 0
      %445 = vmatpush1.bf16.msra.mxu0 0
      %446 = vmatprep.subr.bf16.mxu0 0
      %447 = vmatpush1.bf16.msra.mxu0 0
      %448 = vmatprep.subr.bf16.mxu0 0
      %449 = vmatpush1.bf16.msra.mxu0 0
      %450 = vmatprep.subr.bf16.mxu0 0
      %451 = vmatpush1.bf16.msra.mxu0 0
      %452 = vmatprep.subr.bf16.mxu0 0
      %453 = vmatpush1.bf16.msra.mxu0 0
      %454 = vmatprep.subr.bf16.mxu0 0
      %455 = vmatpush1.bf16.msra.mxu0 0
      %456 = vmatprep.mubr.bf16.mxu0 0
      %457 = vmatmul.mubr.bf16.gmra.mrb[0].mxu0 %v358
      %v458 = vpop.f32.mrb[0].mxu0
      %v459 = vadd.f32 0.0, %v458
      %v460 = vpop.f32.mrb[0].mxu0
      %v461 = vadd.f32 0.0, %v460
      %v462 = vpop.f32.mrb[0].mxu0
      %v463 = vadd.f32 0.0, %v462
      %v464 = vpop.f32.mrb[0].mxu0
      %v465 = vadd.f32 0.0, %v464
      %466 = vmatprep.mubr.bf16.mxu0 0
      %467 = vmatmul.mubr.bf16.gmra.mrb[0].mxu0 %v361
      %v468 = vpop.f32.mrb[0].mxu0
      %v469 = vadd.f32 0.0, %v468
      %v470 = vpop.f32.mrb[0].mxu0
      %v471 = vadd.f32 0.0, %v470
      %v472 = vpop.f32.mrb[0].mxu0
      %v473 = vadd.f32 0.0, %v472
      %v474 = vpop.f32.mrb[0].mxu0
      %v475 = vadd.f32 0.0, %v474
      %476 = vmatprep.mubr.bf16.mxu0 0
      %477 = vmatmul.mubr.bf16.gmra.mrb[0].mxu0 %v364
      %v478 = vpop.f32.mrb[0].mxu0
      %v479 = vadd.f32 0.0, %v478
      %v480 = vpop.f32.mrb[0].mxu0
      %v481 = vadd.f32 0.0, %v480
      %v482 = vpop.f32.mrb[0].mxu0
      %v483 = vadd.f32 0.0, %v482
      %v484 = vpop.f32.mrb[0].mxu0
      %v485 = vadd.f32 0.0, %v484
      %486 = vmatprep.mubr.bf16.mxu0 0
      %487 = vmatmul.mubr.bf16.gmra.mrb[0].mxu0 %v367
      %v488 = vpop.f32.mrb[0].mxu0
      %v489 = vadd.f32 0.0, %v488
      %v490 = vpop.f32.mrb[0].mxu0
      %v491 = vadd.f32 0.0, %v490
      %v492 = vpop.f32.mrb[0].mxu0
      %v493 = vadd.f32 0.0, %v492
      %v494 = vpop.f32.mrb[0].mxu0
      %v495 = vadd.f32 0.0, %v494
      %496 = vmatprep.mubr.bf16.mxu0 0
      %497 = vmatmul.mubr.bf16.gmra.mrb[0].mxu0 %v370
      %v498 = vpop.f32.mrb[0].mxu0
      %v499 = vadd.f32 0.0, %v498
      %v500 = vpop.f32.mrb[0].mxu0
      %v501 = vadd.f32 0.0, %v500
      %v502 = vpop.f32.mrb[0].mxu0
      %v503 = vadd.f32 0.0, %v502
      %v504 = vpop.f32.mrb[0].mxu0
      %v505 = vadd.f32 0.0, %v504
      %506 = vmatprep.mubr.bf16.mxu0 0
      %507 = vmatmul.mubr.bf16.gmra.mrb[0].mxu0 %v373
      %v508 = vpop.f32.mrb[0].mxu0
      %v509 = vadd.f32 0.0, %v508
      %v510 = vpop.f32.mrb[0].mxu0
      %v511 = vadd.f32 0.0, %v510
      %v512 = vpop.f32.mrb[0].mxu0
      %v513 = vadd.f32 0.0, %v512
      %v514 = vpop.f32.mrb[0].mxu0
      %v515 = vadd.f32 0.0, %v514
      %516 = vmatprep.mubr.bf16.mxu0 0
      %517 = vmatmul.mubr.bf16.gmra.mrb[0].mxu0 %v376
      %v518 = vpop.f32.mrb[0].mxu0
      %v519 = vadd.f32 0.0, %v518
      %v520 = vpop.f32.mrb[0].mxu0
      %v521 = vadd.f32 0.0, %v520
      %v522 = vpop.f32.mrb[0].mxu0
      %v523 = vadd.f32 0.0, %v522
      %v524 = vpop.f32.mrb[0].mxu0
      %v525 = vadd.f32 0.0, %v524
      %526 = vmatprep.mubr.bf16.mxu0 0
      %527 = vmatmul.mubr.bf16.gmra.mrb[0].mxu0 %v379
      %v528 = vpop.f32.mrb[0].mxu0
      %v529 = vadd.f32 0.0, %v528
      %v530 = vpop.f32.mrb[0].mxu0
      %v531 = vadd.f32 0.0, %v530
      %v532 = vpop.f32.mrb[0].mxu0
      %v533 = vadd.f32 0.0, %v532
      %v534 = vpop.f32.mrb[0].mxu0
      %v535 = vadd.f32 0.0, %v534
      %536 = vmatprep.mubr.bf16.mxu0 0
      %537 = vmatmul.mubr.bf16.gmra.mrb[0].mxu0 %v382
      %v538 = vpop.f32.mrb[0].mxu0
      %v539 = vadd.f32 0.0, %v538
      %v540 = vpop.f32.mrb[0].mxu0
      %v541 = vadd.f32 0.0, %v540
      %v542 = vpop.f32.mrb[0].mxu0
      %v543 = vadd.f32 0.0, %v542
      %v544 = vpop.f32.mrb[0].mxu0
      %v545 = vadd.f32 0.0, %v544
      %546 = vmatprep.mubr.bf16.mxu0 0
      %547 = vmatmul.mubr.bf16.gmra.mrb[0].mxu0 %v385
      %v548 = vpop.f32.mrb[0].mxu0
      %v549 = vadd.f32 0.0, %v548
      %v550 = vpop.f32.mrb[0].mxu0
      %v551 = vadd.f32 0.0, %v550
      %v552 = vpop.f32.mrb[0].mxu0
      %v553 = vadd.f32 0.0, %v552
      %v554 = vpop.f32.mrb[0].mxu0
      %v555 = vadd.f32 0.0, %v554
      %556 = vmatprep.mubr.bf16.mxu0 0
      %557 = vmatmul.mubr.bf16.gmra.mrb[0].mxu0 %v388
      %v558 = vpop.f32.mrb[0].mxu0
      %v559 = vadd.f32 0.0, %v558
      %v560 = vpop.f32.mrb[0].mxu0
      %v561 = vadd.f32 0.0, %v560
      %v562 = vpop.f32.mrb[0].mxu0
      %v563 = vadd.f32 0.0, %v562
      %v564 = vpop.f32.mrb[0].mxu0
      %v565 = vadd.f32 0.0, %v564
      %566 = vmatprep.mubr.bf16.mxu0 0
      %567 = vmatmul.mubr.bf16.gmra.mrb[0].mxu0 %v391
      %v568 = vpop.f32.mrb[0].mxu0
      %v569 = vadd.f32 0.0, %v568
      %v570 = vpop.f32.mrb[0].mxu0
      %v571 = vadd.f32 0.0, %v570
      %v572 = vpop.f32.mrb[0].mxu0
      %v573 = vadd.f32 0.0, %v572
      %v574 = vpop.f32.mrb[0].mxu0
      %v575 = vadd.f32 0.0, %v574
      %576 = vmatprep.mubr.bf16.mxu0 0
      %577 = vmatmul.mubr.bf16.gmra.mrb[0].mxu0 %v394
      %v578 = vpop.f32.mrb[0].mxu0
      %v579 = vadd.f32 0.0, %v578
      %v580 = vpop.f32.mrb[0].mxu0
      %v581 = vadd.f32 0.0, %v580
      %v582 = vpop.f32.mrb[0].mxu0
      %v583 = vadd.f32 0.0, %v582
      %v584 = vpop.f32.mrb[0].mxu0
      %v585 = vadd.f32 0.0, %v584
      %586 = vmatprep.mubr.bf16.mxu0 0
      %587 = vmatmul.mubr.bf16.gmra.mrb[0].mxu0 %v397
      %v588 = vpop.f32.mrb[0].mxu0
      %v589 = vadd.f32 0.0, %v588
      %v590 = vpop.f32.mrb[0].mxu0
      %v591 = vadd.f32 0.0, %v590
      %v592 = vpop.f32.mrb[0].mxu0
      %v593 = vadd.f32 0.0, %v592
      %v594 = vpop.f32.mrb[0].mxu0
      %v595 = vadd.f32 0.0, %v594
      %596 = vmatprep.mubr.bf16.mxu0 0
      %597 = vmatmul.mubr.bf16.gmra.mrb[0].mxu0 %v400
      %v598 = vpop.f32.mrb[0].mxu0
      %v599 = vadd.f32 0.0, %v598
      %v600 = vpop.f32.mrb[0].mxu0
      %v601 = vadd.f32 0.0, %v600
      %v602 = vpop.f32.mrb[0].mxu0
      %v603 = vadd.f32 0.0, %v602
      %v604 = vpop.f32.mrb[0].mxu0
      %v605 = vadd.f32 0.0, %v604
      %606 = vmatprep.mubr.bf16.mxu0 0
      %607 = vmatmul.mubr.bf16.gmra.mrb[0].mxu0 %v403
      %v608 = vpop.f32.mrb[0].mxu0
      %v609 = vadd.f32 0.0, %v608
      %v610 = vpop.f32.mrb[0].mxu0
      %v611 = vadd.f32 0.0, %v610
      %v612 = vpop.f32.mrb[0].mxu0
      %v613 = vadd.f32 0.0, %v612
      %v614 = vpop.f32.mrb[0].mxu0
      %v615 = vadd.f32 0.0, %v614
      %616 = vmatprep.mubr.bf16.mxu0 0
      %617 = vmatmul.mubr.bf16.gmra.mrb[0].mxu0 %v406
      %v618 = vpop.f32.mrb[0].mxu0
      %v619 = vadd.f32 0.0, %v618
      %v620 = vpop.f32.mrb[0].mxu0
      %v621 = vadd.f32 0.0, %v620
      %v622 = vpop.f32.mrb[0].mxu0
      %v623 = vadd.f32 0.0, %v622
      %v624 = vpop.f32.mrb[0].mxu0
      %v625 = vadd.f32 0.0, %v624
      %626 = vmatprep.mubr.bf16.mxu0 0
      %627 = vmatmul.mubr.bf16.gmra.mrb[0].mxu0 %v409
      %v628 = vpop.f32.mrb[0].mxu0
      %v629 = vadd.f32 0.0, %v628
      %v630 = vpop.f32.mrb[0].mxu0
      %v631 = vadd.f32 0.0, %v630
      %v632 = vpop.f32.mrb[0].mxu0
      %v633 = vadd.f32 0.0, %v632
      %v634 = vpop.f32.mrb[0].mxu0
      %v635 = vadd.f32 0.0, %v634
      %636 = vmatprep.mubr.bf16.mxu0 0
      %637 = vmatmul.mubr.bf16.gmra.mrb[0].mxu0 %v412
      %v638 = vpop.f32.mrb[0].mxu0
      %v639 = vadd.f32 0.0, %v638
      %v640 = vpop.f32.mrb[0].mxu0
      %v641 = vadd.f32 0.0, %v640
      %v642 = vpop.f32.mrb[0].mxu0
      %v643 = vpop.f32.mrb[0].mxu0
      %644 = vdwg.mxu0
      %645 = vmatprep.subr.bf16.mxu0 0
      %646 = vmatpush1.bf16.msra.mxu0 %v422
      %647 = vmatprep.subr.bf16.mxu0 0
      %648 = vmatpush1.bf16.msra.mxu0 0
      %649 = vmatprep.subr.bf16.mxu0 0
      %650 = vmatpush1.bf16.msra.mxu0 0
      %651 = vmatprep.subr.bf16.mxu0 0
      %652 = vmatpush1.bf16.msra.mxu0 0
      %653 = vmatprep.subr.bf16.mxu0 0
      %654 = vmatpush1.bf16.msra.mxu0 0
      %655 = vmatprep.subr.bf16.mxu0 0
      %656 = vmatpush1.bf16.msra.mxu0 0
      %657 = vmatprep.subr.bf16.mxu0 0
      %658 = vmatpush1.bf16.msra.mxu0 0
      %659 = vmatprep.subr.bf16.mxu0 0
      %660 = vmatpush1.bf16.msra.mxu0 0
      %661 = vmatprep.subr.bf16.mxu0 0
      %662 = vmatpush1.bf16.msra.mxu0 0
      %663 = vmatprep.subr.bf16.mxu0 0
      %664 = vmatpush1.bf16.msra.mxu0 0
      %665 = vmatprep.subr.bf16.mxu0 0
      %666 = vmatpush1.bf16.msra.mxu0 0
      %667 = vmatprep.subr.bf16.mxu0 0
      %668 = vmatpush1.bf16.msra.mxu0 0
      %669 = vmatprep.subr.bf16.mxu0 0
      %670 = vmatpush1.bf16.msra.mxu0 0
      %671 = vmatprep.subr.bf16.mxu0 0
      %672 = vmatpush1.bf16.msra.mxu0 0
      %673 = vmatprep.subr.bf16.mxu0 0
      %674 = vmatpush1.bf16.msra.mxu0 0
      %675 = vmatprep.subr.bf16.mxu0 0
      %676 = vmatpush1.bf16.msra.mxu0 0
      %677 = vmatprep.mubr.bf16.mxu0 0
      %678 = vmatmul.mubr.bf16.gmra.mrb[0].mxu0 %v358
      %v679 = vpop.f32.mrb[0].mxu0
      %v680 = vadd.f32 0.0, %v679
      %v681 = vpop.f32.mrb[0].mxu0
      %v682 = vpop.f32.mrb[0].mxu0
      %v683 = vadd.f32 0.0, %v682
      %v684 = vpop.f32.mrb[0].mxu0
      %685 = vmatprep.mubr.bf16.mxu0 0
      %686 = vmatmul.mubr.bf16.gmra.mrb[0].mxu0 %v361
      %v687 = vpop.f32.mrb[0].mxu0
      %v688 = vadd.f32 0.0, %v687
      %v689 = vpop.f32.mrb[0].mxu0
      %v690 = vpop.f32.mrb[0].mxu0
      %v691 = vadd.f32 0.0, %v690
      %v692 = vpop.f32.mrb[0].mxu0
      %693 = vmatprep.mubr.bf16.mxu0 0
      %694 = vmatmul.mubr.bf16.gmra.mrb[0].mxu0 %v364
      %v695 = vpop.f32.mrb[0].mxu0
      %v696 = vadd.f32 0.0, %v695
      %v697 = vpop.f32.mrb[0].mxu0
      %v698 = vpop.f32.mrb[0].mxu0
      %v699 = vadd.f32 0.0, %v698
      %v700 = vpop.f32.mrb[0].mxu0
      %701 = vmatprep.mubr.bf16.mxu0 0
      %702 = vmatmul.mubr.bf16.gmra.mrb[0].mxu0 %v367
      %v703 = vpop.f32.mrb[0].mxu0
      %v704 = vadd.f32 0.0, %v703
      %v705 = vpop.f32.mrb[0].mxu0
      %v706 = vpop.f32.mrb[0].mxu0
      %v707 = vadd.f32 0.0, %v706
      %v708 = vpop.f32.mrb[0].mxu0
      %709 = vmatprep.mubr.bf16.mxu0 0
      %710 = vmatmul.mubr.bf16.gmra.mrb[0].mxu0 %v370
      %v711 = vpop.f32.mrb[0].mxu0
      %v712 = vadd.f32 0.0, %v711
      %v713 = vpop.f32.mrb[0].mxu0
      %v714 = vpop.f32.mrb[0].mxu0
      %v715 = vadd.f32 0.0, %v714
      %v716 = vpop.f32.mrb[0].mxu0
      %717 = vmatprep.mubr.bf16.mxu0 0
      %718 = vmatmul.mubr.bf16.gmra.mrb[0].mxu0 %v373
      %v719 = vpop.f32.mrb[0].mxu0
      %v720 = vadd.f32 0.0, %v719
      %v721 = vpop.f32.mrb[0].mxu0
      %v722 = vpop.f32.mrb[0].mxu0
      %v723 = vadd.f32 0.0, %v722
      %v724 = vpop.f32.mrb[0].mxu0
      %725 = vmatprep.mubr.bf16.mxu0 0
      %726 = vmatmul.mubr.bf16.gmra.mrb[0].mxu0 %v376
      %v727 = vpop.f32.mrb[0].mxu0
      %v728 = vadd.f32 0.0, %v727
      %v729 = vpop.f32.mrb[0].mxu0
      %v730 = vpop.f32.mrb[0].mxu0
      %v731 = vadd.f32 0.0, %v730
      %v732 = vpop.f32.mrb[0].mxu0
      %733 = vmatprep.mubr.bf16.mxu0 0
      %734 = vmatmul.mubr.bf16.gmra.mrb[0].mxu0 %v379
      %v735 = vpop.f32.mrb[0].mxu0
      %v736 = vadd.f32 0.0, %v735
      %v737 = vpop.f32.mrb[0].mxu0
      %v738 = vpop.f32.mrb[0].mxu0
      %v739 = vadd.f32 0.0, %v738
      %v740 = vpop.f32.mrb[0].mxu0
      %741 = vmatprep.mubr.bf16.mxu0 0
      %742 = vmatmul.mubr.bf16.gmra.mrb[0].mxu0 %v382
      %v743 = vpop.f32.mrb[0].mxu0
      %v744 = vadd.f32 0.0, %v743
      %v745 = vpop.f32.mrb[0].mxu0
      %v746 = vpop.f32.mrb[0].mxu0
      %v747 = vadd.f32 0.0, %v746
      %v748 = vpop.f32.mrb[0].mxu0
      %749 = vmatprep.mubr.bf16.mxu0 0
      %750 = vmatmul.mubr.bf16.gmra.mrb[0].mxu0 %v385
      %v751 = vpop.f32.mrb[0].mxu0
      %v752 = vadd.f32 0.0, %v751
      %v753 = vpop.f32.mrb[0].mxu0
      %v754 = vpop.f32.mrb[0].mxu0
      %v755 = vadd.f32 0.0, %v754
      %v756 = vpop.f32.mrb[0].mxu0
      %757 = vmatprep.mubr.bf16.mxu0 0
      %758 = vmatmul.mubr.bf16.gmra.mrb[0].mxu0 %v388
      %v759 = vpop.f32.mrb[0].mxu0
      %v760 = vadd.f32 0.0, %v759
      %v761 = vpop.f32.mrb[0].mxu0
      %v762 = vpop.f32.mrb[0].mxu0
      %v763 = vadd.f32 0.0, %v762
      %v764 = vpop.f32.mrb[0].mxu0
      %765 = vmatprep.mubr.bf16.mxu0 0
      %766 = vmatmul.mubr.bf16.gmra.mrb[0].mxu0 %v391
      %v767 = vpop.f32.mrb[0].mxu0
      %v768 = vadd.f32 0.0, %v767
      %v769 = vpop.f32.mrb[0].mxu0
      %v770 = vpop.f32.mrb[0].mxu0
      %v771 = vadd.f32 0.0, %v770
      %v772 = vpop.f32.mrb[0].mxu0
      %773 = vmatprep.mubr.bf16.mxu0 0
      %774 = vmatmul.mubr.bf16.gmra.mrb[0].mxu0 %v394
      %v775 = vpop.f32.mrb[0].mxu0
      %v776 = vadd.f32 0.0, %v775
      %v777 = vpop.f32.mrb[0].mxu0
      %v778 = vpop.f32.mrb[0].mxu0
      %v779 = vadd.f32 0.0, %v778
      %v780 = vpop.f32.mrb[0].mxu0
      %781 = vmatprep.mubr.bf16.mxu0 0
      %782 = vmatmul.mubr.bf16.gmra.mrb[0].mxu0 %v397
      %v783 = vpop.f32.mrb[0].mxu0
      %v784 = vadd.f32 0.0, %v783
      %v785 = vpop.f32.mrb[0].mxu0
      %v786 = vpop.f32.mrb[0].mxu0
      %v787 = vadd.f32 0.0, %v786
      %v788 = vpop.f32.mrb[0].mxu0
      %789 = vmatprep.mubr.bf16.mxu0 0
      %790 = vmatmul.mubr.bf16.gmra.mrb[0].mxu0 %v400
      %v791 = vpop.f32.mrb[0].mxu0
      %v792 = vadd.f32 0.0, %v791
      %v793 = vpop.f32.mrb[0].mxu0
      %v794 = vpop.f32.mrb[0].mxu0
      %v795 = vadd.f32 0.0, %v794
      %v796 = vpop.f32.mrb[0].mxu0
      %797 = vmatprep.mubr.bf16.mxu0 0
      %798 = vmatmul.mubr.bf16.gmra.mrb[0].mxu0 %v403
      %v799 = vpop.f32.mrb[0].mxu0
      %v800 = vadd.f32 0.0, %v799
      %v801 = vpop.f32.mrb[0].mxu0
      %v802 = vpop.f32.mrb[0].mxu0
      %v803 = vadd.f32 0.0, %v802
      %v804 = vpop.f32.mrb[0].mxu0
      %805 = vmatprep.mubr.bf16.mxu0 0
      %806 = vmatmul.mubr.bf16.gmra.mrb[0].mxu0 %v406
      %v807 = vpop.f32.mrb[0].mxu0
      %v808 = vadd.f32 0.0, %v807
      %v809 = vpop.f32.mrb[0].mxu0
      %v810 = vpop.f32.mrb[0].mxu0
      %v811 = vadd.f32 0.0, %v810
      %v812 = vpop.f32.mrb[0].mxu0
      %813 = vmatprep.mubr.bf16.mxu0 0
      %814 = vmatmul.mubr.bf16.gmra.mrb[0].mxu0 %v409
      %v815 = vpop.f32.mrb[0].mxu0
      %v816 = vadd.f32 0.0, %v815
      %v817 = vpop.f32.mrb[0].mxu0
      %v818 = vpop.f32.mrb[0].mxu0
      %v819 = vadd.f32 0.0, %v818
      %v820 = vpop.f32.mrb[0].mxu0
      %821 = vmatprep.mubr.bf16.mxu0 0
      %822 = vmatmul.mubr.bf16.gmra.mrb[0].mxu0 %v412
      %v823 = vpop.f32.mrb[0].mxu0
      %v824 = vadd.f32 0.0, %v823
      %v825 = vpop.f32.mrb[0].mxu0
      %v826 = vpop.f32.mrb[0].mxu0
      %v827 = vpop.f32.mrb[0].mxu0
      %828 = vdwg.mxu0
      %829 = vst [vmem:[#allocation2] sm:$0xff] %v459
      %830 = vst [vmem:[#allocation2 + $0x8] sm:$0xff] %v461
      %831 = vst [vmem:[#allocation2 + $0x10] sm:$0xff] %v680
      %832 = vst [vmem:[#allocation2 + $0x18] sm:$0xff] %v463
      %833 = vst [vmem:[#allocation2 + $0x20] sm:$0xff] %v465
      %834 = vst [vmem:[#allocation2 + $0x28] sm:$0xff] %v683
      %835 = vst [vmem:[#allocation2 + $0x30] sm:$0xff] %v469
      %836 = vst [vmem:[#allocation2 + $0x38] sm:$0xff] %v471
      %837 = vst [vmem:[#allocation2 + $0x40] sm:$0xff] %v688
      %838 = vst [vmem:[#allocation2 + $0x48] sm:$0xff] %v473
      %839 = vst [vmem:[#allocation2 + $0x50] sm:$0xff] %v475
      %840 = vst [vmem:[#allocation2 + $0x58] sm:$0xff] %v691
      %841 = vst [vmem:[#allocation2 + $0x60] sm:$0xff] %v479
      %842 = vst [vmem:[#allocation2 + $0x68] sm:$0xff] %v481
      %843 = vst [vmem:[#allocation2 + $0x70] sm:$0xff] %v696
      %844 = vst [vmem:[#allocation2 + $0x78] sm:$0xff] %v483
      %845 = vst [vmem:[#allocation2 + $0x80] sm:$0xff] %v485
      %846 = vst [vmem:[#allocation2 + $0x88] sm:$0xff] %v699
      %847 = vst [vmem:[#allocation2 + $0x90] sm:$0xff] %v489
      %848 = vst [vmem:[#allocation2 + $0x98] sm:$0xff] %v491
      %849 = vst [vmem:[#allocation2 + $0xa0] sm:$0xff] %v704
      %850 = vst [vmem:[#allocation2 + $0xa8] sm:$0xff] %v493
      %851 = vst [vmem:[#allocation2 + $0xb0] sm:$0xff] %v495
      %852 = vst [vmem:[#allocation2 + $0xb8] sm:$0xff] %v707
      %853 = vst [vmem:[#allocation2 + $0xc0] sm:$0xff] %v499
      %854 = vst [vmem:[#allocation2 + $0xc8] sm:$0xff] %v501
      %855 = vst [vmem:[#allocation2 + $0xd0] sm:$0xff] %v712
      %856 = vst [vmem:[#allocation2 + $0xd8] sm:$0xff] %v503
      %857 = vst [vmem:[#allocation2 + $0xe0] sm:$0xff] %v505
      %858 = vst [vmem:[#allocation2 + $0xe8] sm:$0xff] %v715
      %859 = vst [vmem:[#allocation2 + $0xf0] sm:$0xff] %v509
      %860 = vst [vmem:[#allocation2 + $0xf8] sm:$0xff] %v511
      %861 = vst [vmem:[#allocation2 + $0x100] sm:$0xff] %v720
      %862 = vst [vmem:[#allocation2 + $0x108] sm:$0xff] %v513
      %863 = vst [vmem:[#allocation2 + $0x110] sm:$0xff] %v515
      %864 = vst [vmem:[#allocation2 + $0x118] sm:$0xff] %v723
      %865 = vst [vmem:[#allocation2 + $0x120] sm:$0xff] %v519
      %866 = vst [vmem:[#allocation2 + $0x128] sm:$0xff] %v521
      %867 = vst [vmem:[#allocation2 + $0x130] sm:$0xff] %v728
      %868 = vst [vmem:[#allocation2 + $0x138] sm:$0xff] %v523
      %869 = vst [vmem:[#allocation2 + $0x140] sm:$0xff] %v525
      %870 = vst [vmem:[#allocation2 + $0x148] sm:$0xff] %v731
      %871 = vst [vmem:[#allocation2 + $0x150] sm:$0xff] %v529
      %872 = vst [vmem:[#allocation2 + $0x158] sm:$0xff] %v531
      %873 = vst [vmem:[#allocation2 + $0x160] sm:$0xff] %v736
      %874 = vst [vmem:[#allocation2 + $0x168] sm:$0xff] %v533
      %875 = vst [vmem:[#allocation2 + $0x170] sm:$0xff] %v535
      %876 = vst [vmem:[#allocation2 + $0x178] sm:$0xff] %v739
      %877 = vst [vmem:[#allocation2 + $0x180] sm:$0xff] %v539
      %878 = vst [vmem:[#allocation2 + $0x188] sm:$0xff] %v541
      %879 = vst [vmem:[#allocation2 + $0x190] sm:$0xff] %v744
      %880 = vst [vmem:[#allocation2 + $0x198] sm:$0xff] %v543
      %881 = vst [vmem:[#allocation2 + $0x1a0] sm:$0xff] %v545
      %882 = vst [vmem:[#allocation2 + $0x1a8] sm:$0xff] %v747
      %883 = vst [vmem:[#allocation2 + $0x1b0] sm:$0xff] %v549
      %884 = vst [vmem:[#allocation2 + $0x1b8] sm:$0xff] %v551
      %885 = vst [vmem:[#allocation2 + $0x1c0] sm:$0xff] %v752
      %886 = vst [vmem:[#allocation2 + $0x1c8] sm:$0xff] %v553
      %887 = vst [vmem:[#allocation2 + $0x1d0] sm:$0xff] %v555
      %888 = vst [vmem:[#allocation2 + $0x1d8] sm:$0xff] %v755
      %889 = vst [vmem:[#allocation2 + $0x1e0] sm:$0xff] %v559
      %890 = vst [vmem:[#allocation2 + $0x1e8] sm:$0xff] %v561
      %891 = vst [vmem:[#allocation2 + $0x1f0] sm:$0xff] %v760
      %892 = vst [vmem:[#allocation2 + $0x1f8] sm:$0xff] %v563
      %893 = vst [vmem:[#allocation2 + $0x200] sm:$0xff] %v565
      %894 = vst [vmem:[#allocation2 + $0x208] sm:$0xff] %v763
      %895 = vst [vmem:[#allocation2 + $0x210] sm:$0xff] %v569
      %896 = vst [vmem:[#allocation2 + $0x218] sm:$0xff] %v571
      %897 = vst [vmem:[#allocation2 + $0x220] sm:$0xff] %v768
      %898 = vst [vmem:[#allocation2 + $0x228] sm:$0xff] %v573
      %899 = vst [vmem:[#allocation2 + $0x230] sm:$0xff] %v575
      %900 = vst [vmem:[#allocation2 + $0x238] sm:$0xff] %v771
      %901 = vst [vmem:[#allocation2 + $0x240] sm:$0xff] %v579
      %902 = vst [vmem:[#allocation2 + $0x248] sm:$0xff] %v581
      %903 = vst [vmem:[#allocation2 + $0x250] sm:$0xff] %v776
      %904 = vst [vmem:[#allocation2 + $0x258] sm:$0xff] %v583
      %905 = vst [vmem:[#allocation2 + $0x260] sm:$0xff] %v585
      %906 = vst [vmem:[#allocation2 + $0x268] sm:$0xff] %v779
      %907 = vst [vmem:[#allocation2 + $0x270] sm:$0xff] %v589
      %908 = vst [vmem:[#allocation2 + $0x278] sm:$0xff] %v591
      %909 = vst [vmem:[#allocation2 + $0x280] sm:$0xff] %v784
      %910 = vst [vmem:[#allocation2 + $0x288] sm:$0xff] %v593
      %911 = vst [vmem:[#allocation2 + $0x290] sm:$0xff] %v595
      %912 = vst [vmem:[#allocation2 + $0x298] sm:$0xff] %v787
      %913 = vst [vmem:[#allocation2 + $0x2a0] sm:$0xff] %v599
      %914 = vst [vmem:[#allocation2 + $0x2a8] sm:$0xff] %v601
      %915 = vst [vmem:[#allocation2 + $0x2b0] sm:$0xff] %v792
      %916 = vst [vmem:[#allocation2 + $0x2b8] sm:$0xff] %v603
      %917 = vst [vmem:[#allocation2 + $0x2c0] sm:$0xff] %v605
      %918 = vst [vmem:[#allocation2 + $0x2c8] sm:$0xff] %v795
      %919 = vst [vmem:[#allocation2 + $0x2d0] sm:$0xff] %v609
      %920 = vst [vmem:[#allocation2 + $0x2d8] sm:$0xff] %v611
      %921 = vst [vmem:[#allocation2 + $0x2e0] sm:$0xff] %v800
      %922 = vst [vmem:[#allocation2 + $0x2e8] sm:$0xff] %v613
      %923 = vst [vmem:[#allocation2 + $0x2f0] sm:$0xff] %v615
      %924 = vst [vmem:[#allocation2 + $0x2f8] sm:$0xff] %v803
      %925 = vst [vmem:[#allocation2 + $0x300] sm:$0xff] %v619
      %926 = vst [vmem:[#allocation2 + $0x308] sm:$0xff] %v621
      %927 = vst [vmem:[#allocation2 + $0x310] sm:$0xff] %v808
      %928 = vst [vmem:[#allocation2 + $0x318] sm:$0xff] %v623
      %929 = vst [vmem:[#allocation2 + $0x320] sm:$0xff] %v625
      %930 = vst [vmem:[#allocation2 + $0x328] sm:$0xff] %v811
      %931 = vst [vmem:[#allocation2 + $0x330] sm:$0xff] %v629
      %932 = vst [vmem:[#allocation2 + $0x338] sm:$0xff] %v631
      %933 = vst [vmem:[#allocation2 + $0x340] sm:$0xff] %v816
      %934 = vst [vmem:[#allocation2 + $0x348] sm:$0xff] %v633
      %935 = vst [vmem:[#allocation2 + $0x350] sm:$0xff] %v635
      %936 = vst [vmem:[#allocation2 + $0x358] sm:$0xff] %v819
      %937 = vst [vmem:[#allocation2 + $0x360] sm:$0x3] %v639
      %938 = vst [vmem:[#allocation2 + $0x368] sm:$0x3] %v641
      %939 = vst [vmem:[#allocation2 + $0x370] sm:$0x3] %v824
      %v940 = vld [vmem:[#allocation3] sm:$0xff]
      %v941 = vld [vmem:[#allocation3 + $0x8] sm:$0xff]
      %v942 = vld [vmem:[#allocation3 + $0x10] sm:$0xff]
      %v943 = vld [vmem:[#allocation3 + $0x18] sm:$0xff]
      %v944 = vld [vmem:[#allocation3 + $0x20] sm:$0xff]
      %v945 = vld [vmem:[#allocation3 + $0x28] sm:$0xff]
      %v946 = vld [vmem:[#allocation3 + $0x30] sm:$0xff]
      %v947 = vld [vmem:[#allocation3 + $0x38] sm:$0xff]
      %v948 = vld [vmem:[#allocation3 + $0x40] sm:$0xff]
      %v949 = vld [vmem:[#allocation3 + $0x48] sm:$0xff]
      %v950 = vld [vmem:[#allocation3 + $0x50] sm:$0xff]
      %v951 = vld [vmem:[#allocation3 + $0x58] sm:$0xff]
      %v952 = vld [vmem:[#allocation3 + $0x60] sm:$0xff]
      %v953 = vld [vmem:[#allocation3 + $0x68] sm:$0xff]
      %v954 = vld [vmem:[#allocation3 + $0x70] sm:$0xff]
      %v955 = vld [vmem:[#allocation3 + $0x78] sm:$0xff]
      %v956 = vld [vmem:[#allocation3 + $0x80] sm:$0xff]
      %v957 = vld [vmem:[#allocation3 + $0x88] sm:$0xff]
      %v958 = vld [vmem:[#allocation3 + $0x90] sm:$0xff]
      %v959 = vld [vmem:[#allocation3 + $0x98] sm:$0xff]
      %v960 = vld [vmem:[#allocation3 + $0xa0] sm:$0xff]
      %v961 = vld [vmem:[#allocation3 + $0xa8] sm:$0xff]
      %v962 = vld [vmem:[#allocation3 + $0xb0] sm:$0xff]
      %v963 = vld [vmem:[#allocation3 + $0xb8] sm:$0xff]
      %v964 = vld [vmem:[#allocation3 + $0xc0] sm:$0xff]
      %v965 = vld [vmem:[#allocation3 + $0xc8] sm:$0xff]
      %v966 = vld [vmem:[#allocation3 + $0xd0] sm:$0xff]
      %v967 = vld [vmem:[#allocation3 + $0xd8] sm:$0xff]
      %v968 = vld [vmem:[#allocation3 + $0xe0] sm:$0xff]
      %v969 = vld [vmem:[#allocation3 + $0xe8] sm:$0xff]
      %v970 = vld [vmem:[#allocation3 + $0xf0] sm:$0xff]
      %v971 = vld [vmem:[#allocation3 + $0xf8] sm:$0xff]
      %v972 = vld [vmem:[#allocation3 + $0x100] sm:$0xff]
      %v973 = vld [vmem:[#allocation3 + $0x108] sm:$0xff]
      %v974 = vld [vmem:[#allocation3 + $0x110] sm:$0xff]
      %v975 = vld [vmem:[#allocation3 + $0x118] sm:$0xff]
      %v976 = vld [vmem:[#allocation2] sm:$0xff]
      %v977 = vld [vmem:[#allocation2 + $0x18] sm:$0xff]
      %v978 = vld [vmem:[#allocation2 + $0x30] sm:$0xff]
      %v979 = vld [vmem:[#allocation2 + $0x48] sm:$0xff]
      %v980 = vld [vmem:[#allocation2 + $0x60] sm:$0xff]
      %v981 = vld [vmem:[#allocation2 + $0x78] sm:$0xff]
      %v982 = vld [vmem:[#allocation2 + $0x90] sm:$0xff]
      %v983 = vld [vmem:[#allocation2 + $0xa8] sm:$0xff]
      %v984 = vld [vmem:[#allocation2 + $0xc0] sm:$0xff]
      %v985 = vld [vmem:[#allocation2 + $0xd8] sm:$0xff]
      %v986 = vld [vmem:[#allocation2 + $0xf0] sm:$0xff]
      %v987 = vld [vmem:[#allocation2 + $0x108] sm:$0xff]
      %v988 = vld [vmem:[#allocation2 + $0x120] sm:$0xff]
      %v989 = vld [vmem:[#allocation2 + $0x138] sm:$0xff]
      %v990 = vld [vmem:[#allocation2 + $0x150] sm:$0xff]
      %v991 = vld [vmem:[#allocation2 + $0x168] sm:$0xff]
      %v992 = vld [vmem:[#allocation2 + $0x180] sm:$0xff]
      %v993 = vld [vmem:[#allocation2 + $0x198] sm:$0xff]
      %v994 = vld [vmem:[#allocation2 + $0x1b0] sm:$0xff]
      %v995 = vld [vmem:[#allocation2 + $0x1c8] sm:$0xff]
      %v996 = vld [vmem:[#allocation2 + $0x1e0] sm:$0xff]
      %v997 = vld [vmem:[#allocation2 + $0x1f8] sm:$0xff]
      %v998 = vld [vmem:[#allocation2 + $0x210] sm:$0xff]
      %v999 = vld [vmem:[#allocation2 + $0x228] sm:$0xff]
      %v1000 = vld [vmem:[#allocation2 + $0x240] sm:$0xff]
      %v1001 = vld [vmem:[#allocation2 + $0x258] sm:$0xff]
      %v1002 = vld [vmem:[#allocation2 + $0x270] sm:$0xff]
      %v1003 = vld [vmem:[#allocation2 + $0x288] sm:$0xff]
      %v1004 = vld [vmem:[#allocation2 + $0x2a0] sm:$0xff]
      %v1005 = vld [vmem:[#allocation2 + $0x2b8] sm:$0xff]
      %v1006 = vld [vmem:[#allocation2 + $0x2d0] sm:$0xff]
      %v1007 = vld [vmem:[#allocation2 + $0x2e8] sm:$0xff]
      %v1008 = vld [vmem:[#allocation2 + $0x300] sm:$0xff]
      %v1009 = vld [vmem:[#allocation2 + $0x318] sm:$0xff]
      %v1010 = vld [vmem:[#allocation2 + $0x330] sm:$0xff]
      %v1011 = vld [vmem:[#allocation2 + $0x348] sm:$0xff]
      %v1012 = vadd.f32 %v940, %v976
      %v1013 = vadd.f32 %v941, %v977
      %v1014 = vadd.f32 %v942, %v978
      %v1015 = vadd.f32 %v943, %v979
      %v1016 = vadd.f32 %v944, %v980
      %v1017 = vadd.f32 %v945, %v981
      %v1018 = vadd.f32 %v946, %v982
      %v1019 = vadd.f32 %v947, %v983
      %v1020 = vadd.f32 %v948, %v984
      %v1021 = vadd.f32 %v949, %v985
      %v1022 = vadd.f32 %v950, %v986
      %v1023 = vadd.f32 %v951, %v987
      %v1024 = vadd.f32 %v952, %v988
      %v1025 = vadd.f32 %v953, %v989
      %v1026 = vadd.f32 %v954, %v990
      %v1027 = vadd.f32 %v955, %v991
      %v1028 = vadd.f32 %v956, %v992
      %v1029 = vadd.f32 %v957, %v993
      %v1030 = vadd.f32 %v958, %v994
      %v1031 = vadd.f32 %v959, %v995
      %v1032 = vadd.f32 %v960, %v996
      %v1033 = vadd.f32 %v961, %v997
      %v1034 = vadd.f32 %v962, %v998
      %v1035 = vadd.f32 %v963, %v999
      %v1036 = vadd.f32 %v964, %v1000
      %v1037 = vadd.f32 %v965, %v1001
      %v1038 = vadd.f32 %v966, %v1002
      %v1039 = vadd.f32 %v967, %v1003
      %v1040 = vadd.f32 %v968, %v1004
      %v1041 = vadd.f32 %v969, %v1005
      %v1042 = vadd.f32 %v970, %v1006
      %v1043 = vadd.f32 %v971, %v1007
      %v1044 = vadd.f32 %v972, %v1008
      %v1045 = vadd.f32 %v973, %v1009
      %v1046 = vadd.f32 %v974, %v1010
      %v1047 = vadd.f32 %v975, %v1011
      %1048 = vst [vmem:[#allocation3] sm:$0xff] %v1012
      %1049 = vst [vmem:[#allocation3 + $0x8] sm:$0xff] %v1013
      %1050 = vst [vmem:[#allocation3 + $0x10] sm:$0xff] %v1014
      %1051 = vst [vmem:[#allocation3 + $0x18] sm:$0xff] %v1015
      %1052 = vst [vmem:[#allocation3 + $0x20] sm:$0xff] %v1016
      %1053 = vst [vmem:[#allocation3 + $0x28] sm:$0xff] %v1017
      %1054 = vst [vmem:[#allocation3 + $0x30] sm:$0xff] %v1018
      %1055 = vst [vmem:[#allocation3 + $0x38] sm:$0xff] %v1019
      %1056 = vst [vmem:[#allocation3 + $0x40] sm:$0xff] %v1020
      %1057 = vst [vmem:[#allocation3 + $0x48] sm:$0xff] %v1021
      %1058 = vst [vmem:[#allocation3 + $0x50] sm:$0xff] %v1022
      %1059 = vst [vmem:[#allocation3 + $0x58] sm:$0xff] %v1023
      %1060 = vst [vmem:[#allocation3 + $0x60] sm:$0xff] %v1024
      %1061 = vst [vmem:[#allocation3 + $0x68] sm:$0xff] %v1025
      %1062 = vst [vmem:[#allocation3 + $0x70] sm:$0xff] %v1026
      %1063 = vst [vmem:[#allocation3 + $0x78] sm:$0xff] %v1027
      %1064 = vst [vmem:[#allocation3 + $0x80] sm:$0xff] %v1028
      %1065 = vst [vmem:[#allocation3 + $0x88] sm:$0xff] %v1029
      %1066 = vst [vmem:[#allocation3 + $0x90] sm:$0xff] %v1030
      %1067 = vst [vmem:[#allocation3 + $0x98] sm:$0xff] %v1031
      %1068 = vst [vmem:[#allocation3 + $0xa0] sm:$0xff] %v1032
      %1069 = vst [vmem:[#allocation3 + $0xa8] sm:$0xff] %v1033
      %1070 = vst [vmem:[#allocation3 + $0xb0] sm:$0xff] %v1034
      %1071 = vst [vmem:[#allocation3 + $0xb8] sm:$0xff] %v1035
      %1072 = vst [vmem:[#allocation3 + $0xc0] sm:$0xff] %v1036
      %1073 = vst [vmem:[#allocation3 + $0xc8] sm:$0xff] %v1037
      %1074 = vst [vmem:[#allocation3 + $0xd0] sm:$0xff] %v1038
      %1075 = vst [vmem:[#allocation3 + $0xd8] sm:$0xff] %v1039
      %1076 = vst [vmem:[#allocation3 + $0xe0] sm:$0xff] %v1040
      %1077 = vst [vmem:[#allocation3 + $0xe8] sm:$0xff] %v1041
      %1078 = vst [vmem:[#allocation3 + $0xf0] sm:$0xff] %v1042
      %1079 = vst [vmem:[#allocation3 + $0xf8] sm:$0xff] %v1043
      %1080 = vst [vmem:[#allocation3 + $0x100] sm:$0xff] %v1044
      %1081 = vst [vmem:[#allocation3 + $0x108] sm:$0xff] %v1045
      %1082 = vst [vmem:[#allocation3 + $0x110] sm:$0xff] %v1046
      %1083 = vst [vmem:[#allocation3 + $0x118] sm:$0xff] %v1047
      %v1084 = vld [vmem:[#allocation3] sm:$0xff]
      %v1085 = vld [vmem:[#allocation3 + $0x8] sm:$0xff]
      %v1086 = vld [vmem:[#allocation3 + $0x10] sm:$0xff]
      %v1087 = vld [vmem:[#allocation3 + $0x18] sm:$0xff]
      %v1088 = vld [vmem:[#allocation3 + $0x20] sm:$0xff]
      %v1089 = vld [vmem:[#allocation3 + $0x28] sm:$0xff]
      %v1090 = vld [vmem:[#allocation3 + $0x30] sm:$0xff]
      %v1091 = vld [vmem:[#allocation3 + $0x38] sm:$0xff]
      %v1092 = vld [vmem:[#allocation3 + $0x40] sm:$0xff]
      %v1093 = vld [vmem:[#allocation3 + $0x48] sm:$0xff]
      %v1094 = vld [vmem:[#allocation3 + $0x50] sm:$0xff]
      %v1095 = vld [vmem:[#allocation3 + $0x58] sm:$0xff]
      %v1096 = vld [vmem:[#allocation3 + $0x60] sm:$0xff]
      %v1097 = vld [vmem:[#allocation3 + $0x68] sm:$0xff]
      %v1098 = vld [vmem:[#allocation3 + $0x70] sm:$0xff]
      %v1099 = vld [vmem:[#allocation3 + $0x78] sm:$0xff]
      %v1100 = vld [vmem:[#allocation3 + $0x80] sm:$0xff]
      %v1101 = vld [vmem:[#allocation3 + $0x88] sm:$0xff]
      %v1102 = vld [vmem:[#allocation3 + $0x90] sm:$0xff]
      %v1103 = vld [vmem:[#allocation3 + $0x98] sm:$0xff]
      %v1104 = vld [vmem:[#allocation3 + $0xa0] sm:$0xff]
      %v1105 = vld [vmem:[#allocation3 + $0xa8] sm:$0xff]
      %v1106 = vld [vmem:[#allocation3 + $0xb0] sm:$0xff]
      %v1107 = vld [vmem:[#allocation3 + $0xb8] sm:$0xff]
      %v1108 = vld [vmem:[#allocation3 + $0xc0] sm:$0xff]
      %v1109 = vld [vmem:[#allocation3 + $0xc8] sm:$0xff]
      %v1110 = vld [vmem:[#allocation3 + $0xd0] sm:$0xff]
      %v1111 = vld [vmem:[#allocation3 + $0xd8] sm:$0xff]
      %v1112 = vld [vmem:[#allocation3 + $0xe0] sm:$0xff]
      %v1113 = vld [vmem:[#allocation3 + $0xe8] sm:$0xff]
      %v1114 = vld [vmem:[#allocation3 + $0xf0] sm:$0xff]
      %v1115 = vld [vmem:[#allocation3 + $0xf8] sm:$0xff]
      %v1116 = vld [vmem:[#allocation3 + $0x100] sm:$0xff]
      %v1117 = vld [vmem:[#allocation3 + $0x108] sm:$0xff]
      %v1118 = vld [vmem:[#allocation3 + $0x110] sm:$0xff]
      %v1119 = vld [vmem:[#allocation3 + $0x118] sm:$0xff]
      %v1120 = vld [vmem:[#allocation2 + $0x8] sm:$0xfe]
      %v1121 = vld [vmem:[#allocation2 + $0x20] sm:$0xff]
      %v1122 = vld [vmem:[#allocation2 + $0x38] sm:$0xff]
      %v1123 = vld [vmem:[#allocation2 + $0x50] sm:$0xff]
      %v1124 = vld [vmem:[#allocation2 + $0x68] sm:$0xff]
      %v1125 = vld [vmem:[#allocation2 + $0x80] sm:$0xff]
      %v1126 = vld [vmem:[#allocation2 + $0x98] sm:$0xff]
      %v1127 = vld [vmem:[#allocation2 + $0xb0] sm:$0xff]
      %v1128 = vld [vmem:[#allocation2 + $0xc8] sm:$0xff]
      %v1129 = vld [vmem:[#allocation2 + $0xe0] sm:$0xff]
      %v1130 = vld [vmem:[#allocation2 + $0xf8] sm:$0xff]
      %v1131 = vld [vmem:[#allocation2 + $0x110] sm:$0xff]
      %v1132 = vld [vmem:[#allocation2 + $0x128] sm:$0xff]
      %v1133 = vld [vmem:[#allocation2 + $0x140] sm:$0xff]
      %v1134 = vld [vmem:[#allocation2 + $0x158] sm:$0xff]
      %v1135 = vld [vmem:[#allocation2 + $0x170] sm:$0xff]
      %v1136 = vld [vmem:[#allocation2 + $0x188] sm:$0xff]
      %v1137 = vld [vmem:[#allocation2 + $0x1a0] sm:$0xff]
      %v1138 = vld [vmem:[#allocation2 + $0x1b8] sm:$0xff]
      %v1139 = vld [vmem:[#allocation2 + $0x1d0] sm:$0xff]
      %v1140 = vld [vmem:[#allocation2 + $0x1e8] sm:$0xff]
      %v1141 = vld [vmem:[#allocation2 + $0x200] sm:$0xff]
      %v1142 = vld [vmem:[#allocation2 + $0x218] sm:$0xff]
      %v1143 = vld [vmem:[#allocation2 + $0x230] sm:$0xff]
      %v1144 = vld [vmem:[#allocation2 + $0x248] sm:$0xff]
      %v1145 = vld [vmem:[#allocation2 + $0x260] sm:$0xff]
      %v1146 = vld [vmem:[#allocation2 + $0x278] sm:$0xff]
      %v1147 = vld [vmem:[#allocation2 + $0x290] sm:$0xff]
      %v1148 = vld [vmem:[#allocation2 + $0x2a8] sm:$0xff]
      %v1149 = vld [vmem:[#allocation2 + $0x2c0] sm:$0xff]
      %v1150 = vld [vmem:[#allocation2 + $0x2d8] sm:$0xff]
      %v1151 = vld [vmem:[#allocation2 + $0x2f0] sm:$0xff]
      %v1152 = vld [vmem:[#allocation2 + $0x308] sm:$0xff]
      %v1153 = vld [vmem:[#allocation2 + $0x320] sm:$0xff]
      %v1154 = vld [vmem:[#allocation2 + $0x338] sm:$0xff]
      %v1155 = vld [vmem:[#allocation2 + $0x350] sm:$0xff]
      %v1156 = vld [vmem:[#allocation2 + $0x368] sm:$0x1]
      %vm1194 = vcmask 1046528
      %v1195 = vrot.slane %v1120, 1
      %v1196 = vrot.slane %v1121, 1
      %v1197 = vsel %vm1194, %v1195, %v1196
      %v1198 = vrot.slane %v1122, 1
      %v1199 = vsel %vm1194, %v1196, %v1198
      %v1200 = vrot.slane %v1123, 1
      %v1201 = vsel %vm1194, %v1198, %v1200
      %v1202 = vrot.slane %v1124, 1
      %v1203 = vsel %vm1194, %v1200, %v1202
      %v1204 = vrot.slane %v1125, 1
      %v1205 = vsel %vm1194, %v1202, %v1204
      %v1206 = vrot.slane %v1126, 1
      %v1207 = vsel %vm1194, %v1204, %v1206
      %v1208 = vrot.slane %v1127, 1
      %v1209 = vsel %vm1194, %v1206, %v1208
      %v1210 = vrot.slane %v1128, 1
      %v1211 = vsel %vm1194, %v1208, %v1210
      %v1212 = vrot.slane %v1129, 1
      %v1213 = vsel %vm1194, %v1210, %v1212
      %v1214 = vrot.slane %v1130, 1
      %v1215 = vsel %vm1194, %v1212, %v1214
      %v1216 = vrot.slane %v1131, 1
      %v1217 = vsel %vm1194, %v1214, %v1216
      %v1218 = vrot.slane %v1132, 1
      %v1219 = vsel %vm1194, %v1216, %v1218
      %v1220 = vrot.slane %v1133, 1
      %v1221 = vsel %vm1194, %v1218, %v1220
      %v1222 = vrot.slane %v1134, 1
      %v1223 = vsel %vm1194, %v1220, %v1222
      %v1224 = vrot.slane %v1135, 1
      %v1225 = vsel %vm1194, %v1222, %v1224
      %v1226 = vrot.slane %v1136, 1
      %v1227 = vsel %vm1194, %v1224, %v1226
      %v1228 = vrot.slane %v1137, 1
      %v1229 = vsel %vm1194, %v1226, %v1228
      %v1230 = vrot.slane %v1138, 1
      %v1231 = vsel %vm1194, %v1228, %v1230
      %v1232 = vrot.slane %v1139, 1
      %v1233 = vsel %vm1194, %v1230, %v1232
      %v1234 = vrot.slane %v1140, 1
      %v1235 = vsel %vm1194, %v1232, %v1234
      %v1236 = vrot.slane %v1141, 1
      %v1237 = vsel %vm1194, %v1234, %v1236
      %v1238 = vrot.slane %v1142, 1
      %v1239 = vsel %vm1194, %v1236, %v1238
      %v1240 = vrot.slane %v1143, 1
      %v1241 = vsel %vm1194, %v1238, %v1240
      %v1242 = vrot.slane %v1144, 1
      %v1243 = vsel %vm1194, %v1240, %v1242
      %v1244 = vrot.slane %v1145, 1
      %v1245 = vsel %vm1194, %v1242, %v1244
      %v1246 = vrot.slane %v1146, 1
      %v1247 = vsel %vm1194, %v1244, %v1246
      %v1248 = vrot.slane %v1147, 1
      %v1249 = vsel %vm1194, %v1246, %v1248
      %v1250 = vrot.slane %v1148, 1
      %v1251 = vsel %vm1194, %v1248, %v1250
      %v1252 = vrot.slane %v1149, 1
      %v1253 = vsel %vm1194, %v1250, %v1252
      %v1254 = vrot.slane %v1150, 1
      %v1255 = vsel %vm1194, %v1252, %v1254
      %v1256 = vrot.slane %v1151, 1
      %v1257 = vsel %vm1194, %v1254, %v1256
      %v1258 = vrot.slane %v1152, 1
      %v1259 = vsel %vm1194, %v1256, %v1258
      %v1260 = vrot.slane %v1153, 1
      %v1261 = vsel %vm1194, %v1258, %v1260
      %v1262 = vrot.slane %v1154, 1
      %v1263 = vsel %vm1194, %v1260, %v1262
      %v1264 = vrot.slane %v1155, 1
      %v1265 = vsel %vm1194, %v1262, %v1264
      %v1266 = vrot.slane %v1156, 1
      %v1267 = vsel %vm1194, %v1264, %v1266
      %v1304 = vadd.f32 %v1084, %v1197
      %v1305 = vadd.f32 %v1085, %v1199
      %v1306 = vadd.f32 %v1086, %v1201
      %v1307 = vadd.f32 %v1087, %v1203
      %v1308 = vadd.f32 %v1088, %v1205
      %v1309 = vadd.f32 %v1089, %v1207
      %v1310 = vadd.f32 %v1090, %v1209
      %v1311 = vadd.f32 %v1091, %v1211
      %v1312 = vadd.f32 %v1092, %v1213
      %v1313 = vadd.f32 %v1093, %v1215
      %v1314 = vadd.f32 %v1094, %v1217
      %v1315 = vadd.f32 %v1095, %v1219
      %v1316 = vadd.f32 %v1096, %v1221
      %v1317 = vadd.f32 %v1097, %v1223
      %v1318 = vadd.f32 %v1098, %v1225
      %v1319 = vadd.f32 %v1099, %v1227
      %v1320 = vadd.f32 %v1100, %v1229
      %v1321 = vadd.f32 %v1101, %v1231
      %v1322 = vadd.f32 %v1102, %v1233
      %v1323 = vadd.f32 %v1103, %v1235
      %v1324 = vadd.f32 %v1104, %v1237
      %v1325 = vadd.f32 %v1105, %v1239
      %v1326 = vadd.f32 %v1106, %v1241
      %v1327 = vadd.f32 %v1107, %v1243
      %v1328 = vadd.f32 %v1108, %v1245
      %v1329 = vadd.f32 %v1109, %v1247
      %v1330 = vadd.f32 %v1110, %v1249
      %v1331 = vadd.f32 %v1111, %v1251
      %v1332 = vadd.f32 %v1112, %v1253
      %v1333 = vadd.f32 %v1113, %v1255
      %v1334 = vadd.f32 %v1114, %v1257
      %v1335 = vadd.f32 %v1115, %v1259
      %v1336 = vadd.f32 %v1116, %v1261
      %v1337 = vadd.f32 %v1117, %v1263
      %v1338 = vadd.f32 %v1118, %v1265
      %v1339 = vadd.f32 %v1119, %v1267
      %1340 = vst [vmem:[#allocation3] sm:$0xff] %v1304
      %1341 = vst [vmem:[#allocation3 + $0x8] sm:$0xff] %v1305
      %1342 = vst [vmem:[#allocation3 + $0x10] sm:$0xff] %v1306
      %1343 = vst [vmem:[#allocation3 + $0x18] sm:$0xff] %v1307
      %1344 = vst [vmem:[#allocation3 + $0x20] sm:$0xff] %v1308
      %1345 = vst [vmem:[#allocation3 + $0x28] sm:$0xff] %v1309
      %1346 = vst [vmem:[#allocation3 + $0x30] sm:$0xff] %v1310
      %1347 = vst [vmem:[#allocation3 + $0x38] sm:$0xff] %v1311
      %1348 = vst [vmem:[#allocation3 + $0x40] sm:$0xff] %v1312
      %1349 = vst [vmem:[#allocation3 + $0x48] sm:$0xff] %v1313
      %1350 = vst [vmem:[#allocation3 + $0x50] sm:$0xff] %v1314
      %1351 = vst [vmem:[#allocation3 + $0x58] sm:$0xff] %v1315
      %1352 = vst [vmem:[#allocation3 + $0x60] sm:$0xff] %v1316
      %1353 = vst [vmem:[#allocation3 + $0x68] sm:$0xff] %v1317
      %1354 = vst [vmem:[#allocation3 + $0x70] sm:$0xff] %v1318
      %1355 = vst [vmem:[#allocation3 + $0x78] sm:$0xff] %v1319
      %1356 = vst [vmem:[#allocation3 + $0x80] sm:$0xff] %v1320
      %1357 = vst [vmem:[#allocation3 + $0x88] sm:$0xff] %v1321
      %1358 = vst [vmem:[#allocation3 + $0x90] sm:$0xff] %v1322
      %1359 = vst [vmem:[#allocation3 + $0x98] sm:$0xff] %v1323
      %1360 = vst [vmem:[#allocation3 + $0xa0] sm:$0xff] %v1324
      %1361 = vst [vmem:[#allocation3 + $0xa8] sm:$0xff] %v1325
      %1362 = vst [vmem:[#allocation3 + $0xb0] sm:$0xff] %v1326
      %1363 = vst [vmem:[#allocation3 + $0xb8] sm:$0xff] %v1327
      %1364 = vst [vmem:[#allocation3 + $0xc0] sm:$0xff] %v1328
      %1365 = vst [vmem:[#allocation3 + $0xc8] sm:$0xff] %v1329
      %1366 = vst [vmem:[#allocation3 + $0xd0] sm:$0xff] %v1330
      %1367 = vst [vmem:[#allocation3 + $0xd8] sm:$0xff] %v1331
      %1368 = vst [vmem:[#allocation3 + $0xe0] sm:$0xff] %v1332
      %1369 = vst [vmem:[#allocation3 + $0xe8] sm:$0xff] %v1333
      %1370 = vst [vmem:[#allocation3 + $0xf0] sm:$0xff] %v1334
      %1371 = vst [vmem:[#allocation3 + $0xf8] sm:$0xff] %v1335
      %1372 = vst [vmem:[#allocation3 + $0x100] sm:$0xff] %v1336
      %1373 = vst [vmem:[#allocation3 + $0x108] sm:$0xff] %v1337
      %1374 = vst [vmem:[#allocation3 + $0x110] sm:$0xff] %v1338
      %1375 = vst [vmem:[#allocation3 + $0x118] sm:$0xff] %v1339
      %v1376 = vld [vmem:[#allocation3] sm:$0xff]
      %v1377 = vld [vmem:[#allocation3 + $0x8] sm:$0xff]
      %v1378 = vld [vmem:[#allocation3 + $0x10] sm:$0xff]
      %v1379 = vld [vmem:[#allocation3 + $0x18] sm:$0xff]
      %v1380 = vld [vmem:[#allocation3 + $0x20] sm:$0xff]
      %v1381 = vld [vmem:[#allocation3 + $0x28] sm:$0xff]
      %v1382 = vld [vmem:[#allocation3 + $0x30] sm:$0xff]
      %v1383 = vld [vmem:[#allocation3 + $0x38] sm:$0xff]
      %v1384 = vld [vmem:[#allocation3 + $0x40] sm:$0xff]
      %v1385 = vld [vmem:[#allocation3 + $0x48] sm:$0xff]
      %v1386 = vld [vmem:[#allocation3 + $0x50] sm:$0xff]
      %v1387 = vld [vmem:[#allocation3 + $0x58] sm:$0xff]
      %v1388 = vld [vmem:[#allocation3 + $0x60] sm:$0xff]
      %v1389 = vld [vmem:[#allocation3 + $0x68] sm:$0xff]
      %v1390 = vld [vmem:[#allocation3 + $0x70] sm:$0xff]
      %v1391 = vld [vmem:[#allocation3 + $0x78] sm:$0xff]
      %v1392 = vld [vmem:[#allocation3 + $0x80] sm:$0xff]
      %v1393 = vld [vmem:[#allocation3 + $0x88] sm:$0xff]
      %v1394 = vld [vmem:[#allocation3 + $0x90] sm:$0xff]
      %v1395 = vld [vmem:[#allocation3 + $0x98] sm:$0xff]
      %v1396 = vld [vmem:[#allocation3 + $0xa0] sm:$0xff]
      %v1397 = vld [vmem:[#allocation3 + $0xa8] sm:$0xff]
      %v1398 = vld [vmem:[#allocation3 + $0xb0] sm:$0xff]
      %v1399 = vld [vmem:[#allocation3 + $0xb8] sm:$0xff]
      %v1400 = vld [vmem:[#allocation3 + $0xc0] sm:$0xff]
      %v1401 = vld [vmem:[#allocation3 + $0xc8] sm:$0xff]
      %v1402 = vld [vmem:[#allocation3 + $0xd0] sm:$0xff]
      %v1403 = vld [vmem:[#allocation3 + $0xd8] sm:$0xff]
      %v1404 = vld [vmem:[#allocation3 + $0xe0] sm:$0xff]
      %v1405 = vld [vmem:[#allocation3 + $0xe8] sm:$0xff]
      %v1406 = vld [vmem:[#allocation3 + $0xf0] sm:$0xff]
      %v1407 = vld [vmem:[#allocation3 + $0xf8] sm:$0xff]
      %v1408 = vld [vmem:[#allocation3 + $0x100] sm:$0xff]
      %v1409 = vld [vmem:[#allocation3 + $0x108] sm:$0xff]
      %v1410 = vld [vmem:[#allocation3 + $0x110] sm:$0xff]
      %v1411 = vld [vmem:[#allocation3 + $0x118] sm:$0xff]
      %v1412 = vld [vmem:[#allocation2 + $0x10] sm:$0xfc]
      %v1413 = vld [vmem:[#allocation2 + $0x28] sm:$0xff]
      %v1414 = vld [vmem:[#allocation2 + $0x40] sm:$0xff]
      %v1415 = vld [vmem:[#allocation2 + $0x58] sm:$0xff]
      %v1416 = vld [vmem:[#allocation2 + $0x70] sm:$0xff]
      %v1417 = vld [vmem:[#allocation2 + $0x88] sm:$0xff]
      %v1418 = vld [vmem:[#allocation2 + $0xa0] sm:$0xff]
      %v1419 = vld [vmem:[#allocation2 + $0xb8] sm:$0xff]
      %v1420 = vld [vmem:[#allocation2 + $0xd0] sm:$0xff]
      %v1421 = vld [vmem:[#allocation2 + $0xe8] sm:$0xff]
      %v1422 = vld [vmem:[#allocation2 + $0x100] sm:$0xff]
      %v1423 = vld [vmem:[#allocation2 + $0x118] sm:$0xff]
      %v1424 = vld [vmem:[#allocation2 + $0x130] sm:$0xff]
      %v1425 = vld [vmem:[#allocation2 + $0x148] sm:$0xff]
      %v1426 = vld [vmem:[#allocation2 + $0x160] sm:$0xff]
      %v1427 = vld [vmem:[#allocation2 + $0x178] sm:$0xff]
      %v1428 = vld [vmem:[#allocation2 + $0x190] sm:$0xff]
      %v1429 = vld [vmem:[#allocation2 + $0x1a8] sm:$0xff]
      %v1430 = vld [vmem:[#allocation2 + $0x1c0] sm:$0xff]
      %v1431 = vld [vmem:[#allocation2 + $0x1d8] sm:$0xff]
      %v1432 = vld [vmem:[#allocation2 + $0x1f0] sm:$0xff]
      %v1433 = vld [vmem:[#allocation2 + $0x208] sm:$0xff]
      %v1434 = vld [vmem:[#allocation2 + $0x220] sm:$0xff]
      %v1435 = vld [vmem:[#allocation2 + $0x238] sm:$0xff]
      %v1436 = vld [vmem:[#allocation2 + $0x250] sm:$0xff]
      %v1437 = vld [vmem:[#allocation2 + $0x268] sm:$0xff]
      %v1438 = vld [vmem:[#allocation2 + $0x280] sm:$0xff]
      %v1439 = vld [vmem:[#allocation2 + $0x298] sm:$0xff]
      %v1440 = vld [vmem:[#allocation2 + $0x2b0] sm:$0xff]
      %v1441 = vld [vmem:[#allocation2 + $0x2c8] sm:$0xff]
      %v1442 = vld [vmem:[#allocation2 + $0x2e0] sm:$0xff]
      %v1443 = vld [vmem:[#allocation2 + $0x2f8] sm:$0xff]
      %v1444 = vld [vmem:[#allocation2 + $0x310] sm:$0xff]
      %v1445 = vld [vmem:[#allocation2 + $0x328] sm:$0xff]
      %v1446 = vld [vmem:[#allocation2 + $0x340] sm:$0xff]
      %v1447 = vld [vmem:[#allocation2 + $0x358] sm:$0xff]
      %v1448 = vld [vmem:[#allocation2 + $0x370] sm:$0x3]
      %vm1486 = vcmask 1045504
      %v1487 = vrot.slane %v1412, 2
      %v1488 = vrot.slane %v1413, 2
      %v1489 = vsel %vm1486, %v1487, %v1488
      %v1490 = vrot.slane %v1414, 2
      %v1491 = vsel %vm1486, %v1488, %v1490
      %v1492 = vrot.slane %v1415, 2
      %v1493 = vsel %vm1486, %v1490, %v1492
      %v1494 = vrot.slane %v1416, 2
      %v1495 = vsel %vm1486, %v1492, %v1494
      %v1496 = vrot.slane %v1417, 2
      %v1497 = vsel %vm1486, %v1494, %v1496
      %v1498 = vrot.slane %v1418, 2
      %v1499 = vsel %vm1486, %v1496, %v1498
      %v1500 = vrot.slane %v1419, 2
      %v1501 = vsel %vm1486, %v1498, %v1500
      %v1502 = vrot.slane %v1420, 2
      %v1503 = vsel %vm1486, %v1500, %v1502
      %v1504 = vrot.slane %v1421, 2
      %v1505 = vsel %vm1486, %v1502, %v1504
      %v1506 = vrot.slane %v1422, 2
      %v1507 = vsel %vm1486, %v1504, %v1506
      %v1508 = vrot.slane %v1423, 2
      %v1509 = vsel %vm1486, %v1506, %v1508
      %v1510 = vrot.slane %v1424, 2
      %v1511 = vsel %vm1486, %v1508, %v1510
      %v1512 = vrot.slane %v1425, 2
      %v1513 = vsel %vm1486, %v1510, %v1512
      %v1514 = vrot.slane %v1426, 2
      %v1515 = vsel %vm1486, %v1512, %v1514
      %v1516 = vrot.slane %v1427, 2
      %v1517 = vsel %vm1486, %v1514, %v1516
      %v1518 = vrot.slane %v1428, 2
      %v1519 = vsel %vm1486, %v1516, %v1518
      %v1520 = vrot.slane %v1429, 2
      %v1521 = vsel %vm1486, %v1518, %v1520
      %v1522 = vrot.slane %v1430, 2
      %v1523 = vsel %vm1486, %v1520, %v1522
      %v1524 = vrot.slane %v1431, 2
      %v1525 = vsel %vm1486, %v1522, %v1524
      %v1526 = vrot.slane %v1432, 2
      %v1527 = vsel %vm1486, %v1524, %v1526
      %v1528 = vrot.slane %v1433, 2
      %v1529 = vsel %vm1486, %v1526, %v1528
      %v1530 = vrot.slane %v1434, 2
      %v1531 = vsel %vm1486, %v1528, %v1530
      %v1532 = vrot.slane %v1435, 2
      %v1533 = vsel %vm1486, %v1530, %v1532
      %v1534 = vrot.slane %v1436, 2
      %v1535 = vsel %vm1486, %v1532, %v1534
      %v1536 = vrot.slane %v1437, 2
      %v1537 = vsel %vm1486, %v1534, %v1536
      %v1538 = vrot.slane %v1438, 2
      %v1539 = vsel %vm1486, %v1536, %v1538
      %v1540 = vrot.slane %v1439, 2
      %v1541 = vsel %vm1486, %v1538, %v1540
      %v1542 = vrot.slane %v1440, 2
      %v1543 = vsel %vm1486, %v1540, %v1542
      %v1544 = vrot.slane %v1441, 2
      %v1545 = vsel %vm1486, %v1542, %v1544
      %v1546 = vrot.slane %v1442, 2
      %v1547 = vsel %vm1486, %v1544, %v1546
      %v1548 = vrot.slane %v1443, 2
      %v1549 = vsel %vm1486, %v1546, %v1548
      %v1550 = vrot.slane %v1444, 2
      %v1551 = vsel %vm1486, %v1548, %v1550
      %v1552 = vrot.slane %v1445, 2
      %v1553 = vsel %vm1486, %v1550, %v1552
      %v1554 = vrot.slane %v1446, 2
      %v1555 = vsel %vm1486, %v1552, %v1554
      %v1556 = vrot.slane %v1447, 2
      %v1557 = vsel %vm1486, %v1554, %v1556
      %v1558 = vrot.slane %v1448, 2
      %v1559 = vsel %vm1486, %v1556, %v1558
      %v1596 = vadd.f32 %v1376, %v1489
      %v1597 = vadd.f32 %v1377, %v1491
      %v1598 = vadd.f32 %v1378, %v1493
      %v1599 = vadd.f32 %v1379, %v1495
      %v1600 = vadd.f32 %v1380, %v1497
      %v1601 = vadd.f32 %v1381, %v1499
      %v1602 = vadd.f32 %v1382, %v1501
      %v1603 = vadd.f32 %v1383, %v1503
      %v1604 = vadd.f32 %v1384, %v1505
      %v1605 = vadd.f32 %v1385, %v1507
      %v1606 = vadd.f32 %v1386, %v1509
      %v1607 = vadd.f32 %v1387, %v1511
      %v1608 = vadd.f32 %v1388, %v1513
      %v1609 = vadd.f32 %v1389, %v1515
      %v1610 = vadd.f32 %v1390, %v1517
      %v1611 = vadd.f32 %v1391, %v1519
      %v1612 = vadd.f32 %v1392, %v1521
      %v1613 = vadd.f32 %v1393, %v1523
      %v1614 = vadd.f32 %v1394, %v1525
      %v1615 = vadd.f32 %v1395, %v1527
      %v1616 = vadd.f32 %v1396, %v1529
      %v1617 = vadd.f32 %v1397, %v1531
      %v1618 = vadd.f32 %v1398, %v1533
      %v1619 = vadd.f32 %v1399, %v1535
      %v1620 = vadd.f32 %v1400, %v1537
      %v1621 = vadd.f32 %v1401, %v1539
      %v1622 = vadd.f32 %v1402, %v1541
      %v1623 = vadd.f32 %v1403, %v1543
      %v1624 = vadd.f32 %v1404, %v1545
      %v1625 = vadd.f32 %v1405, %v1547
      %v1626 = vadd.f32 %v1406, %v1549
      %v1627 = vadd.f32 %v1407, %v1551
      %v1628 = vadd.f32 %v1408, %v1553
      %v1629 = vadd.f32 %v1409, %v1555
      %v1630 = vadd.f32 %v1410, %v1557
      %v1631 = vadd.f32 %v1411, %v1559
      %1632 = vst [vmem:[#allocation3] sm:$0xff] %v1596
      %1633 = vst [vmem:[#allocation3 + $0x8] sm:$0xff] %v1597
      %1634 = vst [vmem:[#allocation3 + $0x10] sm:$0xff] %v1598
      %1635 = vst [vmem:[#allocation3 + $0x18] sm:$0xff] %v1599
      %1636 = vst [vmem:[#allocation3 + $0x20] sm:$0xff] %v1600
      %1637 = vst [vmem:[#allocation3 + $0x28] sm:$0xff] %v1601
      %1638 = vst [vmem:[#allocation3 + $0x30] sm:$0xff] %v1602
      %1639 = vst [vmem:[#allocation3 + $0x38] sm:$0xff] %v1603
      %1640 = vst [vmem:[#allocation3 + $0x40] sm:$0xff] %v1604
      %1641 = vst [vmem:[#allocation3 + $0x48] sm:$0xff] %v1605
      %1642 = vst [vmem:[#allocation3 + $0x50] sm:$0xff] %v1606
      %1643 = vst [vmem:[#allocation3 + $0x58] sm:$0xff] %v1607
      %1644 = vst [vmem:[#allocation3 + $0x60] sm:$0xff] %v1608
      %1645 = vst [vmem:[#allocation3 + $0x68] sm:$0xff] %v1609
      %1646 = vst [vmem:[#allocation3 + $0x70] sm:$0xff] %v1610
      %1647 = vst [vmem:[#allocation3 + $0x78] sm:$0xff] %v1611
      %1648 = vst [vmem:[#allocation3 + $0x80] sm:$0xff] %v1612
      %1649 = vst [vmem:[#allocation3 + $0x88] sm:$0xff] %v1613
      %1650 = vst [vmem:[#allocation3 + $0x90] sm:$0xff] %v1614
      %1651 = vst [vmem:[#allocation3 + $0x98] sm:$0xff] %v1615
      %1652 = vst [vmem:[#allocation3 + $0xa0] sm:$0xff] %v1616
      %1653 = vst [vmem:[#allocation3 + $0xa8] sm:$0xff] %v1617
      %1654 = vst [vmem:[#allocation3 + $0xb0] sm:$0xff] %v1618
      %1655 = vst [vmem:[#allocation3 + $0xb8] sm:$0xff] %v1619
      %1656 = vst [vmem:[#allocation3 + $0xc0] sm:$0xff] %v1620
      %1657 = vst [vmem:[#allocation3 + $0xc8] sm:$0xff] %v1621
      %1658 = vst [vmem:[#allocation3 + $0xd0] sm:$0xff] %v1622
      %1659 = vst [vmem:[#allocation3 + $0xd8] sm:$0xff] %v1623
      %1660 = vst [vmem:[#allocation3 + $0xe0] sm:$0xff] %v1624
      %1661 = vst [vmem:[#allocation3 + $0xe8] sm:$0xff] %v1625
      %1662 = vst [vmem:[#allocation3 + $0xf0] sm:$0xff] %v1626
      %1663 = vst [vmem:[#allocation3 + $0xf8] sm:$0xff] %v1627
      %1664 = vst [vmem:[#allocation3 + $0x100] sm:$0xff] %v1628
      %1665 = vst [vmem:[#allocation3 + $0x108] sm:$0xff] %v1629
      %1666 = vst [vmem:[#allocation3 + $0x110] sm:$0xff] %v1630
      %1667 = vst [vmem:[#allocation3 + $0x118] sm:$0xff] %v1631
      %v1668 = vld [vmem:[%s165 + $0x8] sm:$0xe]
      %v1669 = vld [vmem:[%s165 + $0xc] sm:$0xf]
      %v1670 = vld [vmem:[%s165 + $0x10] sm:$0xf]
      %v1671 = vld [vmem:[%s165 + $0x14] sm:$0xf]
      %v1672 = vld [vmem:[%s165 + $0x18] sm:$0xf]
      %v1673 = vld [vmem:[%s165 + $0x1c] sm:$0xf]
      %v1674 = vld [vmem:[%s165 + $0x20] sm:$0xf]
      %v1675 = vld [vmem:[%s165 + $0x24] sm:$0xf]
      %v1676 = vld [vmem:[%s165 + $0x28] sm:$0xf]
      %v1677 = vld [vmem:[%s165 + $0x2c] sm:$0xf]
      %v1678 = vld [vmem:[%s165 + $0x30] sm:$0xf]
      %v1679 = vld [vmem:[%s165 + $0x34] sm:$0xf]
      %v1680 = vld [vmem:[%s165 + $0x38] sm:$0xf]
      %v1681 = vld [vmem:[%s165 + $0x3c] sm:$0xf]
      %v1682 = vld [vmem:[%s165 + $0x40] sm:$0xf]
      %v1683 = vld [vmem:[%s165 + $0x44] sm:$0xf]
      %v1684 = vld [vmem:[%s165 + $0x48] sm:$0xf]
      %v1685 = vld [vmem:[%s165 + $0x4c] sm:$0xf]
      %v1686 = vld [vmem:[%s165 + $0x50] sm:$0xf]
      %v1687 = vld [vmem:[%s165 + $0x54] sm:$0xf]
      %v1688 = vld [vmem:[%s165 + $0x58] sm:$0xf]
      %v1689 = vld [vmem:[%s165 + $0x5c] sm:$0xf]
      %v1690 = vld [vmem:[%s165 + $0x60] sm:$0xf]
      %v1691 = vld [vmem:[%s165 + $0x64] sm:$0xf]
      %v1692 = vld [vmem:[%s165 + $0x68] sm:$0xf]
      %v1693 = vld [vmem:[%s165 + $0x6c] sm:$0xf]
      %v1694 = vld [vmem:[%s165 + $0x70] sm:$0xf]
      %v1695 = vld [vmem:[%s165 + $0x74] sm:$0xf]
      %v1696 = vld [vmem:[%s165 + $0x78] sm:$0xf]
      %v1697 = vld [vmem:[%s165 + $0x7c] sm:$0xf]
      %v1698 = vld [vmem:[%s165 + $0x80] sm:$0xf]
      %v1699 = vld [vmem:[%s165 + $0x84] sm:$0xf]
      %v1700 = vld [vmem:[%s165 + $0x88] sm:$0xf]
      %v1701 = vld [vmem:[%s165 + $0x8c] sm:$0xf]
      %v1702 = vld [vmem:[%s165 + $0x90] sm:$0xf]
      %v1703 = vld [vmem:[%s165 + $0x94] sm:$0xf]
      %v1704 = vld [vmem:[%s165 + $0x98] sm:$0x3]
      %s1705 = scalar_lea.vmem %s1, 6
      %v1706 = vld [vmem:[%s1705] sm:$0x3f]
      %v1744 = vunpack.c.l.b16 %v1668
      %v1745 = vunpack.c.l.b16 %v1669
      %v1746 = vunpack.c.l.b16 %v1670
      %v1747 = vunpack.c.l.b16 %v1671
      %v1748 = vunpack.c.l.b16 %v1672
      %v1749 = vunpack.c.l.b16 %v1673
      %v1750 = vunpack.c.l.b16 %v1674
      %v1751 = vunpack.c.l.b16 %v1675
      %v1752 = vunpack.c.l.b16 %v1676
      %v1753 = vunpack.c.l.b16 %v1677
      %v1754 = vunpack.c.l.b16 %v1678
      %v1755 = vunpack.c.l.b16 %v1679
      %v1756 = vunpack.c.l.b16 %v1680
      %v1757 = vunpack.c.l.b16 %v1681
      %v1758 = vunpack.c.l.b16 %v1682
      %v1759 = vunpack.c.l.b16 %v1683
      %v1760 = vunpack.c.l.b16 %v1684
      %v1761 = vunpack.c.l.b16 %v1685
      %v1762 = vunpack.c.l.b16 %v1686
      %v1763 = vunpack.c.l.b16 %v1687
      %v1764 = vunpack.c.l.b16 %v1688
      %v1765 = vunpack.c.l.b16 %v1689
      %v1766 = vunpack.c.l.b16 %v1690
      %v1767 = vunpack.c.l.b16 %v1691
      %v1768 = vunpack.c.l.b16 %v1692
      %v1769 = vunpack.c.l.b16 %v1693
      %v1770 = vunpack.c.l.b16 %v1694
      %v1771 = vunpack.c.l.b16 %v1695
      %v1772 = vunpack.c.l.b16 %v1696
      %v1773 = vunpack.c.l.b16 %v1697
      %v1774 = vunpack.c.l.b16 %v1698
      %v1775 = vunpack.c.l.b16 %v1699
      %v1776 = vunpack.c.l.b16 %v1700
      %v1777 = vunpack.c.l.b16 %v1701
      %v1778 = vunpack.c.l.b16 %v1702
      %v1779 = vunpack.c.l.b16 %v1703
      %v1780 = vunpack.c.l.b16 %v1704
      %v1781 = vpack.c.b16 %v1745, %v1744
      %v1782 = vpack.c.b16 %v1747, %v1746
      %v1783 = vpack.c.b16 %v1749, %v1748
      %v1784 = vpack.c.b16 %v1751, %v1750
      %v1785 = vpack.c.b16 %v1753, %v1752
      %v1786 = vpack.c.b16 %v1755, %v1754
      %v1787 = vpack.c.b16 %v1757, %v1756
      %v1788 = vpack.c.b16 %v1759, %v1758
      %v1789 = vpack.c.b16 %v1761, %v1760
      %v1790 = vpack.c.b16 %v1763, %v1762
      %v1791 = vpack.c.b16 %v1765, %v1764
      %v1792 = vpack.c.b16 %v1767, %v1766
      %v1793 = vpack.c.b16 %v1769, %v1768
      %v1794 = vpack.c.b16 %v1771, %v1770
      %v1795 = vpack.c.b16 %v1773, %v1772
      %v1796 = vpack.c.b16 %v1775, %v1774
      %v1797 = vpack.c.b16 %v1777, %v1776
      %v1798 = vpack.c.b16 %v1779, %v1778
      %v1799 = vpack.c.b16 %v1780, %v1780
      %vm1800 = vcmask 1046528
      %v1801 = vrot.slane %v1781, 1
      %v1802 = vrot.slane %v1782, 1
      %v1803 = vsel %vm1800, %v1801, %v1802
      %v1804 = vrot.slane %v1783, 1
      %v1805 = vsel %vm1800, %v1802, %v1804
      %v1806 = vrot.slane %v1784, 1
      %v1807 = vsel %vm1800, %v1804, %v1806
      %v1808 = vrot.slane %v1785, 1
      %v1809 = vsel %vm1800, %v1806, %v1808
      %v1810 = vrot.slane %v1786, 1
      %v1811 = vsel %vm1800, %v1808, %v1810
      %v1812 = vrot.slane %v1787, 1
      %v1813 = vsel %vm1800, %v1810, %v1812
      %v1814 = vrot.slane %v1788, 1
      %v1815 = vsel %vm1800, %v1812, %v1814
      %v1816 = vrot.slane %v1789, 1
      %v1817 = vsel %vm1800, %v1814, %v1816
      %v1818 = vrot.slane %v1790, 1
      %v1819 = vsel %vm1800, %v1816, %v1818
      %v1820 = vrot.slane %v1791, 1
      %v1821 = vsel %vm1800, %v1818, %v1820
      %v1822 = vrot.slane %v1792, 1
      %v1823 = vsel %vm1800, %v1820, %v1822
      %v1824 = vrot.slane %v1793, 1
      %v1825 = vsel %vm1800, %v1822, %v1824
      %v1826 = vrot.slane %v1794, 1
      %v1827 = vsel %vm1800, %v1824, %v1826
      %v1828 = vrot.slane %v1795, 1
      %v1829 = vsel %vm1800, %v1826, %v1828
      %v1830 = vrot.slane %v1796, 1
      %v1831 = vsel %vm1800, %v1828, %v1830
      %v1832 = vrot.slane %v1797, 1
      %v1833 = vsel %vm1800, %v1830, %v1832
      %v1834 = vrot.slane %v1798, 1
      %v1835 = vsel %vm1800, %v1832, %v1834
      %v1836 = vrot.slane %v1799, 1
      %v1837 = vsel %vm1800, %v1834, %v1836
      %v1839 = vcombine.high %v1706, %v1706
      %v1841 = vunpack.c.l.s4 1983009808
      %v1842 = vunpack.c.0.s8 %v1841
      %v1843 = vlaneseq
      %v1844 = vshrl.u32 %v1843, 7
      %v1845 = vsub.s32 %v1842, %v1844
      %v1846 = vrot.slane %v1706, %v1845
      %v1848 = vunpack.c.l.s4 1983009808
      %v1849 = vunpack.c.0.s8 %v1848
      %v1850 = vlaneseq
      %v1851 = vshrl.u32 %v1850, 7
      %v1852 = vsub.s32 %v1849, %v1851
      %v1853 = vrot.slane %v1839, %v1852
      %v1854 = vcombine.high %v1846, %v1846
      %v1856 = vsel %vm356, %v1803, 0
      %v1859 = vsel %vm356, %v1805, 0
      %v1862 = vsel %vm356, %v1807, 0
      %v1865 = vsel %vm356, %v1809, 0
      %v1868 = vsel %vm356, %v1811, 0
      %v1871 = vsel %vm356, %v1813, 0
      %v1874 = vsel %vm356, %v1815, 0
      %v1877 = vsel %vm356, %v1817, 0
      %v1880 = vsel %vm356, %v1819, 0
      %v1883 = vsel %vm356, %v1821, 0
      %v1886 = vsel %vm356, %v1823, 0
      %v1889 = vsel %vm356, %v1825, 0
      %v1892 = vsel %vm356, %v1827, 0
      %v1895 = vsel %vm356, %v1829, 0
      %v1898 = vsel %vm356, %v1831, 0
      %v1901 = vsel %vm356, %v1833, 0
      %v1904 = vsel %vm356, %v1835, 0
      %v1907 = vsel %vm356, %v1837, 0
      %v1910 = vsel %vm356, %v1836, 0
      %v1913 = vsel %vm414, %v1846, 0
      %v1916 = vsel %vm414, %v1854, 0
      %v1919 = vsel %vm414, %v1853, 0
      %1921 = vmatprep.subr.bf16.mxu0 %v1916
      %1922 = vmatpush1.bf16.msra.mxu0 %v1913
      %1923 = vmatprep.subr.bf16.mxu0 0
      %1924 = vmatpush1.bf16.msra.mxu0 0
      %1925 = vmatprep.subr.bf16.mxu0 0
      %1926 = vmatpush1.bf16.msra.mxu0 0
      %1927 = vmatprep.subr.bf16.mxu0 0
      %1928 = vmatpush1.bf16.msra.mxu0 0
      %1929 = vmatprep.subr.bf16.mxu0 0
      %1930 = vmatpush1.bf16.msra.mxu0 0
      %1931 = vmatprep.subr.bf16.mxu0 0
      %1932 = vmatpush1.bf16.msra.mxu0 0
      %1933 = vmatprep.subr.bf16.mxu0 0
      %1934 = vmatpush1.bf16.msra.mxu0 0
      %1935 = vmatprep.subr.bf16.mxu0 0
      %1936 = vmatpush1.bf16.msra.mxu0 0
      %1937 = vmatprep.subr.bf16.mxu0 0
      %1938 = vmatpush1.bf16.msra.mxu0 0
      %1939 = vmatprep.subr.bf16.mxu0 0
      %1940 = vmatpush1.bf16.msra.mxu0 0
      %1941 = vmatprep.subr.bf16.mxu0 0
      %1942 = vmatpush1.bf16.msra.mxu0 0
      %1943 = vmatprep.subr.bf16.mxu0 0
      %1944 = vmatpush1.bf16.msra.mxu0 0
      %1945 = vmatprep.subr.bf16.mxu0 0
      %1946 = vmatpush1.bf16.msra.mxu0 0
      %1947 = vmatprep.subr.bf16.mxu0 0
      %1948 = vmatpush1.bf16.msra.mxu0 0
      %1949 = vmatprep.subr.bf16.mxu0 0
      %1950 = vmatpush1.bf16.msra.mxu0 0
      %1951 = vmatprep.subr.bf16.mxu0 0
      %1952 = vmatpush1.bf16.msra.mxu0 0
      %1953 = vmatprep.mubr.bf16.mxu0 0
      %1954 = vmatmul.mubr.bf16.gmra.mrb[0].mxu0 %v1856
      %v1955 = vpop.f32.mrb[0].mxu0
      %v1956 = vadd.f32 0.0, %v1955
      %v1957 = vpop.f32.mrb[0].mxu0
      %v1958 = vadd.f32 0.0, %v1957
      %v1959 = vpop.f32.mrb[0].mxu0
      %v1960 = vadd.f32 0.0, %v1959
      %v1961 = vpop.f32.mrb[0].mxu0
      %v1962 = vadd.f32 0.0, %v1961
      %1963 = vmatprep.mubr.bf16.mxu0 0
      %1964 = vmatmul.mubr.bf16.gmra.mrb[0].mxu0 %v1859
      %v1965 = vpop.f32.mrb[0].mxu0
      %v1966 = vadd.f32 0.0, %v1965
      %v1967 = vpop.f32.mrb[0].mxu0
      %v1968 = vadd.f32 0.0, %v1967
      %v1969 = vpop.f32.mrb[0].mxu0
      %v1970 = vadd.f32 0.0, %v1969
      %v1971 = vpop.f32.mrb[0].mxu0
      %v1972 = vadd.f32 0.0, %v1971
      %1973 = vmatprep.mubr.bf16.mxu0 0
      %1974 = vmatmul.mubr.bf16.gmra.mrb[0].mxu0 %v1862
      %v1975 = vpop.f32.mrb[0].mxu0
      %v1976 = vadd.f32 0.0, %v1975
      %v1977 = vpop.f32.mrb[0].mxu0
      %v1978 = vadd.f32 0.0, %v1977
      %v1979 = vpop.f32.mrb[0].mxu0
      %v1980 = vadd.f32 0.0, %v1979
      %v1981 = vpop.f32.mrb[0].mxu0
      %v1982 = vadd.f32 0.0, %v1981
      %1983 = vmatprep.mubr.bf16.mxu0 0
      %1984 = vmatmul.mubr.bf16.gmra.mrb[0].mxu0 %v1865
      %v1985 = vpop.f32.mrb[0].mxu0
      %v1986 = vadd.f32 0.0, %v1985
      %v1987 = vpop.f32.mrb[0].mxu0
      %v1988 = vadd.f32 0.0, %v1987
      %v1989 = vpop.f32.mrb[0].mxu0
      %v1990 = vadd.f32 0.0, %v1989
      %v1991 = vpop.f32.mrb[0].mxu0
      %v1992 = vadd.f32 0.0, %v1991
      %1993 = vmatprep.mubr.bf16.mxu0 0
      %1994 = vmatmul.mubr.bf16.gmra.mrb[0].mxu0 %v1868
      %v1995 = vpop.f32.mrb[0].mxu0
      %v1996 = vadd.f32 0.0, %v1995
      %v1997 = vpop.f32.mrb[0].mxu0
      %v1998 = vadd.f32 0.0, %v1997
      %v1999 = vpop.f32.mrb[0].mxu0
      %v2000 = vadd.f32 0.0, %v1999
      %v2001 = vpop.f32.mrb[0].mxu0
      %v2002 = vadd.f32 0.0, %v2001
      %2003 = vmatprep.mubr.bf16.mxu0 0
      %2004 = vmatmul.mubr.bf16.gmra.mrb[0].mxu0 %v1871
      %v2005 = vpop.f32.mrb[0].mxu0
      %v2006 = vadd.f32 0.0, %v2005
      %v2007 = vpop.f32.mrb[0].mxu0
      %v2008 = vadd.f32 0.0, %v2007
      %v2009 = vpop.f32.mrb[0].mxu0
      %v2010 = vadd.f32 0.0, %v2009
      %v2011 = vpop.f32.mrb[0].mxu0
      %v2012 = vadd.f32 0.0, %v2011
      %2013 = vmatprep.mubr.bf16.mxu0 0
      %2014 = vmatmul.mubr.bf16.gmra.mrb[0].mxu0 %v1874
      %v2015 = vpop.f32.mrb[0].mxu0
      %v2016 = vadd.f32 0.0, %v2015
      %v2017 = vpop.f32.mrb[0].mxu0
      %v2018 = vadd.f32 0.0, %v2017
      %v2019 = vpop.f32.mrb[0].mxu0
      %v2020 = vadd.f32 0.0, %v2019
      %v2021 = vpop.f32.mrb[0].mxu0
      %v2022 = vadd.f32 0.0, %v2021
      %2023 = vmatprep.mubr.bf16.mxu0 0
      %2024 = vmatmul.mubr.bf16.gmra.mrb[0].mxu0 %v1877
      %v2025 = vpop.f32.mrb[0].mxu0
      %v2026 = vadd.f32 0.0, %v2025
      %v2027 = vpop.f32.mrb[0].mxu0
      %v2028 = vadd.f32 0.0, %v2027
      %v2029 = vpop.f32.mrb[0].mxu0
      %v2030 = vadd.f32 0.0, %v2029
      %v2031 = vpop.f32.mrb[0].mxu0
      %v2032 = vadd.f32 0.0, %v2031
      %2033 = vmatprep.mubr.bf16.mxu0 0
      %2034 = vmatmul.mubr.bf16.gmra.mrb[0].mxu0 %v1880
      %v2035 = vpop.f32.mrb[0].mxu0
      %v2036 = vadd.f32 0.0, %v2035
      %v2037 = vpop.f32.mrb[0].mxu0
      %v2038 = vadd.f32 0.0, %v2037
      %v2039 = vpop.f32.mrb[0].mxu0
      %v2040 = vadd.f32 0.0, %v2039
      %v2041 = vpop.f32.mrb[0].mxu0
      %v2042 = vadd.f32 0.0, %v2041
      %2043 = vmatprep.mubr.bf16.mxu0 0
      %2044 = vmatmul.mubr.bf16.gmra.mrb[0].mxu0 %v1883
      %v2045 = vpop.f32.mrb[0].mxu0
      %v2046 = vadd.f32 0.0, %v2045
      %v2047 = vpop.f32.mrb[0].mxu0
      %v2048 = vadd.f32 0.0, %v2047
      %v2049 = vpop.f32.mrb[0].mxu0
      %v2050 = vadd.f32 0.0, %v2049
      %v2051 = vpop.f32.mrb[0].mxu0
      %v2052 = vadd.f32 0.0, %v2051
      %2053 = vmatprep.mubr.bf16.mxu0 0
      %2054 = vmatmul.mubr.bf16.gmra.mrb[0].mxu0 %v1886
      %v2055 = vpop.f32.mrb[0].mxu0
      %v2056 = vadd.f32 0.0, %v2055
      %v2057 = vpop.f32.mrb[0].mxu0
      %v2058 = vadd.f32 0.0, %v2057
      %v2059 = vpop.f32.mrb[0].mxu0
      %v2060 = vadd.f32 0.0, %v2059
      %v2061 = vpop.f32.mrb[0].mxu0
      %v2062 = vadd.f32 0.0, %v2061
      %2063 = vmatprep.mubr.bf16.mxu0 0
      %2064 = vmatmul.mubr.bf16.gmra.mrb[0].mxu0 %v1889
      %v2065 = vpop.f32.mrb[0].mxu0
      %v2066 = vadd.f32 0.0, %v2065
      %v2067 = vpop.f32.mrb[0].mxu0
      %v2068 = vadd.f32 0.0, %v2067
      %v2069 = vpop.f32.mrb[0].mxu0
      %v2070 = vadd.f32 0.0, %v2069
      %v2071 = vpop.f32.mrb[0].mxu0
      %v2072 = vadd.f32 0.0, %v2071
      %2073 = vmatprep.mubr.bf16.mxu0 0
      %2074 = vmatmul.mubr.bf16.gmra.mrb[0].mxu0 %v1892
      %v2075 = vpop.f32.mrb[0].mxu0
      %v2076 = vadd.f32 0.0, %v2075
      %v2077 = vpop.f32.mrb[0].mxu0
      %v2078 = vadd.f32 0.0, %v2077
      %v2079 = vpop.f32.mrb[0].mxu0
      %v2080 = vadd.f32 0.0, %v2079
      %v2081 = vpop.f32.mrb[0].mxu0
      %v2082 = vadd.f32 0.0, %v2081
      %2083 = vmatprep.mubr.bf16.mxu0 0
      %2084 = vmatmul.mubr.bf16.gmra.mrb[0].mxu0 %v1895
      %v2085 = vpop.f32.mrb[0].mxu0
      %v2086 = vadd.f32 0.0, %v2085
      %v2087 = vpop.f32.mrb[0].mxu0
      %v2088 = vadd.f32 0.0, %v2087
      %v2089 = vpop.f32.mrb[0].mxu0
      %v2090 = vadd.f32 0.0, %v2089
      %v2091 = vpop.f32.mrb[0].mxu0
      %v2092 = vadd.f32 0.0, %v2091
      %2093 = vmatprep.mubr.bf16.mxu0 0
      %2094 = vmatmul.mubr.bf16.gmra.mrb[0].mxu0 %v1898
      %v2095 = vpop.f32.mrb[0].mxu0
      %v2096 = vadd.f32 0.0, %v2095
      %v2097 = vpop.f32.mrb[0].mxu0
      %v2098 = vadd.f32 0.0, %v2097
      %v2099 = vpop.f32.mrb[0].mxu0
      %v2100 = vadd.f32 0.0, %v2099
      %v2101 = vpop.f32.mrb[0].mxu0
      %v2102 = vadd.f32 0.0, %v2101
      %2103 = vmatprep.mubr.bf16.mxu0 0
      %2104 = vmatmul.mubr.bf16.gmra.mrb[0].mxu0 %v1901
      %v2105 = vpop.f32.mrb[0].mxu0
      %v2106 = vadd.f32 0.0, %v2105
      %v2107 = vpop.f32.mrb[0].mxu0
      %v2108 = vadd.f32 0.0, %v2107
      %v2109 = vpop.f32.mrb[0].mxu0
      %v2110 = vadd.f32 0.0, %v2109
      %v2111 = vpop.f32.mrb[0].mxu0
      %v2112 = vadd.f32 0.0, %v2111
      %2113 = vmatprep.mubr.bf16.mxu0 0
      %2114 = vmatmul.mubr.bf16.gmra.mrb[0].mxu0 %v1904
      %v2115 = vpop.f32.mrb[0].mxu0
      %v2116 = vadd.f32 0.0, %v2115
      %v2117 = vpop.f32.mrb[0].mxu0
      %v2118 = vadd.f32 0.0, %v2117
      %v2119 = vpop.f32.mrb[0].mxu0
      %v2120 = vadd.f32 0.0, %v2119
      %v2121 = vpop.f32.mrb[0].mxu0
      %v2122 = vadd.f32 0.0, %v2121
      %2123 = vmatprep.mubr.bf16.mxu0 0
      %2124 = vmatmul.mubr.bf16.gmra.mrb[0].mxu0 %v1907
      %v2125 = vpop.f32.mrb[0].mxu0
      %v2126 = vadd.f32 0.0, %v2125
      %v2127 = vpop.f32.mrb[0].mxu0
      %v2128 = vadd.f32 0.0, %v2127
      %v2129 = vpop.f32.mrb[0].mxu0
      %v2130 = vadd.f32 0.0, %v2129
      %v2131 = vpop.f32.mrb[0].mxu0
      %v2132 = vadd.f32 0.0, %v2131
      %2133 = vmatprep.mubr.bf16.mxu0 0
      %2134 = vmatmul.mubr.bf16.gmra.mrb[0].mxu0 %v1910
      %v2135 = vpop.f32.mrb[0].mxu0
      %v2136 = vadd.f32 0.0, %v2135
      %v2137 = vpop.f32.mrb[0].mxu0
      %v2138 = vadd.f32 0.0, %v2137
      %v2139 = vpop.f32.mrb[0].mxu0
      %v2140 = vpop.f32.mrb[0].mxu0
      %2141 = vdwg.mxu0
      %2142 = vmatprep.subr.bf16.mxu0 0
      %2143 = vmatpush1.bf16.msra.mxu0 %v1919
      %2144 = vmatprep.subr.bf16.mxu0 0
      %2145 = vmatpush1.bf16.msra.mxu0 0
      %2146 = vmatprep.subr.bf16.mxu0 0
      %2147 = vmatpush1.bf16.msra.mxu0 0
      %2148 = vmatprep.subr.bf16.mxu0 0
      %2149 = vmatpush1.bf16.msra.mxu0 0
      %2150 = vmatprep.subr.bf16.mxu0 0
      %2151 = vmatpush1.bf16.msra.mxu0 0
      %2152 = vmatprep.subr.bf16.mxu0 0
      %2153 = vmatpush1.bf16.msra.mxu0 0
      %2154 = vmatprep.subr.bf16.mxu0 0
      %2155 = vmatpush1.bf16.msra.mxu0 0
      %2156 = vmatprep.subr.bf16.mxu0 0
      %2157 = vmatpush1.bf16.msra.mxu0 0
      %2158 = vmatprep.subr.bf16.mxu0 0
      %2159 = vmatpush1.bf16.msra.mxu0 0
      %2160 = vmatprep.subr.bf16.mxu0 0
      %2161 = vmatpush1.bf16.msra.mxu0 0
      %2162 = vmatprep.subr.bf16.mxu0 0
      %2163 = vmatpush1.bf16.msra.mxu0 0
      %2164 = vmatprep.subr.bf16.mxu0 0
      %2165 = vmatpush1.bf16.msra.mxu0 0
      %2166 = vmatprep.subr.bf16.mxu0 0
      %2167 = vmatpush1.bf16.msra.mxu0 0
      %2168 = vmatprep.subr.bf16.mxu0 0
      %2169 = vmatpush1.bf16.msra.mxu0 0
      %2170 = vmatprep.subr.bf16.mxu0 0
      %2171 = vmatpush1.bf16.msra.mxu0 0
      %2172 = vmatprep.subr.bf16.mxu0 0
      %2173 = vmatpush1.bf16.msra.mxu0 0
      %2174 = vmatprep.mubr.bf16.mxu0 0
      %2175 = vmatmul.mubr.bf16.gmra.mrb[0].mxu0 %v1856
      %v2176 = vpop.f32.mrb[0].mxu0
      %v2177 = vadd.f32 0.0, %v2176
      %v2178 = vpop.f32.mrb[0].mxu0
      %v2179 = vpop.f32.mrb[0].mxu0
      %v2180 = vadd.f32 0.0, %v2179
      %v2181 = vpop.f32.mrb[0].mxu0
      %2182 = vmatprep.mubr.bf16.mxu0 0
      %2183 = vmatmul.mubr.bf16.gmra.mrb[0].mxu0 %v1859
      %v2184 = vpop.f32.mrb[0].mxu0
      %v2185 = vadd.f32 0.0, %v2184
      %v2186 = vpop.f32.mrb[0].mxu0
      %v2187 = vpop.f32.mrb[0].mxu0
      %v2188 = vadd.f32 0.0, %v2187
      %v2189 = vpop.f32.mrb[0].mxu0
      %2190 = vmatprep.mubr.bf16.mxu0 0
      %2191 = vmatmul.mubr.bf16.gmra.mrb[0].mxu0 %v1862
      %v2192 = vpop.f32.mrb[0].mxu0
      %v2193 = vadd.f32 0.0, %v2192
      %v2194 = vpop.f32.mrb[0].mxu0
      %v2195 = vpop.f32.mrb[0].mxu0
      %v2196 = vadd.f32 0.0, %v2195
      %v2197 = vpop.f32.mrb[0].mxu0
      %2198 = vmatprep.mubr.bf16.mxu0 0
      %2199 = vmatmul.mubr.bf16.gmra.mrb[0].mxu0 %v1865
      %v2200 = vpop.f32.mrb[0].mxu0
      %v2201 = vadd.f32 0.0, %v2200
      %v2202 = vpop.f32.mrb[0].mxu0
      %v2203 = vpop.f32.mrb[0].mxu0
      %v2204 = vadd.f32 0.0, %v2203
      %v2205 = vpop.f32.mrb[0].mxu0
      %2206 = vmatprep.mubr.bf16.mxu0 0
      %2207 = vmatmul.mubr.bf16.gmra.mrb[0].mxu0 %v1868
      %v2208 = vpop.f32.mrb[0].mxu0
      %v2209 = vadd.f32 0.0, %v2208
      %v2210 = vpop.f32.mrb[0].mxu0
      %v2211 = vpop.f32.mrb[0].mxu0
      %v2212 = vadd.f32 0.0, %v2211
      %v2213 = vpop.f32.mrb[0].mxu0
      %2214 = vmatprep.mubr.bf16.mxu0 0
      %2215 = vmatmul.mubr.bf16.gmra.mrb[0].mxu0 %v1871
      %v2216 = vpop.f32.mrb[0].mxu0
      %v2217 = vadd.f32 0.0, %v2216
      %v2218 = vpop.f32.mrb[0].mxu0
      %v2219 = vpop.f32.mrb[0].mxu0
      %v2220 = vadd.f32 0.0, %v2219
      %v2221 = vpop.f32.mrb[0].mxu0
      %2222 = vmatprep.mubr.bf16.mxu0 0
      %2223 = vmatmul.mubr.bf16.gmra.mrb[0].mxu0 %v1874
      %v2224 = vpop.f32.mrb[0].mxu0
      %v2225 = vadd.f32 0.0, %v2224
      %v2226 = vpop.f32.mrb[0].mxu0
      %v2227 = vpop.f32.mrb[0].mxu0
      %v2228 = vadd.f32 0.0, %v2227
      %v2229 = vpop.f32.mrb[0].mxu0
      %2230 = vmatprep.mubr.bf16.mxu0 0
      %2231 = vmatmul.mubr.bf16.gmra.mrb[0].mxu0 %v1877
      %v2232 = vpop.f32.mrb[0].mxu0
      %v2233 = vadd.f32 0.0, %v2232
      %v2234 = vpop.f32.mrb[0].mxu0
      %v2235 = vpop.f32.mrb[0].mxu0
      %v2236 = vadd.f32 0.0, %v2235
      %v2237 = vpop.f32.mrb[0].mxu0
      %2238 = vmatprep.mubr.bf16.mxu0 0
      %2239 = vmatmul.mubr.bf16.gmra.mrb[0].mxu0 %v1880
      %v2240 = vpop.f32.mrb[0].mxu0
      %v2241 = vadd.f32 0.0, %v2240
      %v2242 = vpop.f32.mrb[0].mxu0
      %v2243 = vpop.f32.mrb[0].mxu0
      %v2244 = vadd.f32 0.0, %v2243
      %v2245 = vpop.f32.mrb[0].mxu0
      %2246 = vmatprep.mubr.bf16.mxu0 0
      %2247 = vmatmul.mubr.bf16.gmra.mrb[0].mxu0 %v1883
      %v2248 = vpop.f32.mrb[0].mxu0
      %v2249 = vadd.f32 0.0, %v2248
      %v2250 = vpop.f32.mrb[0].mxu0
      %v2251 = vpop.f32.mrb[0].mxu0
      %v2252 = vadd.f32 0.0, %v2251
      %v2253 = vpop.f32.mrb[0].mxu0
      %2254 = vmatprep.mubr.bf16.mxu0 0
      %2255 = vmatmul.mubr.bf16.gmra.mrb[0].mxu0 %v1886
      %v2256 = vpop.f32.mrb[0].mxu0
      %v2257 = vadd.f32 0.0, %v2256
      %v2258 = vpop.f32.mrb[0].mxu0
      %v2259 = vpop.f32.mrb[0].mxu0
      %v2260 = vadd.f32 0.0, %v2259
      %v2261 = vpop.f32.mrb[0].mxu0
      %2262 = vmatprep.mubr.bf16.mxu0 0
      %2263 = vmatmul.mubr.bf16.gmra.mrb[0].mxu0 %v1889
      %v2264 = vpop.f32.mrb[0].mxu0
      %v2265 = vadd.f32 0.0, %v2264
      %v2266 = vpop.f32.mrb[0].mxu0
      %v2267 = vpop.f32.mrb[0].mxu0
      %v2268 = vadd.f32 0.0, %v2267
      %v2269 = vpop.f32.mrb[0].mxu0
      %2270 = vmatprep.mubr.bf16.mxu0 0
      %2271 = vmatmul.mubr.bf16.gmra.mrb[0].mxu0 %v1892
      %v2272 = vpop.f32.mrb[0].mxu0
      %v2273 = vadd.f32 0.0, %v2272
      %v2274 = vpop.f32.mrb[0].mxu0
      %v2275 = vpop.f32.mrb[0].mxu0
      %v2276 = vadd.f32 0.0, %v2275
      %v2277 = vpop.f32.mrb[0].mxu0
      %2278 = vmatprep.mubr.bf16.mxu0 0
      %2279 = vmatmul.mubr.bf16.gmra.mrb[0].mxu0 %v1895
      %v2280 = vpop.f32.mrb[0].mxu0
      %v2281 = vadd.f32 0.0, %v2280
      %v2282 = vpop.f32.mrb[0].mxu0
      %v2283 = vpop.f32.mrb[0].mxu0
      %v2284 = vadd.f32 0.0, %v2283
      %v2285 = vpop.f32.mrb[0].mxu0
      %2286 = vmatprep.mubr.bf16.mxu0 0
      %2287 = vmatmul.mubr.bf16.gmra.mrb[0].mxu0 %v1898
      %v2288 = vpop.f32.mrb[0].mxu0
      %v2289 = vadd.f32 0.0, %v2288
      %v2290 = vpop.f32.mrb[0].mxu0
      %v2291 = vpop.f32.mrb[0].mxu0
      %v2292 = vadd.f32 0.0, %v2291
      %v2293 = vpop.f32.mrb[0].mxu0
      %2294 = vmatprep.mubr.bf16.mxu0 0
      %2295 = vmatmul.mubr.bf16.gmra.mrb[0].mxu0 %v1901
      %v2296 = vpop.f32.mrb[0].mxu0
      %v2297 = vadd.f32 0.0, %v2296
      %v2298 = vpop.f32.mrb[0].mxu0
      %v2299 = vpop.f32.mrb[0].mxu0
      %v2300 = vadd.f32 0.0, %v2299
      %v2301 = vpop.f32.mrb[0].mxu0
      %2302 = vmatprep.mubr.bf16.mxu0 0
      %2303 = vmatmul.mubr.bf16.gmra.mrb[0].mxu0 %v1904
      %v2304 = vpop.f32.mrb[0].mxu0
      %v2305 = vadd.f32 0.0, %v2304
      %v2306 = vpop.f32.mrb[0].mxu0
      %v2307 = vpop.f32.mrb[0].mxu0
      %v2308 = vadd.f32 0.0, %v2307
      %v2309 = vpop.f32.mrb[0].mxu0
      %2310 = vmatprep.mubr.bf16.mxu0 0
      %2311 = vmatmul.mubr.bf16.gmra.mrb[0].mxu0 %v1907
      %v2312 = vpop.f32.mrb[0].mxu0
      %v2313 = vadd.f32 0.0, %v2312
      %v2314 = vpop.f32.mrb[0].mxu0
      %v2315 = vpop.f32.mrb[0].mxu0
      %v2316 = vadd.f32 0.0, %v2315
      %v2317 = vpop.f32.mrb[0].mxu0
      %2318 = vmatprep.mubr.bf16.mxu0 0
      %2319 = vmatmul.mubr.bf16.gmra.mrb[0].mxu0 %v1910
      %v2320 = vpop.f32.mrb[0].mxu0
      %v2321 = vadd.f32 0.0, %v2320
      %v2322 = vpop.f32.mrb[0].mxu0
      %v2323 = vpop.f32.mrb[0].mxu0
      %v2324 = vpop.f32.mrb[0].mxu0
      %2325 = vdwg.mxu0
      %2326 = vst [vmem:[#allocation2] sm:$0xff] %v1956
      %2327 = vst [vmem:[#allocation2 + $0x8] sm:$0xff] %v1958
      %2328 = vst [vmem:[#allocation2 + $0x10] sm:$0xff] %v2177
      %2329 = vst [vmem:[#allocation2 + $0x18] sm:$0xff] %v1960
      %2330 = vst [vmem:[#allocation2 + $0x20] sm:$0xff] %v1962
      %2331 = vst [vmem:[#allocation2 + $0x28] sm:$0xff] %v2180
      %2332 = vst [vmem:[#allocation2 + $0x30] sm:$0xff] %v1966
      %2333 = vst [vmem:[#allocation2 + $0x38] sm:$0xff] %v1968
      %2334 = vst [vmem:[#allocation2 + $0x40] sm:$0xff] %v2185
      %2335 = vst [vmem:[#allocation2 + $0x48] sm:$0xff] %v1970
      %2336 = vst [vmem:[#allocation2 + $0x50] sm:$0xff] %v1972
      %2337 = vst [vmem:[#allocation2 + $0x58] sm:$0xff] %v2188
      %2338 = vst [vmem:[#allocation2 + $0x60] sm:$0xff] %v1976
      %2339 = vst [vmem:[#allocation2 + $0x68] sm:$0xff] %v1978
      %2340 = vst [vmem:[#allocation2 + $0x70] sm:$0xff] %v2193
      %2341 = vst [vmem:[#allocation2 + $0x78] sm:$0xff] %v1980
      %2342 = vst [vmem:[#allocation2 + $0x80] sm:$0xff] %v1982
      %2343 = vst [vmem:[#allocation2 + $0x88] sm:$0xff] %v2196
      %2344 = vst [vmem:[#allocation2 + $0x90] sm:$0xff] %v1986
      %2345 = vst [vmem:[#allocation2 + $0x98] sm:$0xff] %v1988
      %2346 = vst [vmem:[#allocation2 + $0xa0] sm:$0xff] %v2201
      %2347 = vst [vmem:[#allocation2 + $0xa8] sm:$0xff] %v1990
      %2348 = vst [vmem:[#allocation2 + $0xb0] sm:$0xff] %v1992
      %2349 = vst [vmem:[#allocation2 + $0xb8] sm:$0xff] %v2204
      %2350 = vst [vmem:[#allocation2 + $0xc0] sm:$0xff] %v1996
      %2351 = vst [vmem:[#allocation2 + $0xc8] sm:$0xff] %v1998
      %2352 = vst [vmem:[#allocation2 + $0xd0] sm:$0xff] %v2209
      %2353 = vst [vmem:[#allocation2 + $0xd8] sm:$0xff] %v2000
      %2354 = vst [vmem:[#allocation2 + $0xe0] sm:$0xff] %v2002
      %2355 = vst [vmem:[#allocation2 + $0xe8] sm:$0xff] %v2212
      %2356 = vst [vmem:[#allocation2 + $0xf0] sm:$0xff] %v2006
      %2357 = vst [vmem:[#allocation2 + $0xf8] sm:$0xff] %v2008
      %2358 = vst [vmem:[#allocation2 + $0x100] sm:$0xff] %v2217
      %2359 = vst [vmem:[#allocation2 + $0x108] sm:$0xff] %v2010
      %2360 = vst [vmem:[#allocation2 + $0x110] sm:$0xff] %v2012
      %2361 = vst [vmem:[#allocation2 + $0x118] sm:$0xff] %v2220
      %2362 = vst [vmem:[#allocation2 + $0x120] sm:$0xff] %v2016
      %2363 = vst [vmem:[#allocation2 + $0x128] sm:$0xff] %v2018
      %2364 = vst [vmem:[#allocation2 + $0x130] sm:$0xff] %v2225
      %2365 = vst [vmem:[#allocation2 + $0x138] sm:$0xff] %v2020
      %2366 = vst [vmem:[#allocation2 + $0x140] sm:$0xff] %v2022
      %2367 = vst [vmem:[#allocation2 + $0x148] sm:$0xff] %v2228
      %2368 = vst [vmem:[#allocation2 + $0x150] sm:$0xff] %v2026
      %2369 = vst [vmem:[#allocation2 + $0x158] sm:$0xff] %v2028
      %2370 = vst [vmem:[#allocation2 + $0x160] sm:$0xff] %v2233
      %2371 = vst [vmem:[#allocation2 + $0x168] sm:$0xff] %v2030
      %2372 = vst [vmem:[#allocation2 + $0x170] sm:$0xff] %v2032
      %2373 = vst [vmem:[#allocation2 + $0x178] sm:$0xff] %v2236
      %2374 = vst [vmem:[#allocation2 + $0x180] sm:$0xff] %v2036
      %2375 = vst [vmem:[#allocation2 + $0x188] sm:$0xff] %v2038
      %2376 = vst [vmem:[#allocation2 + $0x190] sm:$0xff] %v2241
      %2377 = vst [vmem:[#allocation2 + $0x198] sm:$0xff] %v2040
      %2378 = vst [vmem:[#allocation2 + $0x1a0] sm:$0xff] %v2042
      %2379 = vst [vmem:[#allocation2 + $0x1a8] sm:$0xff] %v2244
      %2380 = vst [vmem:[#allocation2 + $0x1b0] sm:$0xff] %v2046
      %2381 = vst [vmem:[#allocation2 + $0x1b8] sm:$0xff] %v2048
      %2382 = vst [vmem:[#allocation2 + $0x1c0] sm:$0xff] %v2249
      %2383 = vst [vmem:[#allocation2 + $0x1c8] sm:$0xff] %v2050
      %2384 = vst [vmem:[#allocation2 + $0x1d0] sm:$0xff] %v2052
      %2385 = vst [vmem:[#allocation2 + $0x1d8] sm:$0xff] %v2252
      %2386 = vst [vmem:[#allocation2 + $0x1e0] sm:$0xff] %v2056
      %2387 = vst [vmem:[#allocation2 + $0x1e8] sm:$0xff] %v2058
      %2388 = vst [vmem:[#allocation2 + $0x1f0] sm:$0xff] %v2257
      %2389 = vst [vmem:[#allocation2 + $0x1f8] sm:$0xff] %v2060
      %2390 = vst [vmem:[#allocation2 + $0x200] sm:$0xff] %v2062
      %2391 = vst [vmem:[#allocation2 + $0x208] sm:$0xff] %v2260
      %2392 = vst [vmem:[#allocation2 + $0x210] sm:$0xff] %v2066
      %2393 = vst [vmem:[#allocation2 + $0x218] sm:$0xff] %v2068
      %2394 = vst [vmem:[#allocation2 + $0x220] sm:$0xff] %v2265
      %2395 = vst [vmem:[#allocation2 + $0x228] sm:$0xff] %v2070
      %2396 = vst [vmem:[#allocation2 + $0x230] sm:$0xff] %v2072
      %2397 = vst [vmem:[#allocation2 + $0x238] sm:$0xff] %v2268
      %2398 = vst [vmem:[#allocation2 + $0x240] sm:$0xff] %v2076
      %2399 = vst [vmem:[#allocation2 + $0x248] sm:$0xff] %v2078
      %2400 = vst [vmem:[#allocation2 + $0x250] sm:$0xff] %v2273
      %2401 = vst [vmem:[#allocation2 + $0x258] sm:$0xff] %v2080
      %2402 = vst [vmem:[#allocation2 + $0x260] sm:$0xff] %v2082
      %2403 = vst [vmem:[#allocation2 + $0x268] sm:$0xff] %v2276
      %2404 = vst [vmem:[#allocation2 + $0x270] sm:$0xff] %v2086
      %2405 = vst [vmem:[#allocation2 + $0x278] sm:$0xff] %v2088
      %2406 = vst [vmem:[#allocation2 + $0x280] sm:$0xff] %v2281
      %2407 = vst [vmem:[#allocation2 + $0x288] sm:$0xff] %v2090
      %2408 = vst [vmem:[#allocation2 + $0x290] sm:$0xff] %v2092
      %2409 = vst [vmem:[#allocation2 + $0x298] sm:$0xff] %v2284
      %2410 = vst [vmem:[#allocation2 + $0x2a0] sm:$0xff] %v2096
      %2411 = vst [vmem:[#allocation2 + $0x2a8] sm:$0xff] %v2098
      %2412 = vst [vmem:[#allocation2 + $0x2b0] sm:$0xff] %v2289
      %2413 = vst [vmem:[#allocation2 + $0x2b8] sm:$0xff] %v2100
      %2414 = vst [vmem:[#allocation2 + $0x2c0] sm:$0xff] %v2102
      %2415 = vst [vmem:[#allocation2 + $0x2c8] sm:$0xff] %v2292
      %2416 = vst [vmem:[#allocation2 + $0x2d0] sm:$0xff] %v2106
      %2417 = vst [vmem:[#allocation2 + $0x2d8] sm:$0xff] %v2108
      %2418 = vst [vmem:[#allocation2 + $0x2e0] sm:$0xff] %v2297
      %2419 = vst [vmem:[#allocation2 + $0x2e8] sm:$0xff] %v2110
      %2420 = vst [vmem:[#allocation2 + $0x2f0] sm:$0xff] %v2112
      %2421 = vst [vmem:[#allocation2 + $0x2f8] sm:$0xff] %v2300
      %2422 = vst [vmem:[#allocation2 + $0x300] sm:$0xff] %v2116
      %2423 = vst [vmem:[#allocation2 + $0x308] sm:$0xff] %v2118
      %2424 = vst [vmem:[#allocation2 + $0x310] sm:$0xff] %v2305
      %2425 = vst [vmem:[#allocation2 + $0x318] sm:$0xff] %v2120
      %2426 = vst [vmem:[#allocation2 + $0x320] sm:$0xff] %v2122
      %2427 = vst [vmem:[#allocation2 + $0x328] sm:$0xff] %v2308
      %2428 = vst [vmem:[#allocation2 + $0x330] sm:$0xff] %v2126
      %2429 = vst [vmem:[#allocation2 + $0x338] sm:$0xff] %v2128
      %2430 = vst [vmem:[#allocation2 + $0x340] sm:$0xff] %v2313
      %2431 = vst [vmem:[#allocation2 + $0x348] sm:$0xff] %v2130
      %2432 = vst [vmem:[#allocation2 + $0x350] sm:$0xff] %v2132
      %2433 = vst [vmem:[#allocation2 + $0x358] sm:$0xff] %v2316
      %2434 = vst [vmem:[#allocation2 + $0x360] sm:$0x3] %v2136
      %2435 = vst [vmem:[#allocation2 + $0x368] sm:$0x3] %v2138
      %2436 = vst [vmem:[#allocation2 + $0x370] sm:$0x3] %v2321
      %v2437 = vld [vmem:[#allocation3] sm:$0xff]
      %v2438 = vld [vmem:[#allocation3 + $0x8] sm:$0xff]
      %v2439 = vld [vmem:[#allocation3 + $0x10] sm:$0xff]
      %v2440 = vld [vmem:[#allocation3 + $0x18] sm:$0xff]
      %v2441 = vld [vmem:[#allocation3 + $0x20] sm:$0xff]
      %v2442 = vld [vmem:[#allocation3 + $0x28] sm:$0xff]
      %v2443 = vld [vmem:[#allocation3 + $0x30] sm:$0xff]
      %v2444 = vld [vmem:[#allocation3 + $0x38] sm:$0xff]
      %v2445 = vld [vmem:[#allocation3 + $0x40] sm:$0xff]
      %v2446 = vld [vmem:[#allocation3 + $0x48] sm:$0xff]
      %v2447 = vld [vmem:[#allocation3 + $0x50] sm:$0xff]
      %v2448 = vld [vmem:[#allocation3 + $0x58] sm:$0xff]
      %v2449 = vld [vmem:[#allocation3 + $0x60] sm:$0xff]
      %v2450 = vld [vmem:[#allocation3 + $0x68] sm:$0xff]
      %v2451 = vld [vmem:[#allocation3 + $0x70] sm:$0xff]
      %v2452 = vld [vmem:[#allocation3 + $0x78] sm:$0xff]
      %v2453 = vld [vmem:[#allocation3 + $0x80] sm:$0xff]
      %v2454 = vld [vmem:[#allocation3 + $0x88] sm:$0xff]
      %v2455 = vld [vmem:[#allocation3 + $0x90] sm:$0xff]
      %v2456 = vld [vmem:[#allocation3 + $0x98] sm:$0xff]
      %v2457 = vld [vmem:[#allocation3 + $0xa0] sm:$0xff]
      %v2458 = vld [vmem:[#allocation3 + $0xa8] sm:$0xff]
      %v2459 = vld [vmem:[#allocation3 + $0xb0] sm:$0xff]
      %v2460 = vld [vmem:[#allocation3 + $0xb8] sm:$0xff]
      %v2461 = vld [vmem:[#allocation3 + $0xc0] sm:$0xff]
      %v2462 = vld [vmem:[#allocation3 + $0xc8] sm:$0xff]
      %v2463 = vld [vmem:[#allocation3 + $0xd0] sm:$0xff]
      %v2464 = vld [vmem:[#allocation3 + $0xd8] sm:$0xff]
      %v2465 = vld [vmem:[#allocation3 + $0xe0] sm:$0xff]
      %v2466 = vld [vmem:[#allocation3 + $0xe8] sm:$0xff]
      %v2467 = vld [vmem:[#allocation3 + $0xf0] sm:$0xff]
      %v2468 = vld [vmem:[#allocation3 + $0xf8] sm:$0xff]
      %v2469 = vld [vmem:[#allocation3 + $0x100] sm:$0xff]
      %v2470 = vld [vmem:[#allocation3 + $0x108] sm:$0xff]
      %v2471 = vld [vmem:[#allocation3 + $0x110] sm:$0xff]
      %v2472 = vld [vmem:[#allocation3 + $0x118] sm:$0xff]
      %v2473 = vld [vmem:[#allocation2] sm:$0xff]
      %v2474 = vld [vmem:[#allocation2 + $0x18] sm:$0xff]
      %v2475 = vld [vmem:[#allocation2 + $0x30] sm:$0xff]
      %v2476 = vld [vmem:[#allocation2 + $0x48] sm:$0xff]
      %v2477 = vld [vmem:[#allocation2 + $0x60] sm:$0xff]
      %v2478 = vld [vmem:[#allocation2 + $0x78] sm:$0xff]
      %v2479 = vld [vmem:[#allocation2 + $0x90] sm:$0xff]
      %v2480 = vld [vmem:[#allocation2 + $0xa8] sm:$0xff]
      %v2481 = vld [vmem:[#allocation2 + $0xc0] sm:$0xff]
      %v2482 = vld [vmem:[#allocation2 + $0xd8] sm:$0xff]
      %v2483 = vld [vmem:[#allocation2 + $0xf0] sm:$0xff]
      %v2484 = vld [vmem:[#allocation2 + $0x108] sm:$0xff]
      %v2485 = vld [vmem:[#allocation2 + $0x120] sm:$0xff]
      %v2486 = vld [vmem:[#allocation2 + $0x138] sm:$0xff]
      %v2487 = vld [vmem:[#allocation2 + $0x150] sm:$0xff]
      %v2488 = vld [vmem:[#allocation2 + $0x168] sm:$0xff]
      %v2489 = vld [vmem:[#allocation2 + $0x180] sm:$0xff]
      %v2490 = vld [vmem:[#allocation2 + $0x198] sm:$0xff]
      %v2491 = vld [vmem:[#allocation2 + $0x1b0] sm:$0xff]
      %v2492 = vld [vmem:[#allocation2 + $0x1c8] sm:$0xff]
      %v2493 = vld [vmem:[#allocation2 + $0x1e0] sm:$0xff]
      %v2494 = vld [vmem:[#allocation2 + $0x1f8] sm:$0xff]
      %v2495 = vld [vmem:[#allocation2 + $0x210] sm:$0xff]
      %v2496 = vld [vmem:[#allocation2 + $0x228] sm:$0xff]
      %v2497 = vld [vmem:[#allocation2 + $0x240] sm:$0xff]
      %v2498 = vld [vmem:[#allocation2 + $0x258] sm:$0xff]
      %v2499 = vld [vmem:[#allocation2 + $0x270] sm:$0xff]
      %v2500 = vld [vmem:[#allocation2 + $0x288] sm:$0xff]
      %v2501 = vld [vmem:[#allocation2 + $0x2a0] sm:$0xff]
      %v2502 = vld [vmem:[#allocation2 + $0x2b8] sm:$0xff]
      %v2503 = vld [vmem:[#allocation2 + $0x2d0] sm:$0xff]
      %v2504 = vld [vmem:[#allocation2 + $0x2e8] sm:$0xff]
      %v2505 = vld [vmem:[#allocation2 + $0x300] sm:$0xff]
      %v2506 = vld [vmem:[#allocation2 + $0x318] sm:$0xff]
      %v2507 = vld [vmem:[#allocation2 + $0x330] sm:$0xff]
      %v2508 = vld [vmem:[#allocation2 + $0x348] sm:$0xff]
      %v2509 = vadd.f32 %v2437, %v2473
      %v2510 = vadd.f32 %v2438, %v2474
      %v2511 = vadd.f32 %v2439, %v2475
      %v2512 = vadd.f32 %v2440, %v2476
      %v2513 = vadd.f32 %v2441, %v2477
      %v2514 = vadd.f32 %v2442, %v2478
      %v2515 = vadd.f32 %v2443, %v2479
      %v2516 = vadd.f32 %v2444, %v2480
      %v2517 = vadd.f32 %v2445, %v2481
      %v2518 = vadd.f32 %v2446, %v2482
      %v2519 = vadd.f32 %v2447, %v2483
      %v2520 = vadd.f32 %v2448, %v2484
      %v2521 = vadd.f32 %v2449, %v2485
      %v2522 = vadd.f32 %v2450, %v2486
      %v2523 = vadd.f32 %v2451, %v2487
      %v2524 = vadd.f32 %v2452, %v2488
      %v2525 = vadd.f32 %v2453, %v2489
      %v2526 = vadd.f32 %v2454, %v2490
      %v2527 = vadd.f32 %v2455, %v2491
      %v2528 = vadd.f32 %v2456, %v2492
      %v2529 = vadd.f32 %v2457, %v2493
      %v2530 = vadd.f32 %v2458, %v2494
      %v2531 = vadd.f32 %v2459, %v2495
      %v2532 = vadd.f32 %v2460, %v2496
      %v2533 = vadd.f32 %v2461, %v2497
      %v2534 = vadd.f32 %v2462, %v2498
      %v2535 = vadd.f32 %v2463, %v2499
      %v2536 = vadd.f32 %v2464, %v2500
      %v2537 = vadd.f32 %v2465, %v2501
      %v2538 = vadd.f32 %v2466, %v2502
      %v2539 = vadd.f32 %v2467, %v2503
      %v2540 = vadd.f32 %v2468, %v2504
      %v2541 = vadd.f32 %v2469, %v2505
      %v2542 = vadd.f32 %v2470, %v2506
      %v2543 = vadd.f32 %v2471, %v2507
      %v2544 = vadd.f32 %v2472, %v2508
      %2545 = vst [vmem:[#allocation3] sm:$0xff] %v2509
      %2546 = vst [vmem:[#allocation3 + $0x8] sm:$0xff] %v2510
      %2547 = vst [vmem:[#allocation3 + $0x10] sm:$0xff] %v2511
      %2548 = vst [vmem:[#allocation3 + $0x18] sm:$0xff] %v2512
      %2549 = vst [vmem:[#allocation3 + $0x20] sm:$0xff] %v2513
      %2550 = vst [vmem:[#allocation3 + $0x28] sm:$0xff] %v2514
      %2551 = vst [vmem:[#allocation3 + $0x30] sm:$0xff] %v2515
      %2552 = vst [vmem:[#allocation3 + $0x38] sm:$0xff] %v2516
      %2553 = vst [vmem:[#allocation3 + $0x40] sm:$0xff] %v2517
      %2554 = vst [vmem:[#allocation3 + $0x48] sm:$0xff] %v2518
      %2555 = vst [vmem:[#allocation3 + $0x50] sm:$0xff] %v2519
      %2556 = vst [vmem:[#allocation3 + $0x58] sm:$0xff] %v2520
      %2557 = vst [vmem:[#allocation3 + $0x60] sm:$0xff] %v2521
      %2558 = vst [vmem:[#allocation3 + $0x68] sm:$0xff] %v2522
      %2559 = vst [vmem:[#allocation3 + $0x70] sm:$0xff] %v2523
      %2560 = vst [vmem:[#allocation3 + $0x78] sm:$0xff] %v2524
      %2561 = vst [vmem:[#allocation3 + $0x80] sm:$0xff] %v2525
      %2562 = vst [vmem:[#allocation3 + $0x88] sm:$0xff] %v2526
      %2563 = vst [vmem:[#allocation3 + $0x90] sm:$0xff] %v2527
      %2564 = vst [vmem:[#allocation3 + $0x98] sm:$0xff] %v2528
      %2565 = vst [vmem:[#allocation3 + $0xa0] sm:$0xff] %v2529
      %2566 = vst [vmem:[#allocation3 + $0xa8] sm:$0xff] %v2530
      %2567 = vst [vmem:[#allocation3 + $0xb0] sm:$0xff] %v2531
      %2568 = vst [vmem:[#allocation3 + $0xb8] sm:$0xff] %v2532
      %2569 = vst [vmem:[#allocation3 + $0xc0] sm:$0xff] %v2533
      %2570 = vst [vmem:[#allocation3 + $0xc8] sm:$0xff] %v2534
      %2571 = vst [vmem:[#allocation3 + $0xd0] sm:$0xff] %v2535
      %2572 = vst [vmem:[#allocation3 + $0xd8] sm:$0xff] %v2536
      %2573 = vst [vmem:[#allocation3 + $0xe0] sm:$0xff] %v2537
      %2574 = vst [vmem:[#allocation3 + $0xe8] sm:$0xff] %v2538
      %2575 = vst [vmem:[#allocation3 + $0xf0] sm:$0xff] %v2539
      %2576 = vst [vmem:[#allocation3 + $0xf8] sm:$0xff] %v2540
      %2577 = vst [vmem:[#allocation3 + $0x100] sm:$0xff] %v2541
      %2578 = vst [vmem:[#allocation3 + $0x108] sm:$0xff] %v2542
      %2579 = vst [vmem:[#allocation3 + $0x110] sm:$0xff] %v2543
      %2580 = vst [vmem:[#allocation3 + $0x118] sm:$0xff] %v2544
      %v2581 = vld [vmem:[#allocation3] sm:$0xff]
      %v2582 = vld [vmem:[#allocation3 + $0x8] sm:$0xff]
      %v2583 = vld [vmem:[#allocation3 + $0x10] sm:$0xff]
      %v2584 = vld [vmem:[#allocation3 + $0x18] sm:$0xff]
      %v2585 = vld [vmem:[#allocation3 + $0x20] sm:$0xff]
      %v2586 = vld [vmem:[#allocation3 + $0x28] sm:$0xff]
      %v2587 = vld [vmem:[#allocation3 + $0x30] sm:$0xff]
      %v2588 = vld [vmem:[#allocation3 + $0x38] sm:$0xff]
      %v2589 = vld [vmem:[#allocation3 + $0x40] sm:$0xff]
      %v2590 = vld [vmem:[#allocation3 + $0x48] sm:$0xff]
      %v2591 = vld [vmem:[#allocation3 + $0x50] sm:$0xff]
      %v2592 = vld [vmem:[#allocation3 + $0x58] sm:$0xff]
      %v2593 = vld [vmem:[#allocation3 + $0x60] sm:$0xff]
      %v2594 = vld [vmem:[#allocation3 + $0x68] sm:$0xff]
      %v2595 = vld [vmem:[#allocation3 + $0x70] sm:$0xff]
      %v2596 = vld [vmem:[#allocation3 + $0x78] sm:$0xff]
      %v2597 = vld [vmem:[#allocation3 + $0x80] sm:$0xff]
      %v2598 = vld [vmem:[#allocation3 + $0x88] sm:$0xff]
      %v2599 = vld [vmem:[#allocation3 + $0x90] sm:$0xff]
      %v2600 = vld [vmem:[#allocation3 + $0x98] sm:$0xff]
      %v2601 = vld [vmem:[#allocation3 + $0xa0] sm:$0xff]
      %v2602 = vld [vmem:[#allocation3 + $0xa8] sm:$0xff]
      %v2603 = vld [vmem:[#allocation3 + $0xb0] sm:$0xff]
      %v2604 = vld [vmem:[#allocation3 + $0xb8] sm:$0xff]
      %v2605 = vld [vmem:[#allocation3 + $0xc0] sm:$0xff]
      %v2606 = vld [vmem:[#allocation3 + $0xc8] sm:$0xff]
      %v2607 = vld [vmem:[#allocation3 + $0xd0] sm:$0xff]
      %v2608 = vld [vmem:[#allocation3 + $0xd8] sm:$0xff]
      %v2609 = vld [vmem:[#allocation3 + $0xe0] sm:$0xff]
      %v2610 = vld [vmem:[#allocation3 + $0xe8] sm:$0xff]
      %v2611 = vld [vmem:[#allocation3 + $0xf0] sm:$0xff]
      %v2612 = vld [vmem:[#allocation3 + $0xf8] sm:$0xff]
      %v2613 = vld [vmem:[#allocation3 + $0x100] sm:$0xff]
      %v2614 = vld [vmem:[#allocation3 + $0x108] sm:$0xff]
      %v2615 = vld [vmem:[#allocation3 + $0x110] sm:$0xff]
      %v2616 = vld [vmem:[#allocation3 + $0x118] sm:$0xff]
      %v2617 = vld [vmem:[#allocation2 + $0x8] sm:$0xfe]
      %v2618 = vld [vmem:[#allocation2 + $0x20] sm:$0xff]
      %v2619 = vld [vmem:[#allocation2 + $0x38] sm:$0xff]
      %v2620 = vld [vmem:[#allocation2 + $0x50] sm:$0xff]
      %v2621 = vld [vmem:[#allocation2 + $0x68] sm:$0xff]
      %v2622 = vld [vmem:[#allocation2 + $0x80] sm:$0xff]
      %v2623 = vld [vmem:[#allocation2 + $0x98] sm:$0xff]
      %v2624 = vld [vmem:[#allocation2 + $0xb0] sm:$0xff]
      %v2625 = vld [vmem:[#allocation2 + $0xc8] sm:$0xff]
      %v2626 = vld [vmem:[#allocation2 + $0xe0] sm:$0xff]
      %v2627 = vld [vmem:[#allocation2 + $0xf8] sm:$0xff]
      %v2628 = vld [vmem:[#allocation2 + $0x110] sm:$0xff]
      %v2629 = vld [vmem:[#allocation2 + $0x128] sm:$0xff]
      %v2630 = vld [vmem:[#allocation2 + $0x140] sm:$0xff]
      %v2631 = vld [vmem:[#allocation2 + $0x158] sm:$0xff]
      %v2632 = vld [vmem:[#allocation2 + $0x170] sm:$0xff]
      %v2633 = vld [vmem:[#allocation2 + $0x188] sm:$0xff]
      %v2634 = vld [vmem:[#allocation2 + $0x1a0] sm:$0xff]
      %v2635 = vld [vmem:[#allocation2 + $0x1b8] sm:$0xff]
      %v2636 = vld [vmem:[#allocation2 + $0x1d0] sm:$0xff]
      %v2637 = vld [vmem:[#allocation2 + $0x1e8] sm:$0xff]
      %v2638 = vld [vmem:[#allocation2 + $0x200] sm:$0xff]
      %v2639 = vld [vmem:[#allocation2 + $0x218] sm:$0xff]
      %v2640 = vld [vmem:[#allocation2 + $0x230] sm:$0xff]
      %v2641 = vld [vmem:[#allocation2 + $0x248] sm:$0xff]
      %v2642 = vld [vmem:[#allocation2 + $0x260] sm:$0xff]
      %v2643 = vld [vmem:[#allocation2 + $0x278] sm:$0xff]
      %v2644 = vld [vmem:[#allocation2 + $0x290] sm:$0xff]
      %v2645 = vld [vmem:[#allocation2 + $0x2a8] sm:$0xff]
      %v2646 = vld [vmem:[#allocation2 + $0x2c0] sm:$0xff]
      %v2647 = vld [vmem:[#allocation2 + $0x2d8] sm:$0xff]
      %v2648 = vld [vmem:[#allocation2 + $0x2f0] sm:$0xff]
      %v2649 = vld [vmem:[#allocation2 + $0x308] sm:$0xff]
      %v2650 = vld [vmem:[#allocation2 + $0x320] sm:$0xff]
      %v2651 = vld [vmem:[#allocation2 + $0x338] sm:$0xff]
      %v2652 = vld [vmem:[#allocation2 + $0x350] sm:$0xff]
      %v2653 = vld [vmem:[#allocation2 + $0x368] sm:$0x1]
      %v2691 = vrot.slane %v2617, 1
      %v2692 = vrot.slane %v2618, 1
      %v2693 = vsel %vm1194, %v2691, %v2692
      %v2694 = vrot.slane %v2619, 1
      %v2695 = vsel %vm1194, %v2692, %v2694
      %v2696 = vrot.slane %v2620, 1
      %v2697 = vsel %vm1194, %v2694, %v2696
      %v2698 = vrot.slane %v2621, 1
      %v2699 = vsel %vm1194, %v2696, %v2698
      %v2700 = vrot.slane %v2622, 1
      %v2701 = vsel %vm1194, %v2698, %v2700
      %v2702 = vrot.slane %v2623, 1
      %v2703 = vsel %vm1194, %v2700, %v2702
      %v2704 = vrot.slane %v2624, 1
      %v2705 = vsel %vm1194, %v2702, %v2704
      %v2706 = vrot.slane %v2625, 1
      %v2707 = vsel %vm1194, %v2704, %v2706
      %v2708 = vrot.slane %v2626, 1
      %v2709 = vsel %vm1194, %v2706, %v2708
      %v2710 = vrot.slane %v2627, 1
      %v2711 = vsel %vm1194, %v2708, %v2710
      %v2712 = vrot.slane %v2628, 1
      %v2713 = vsel %vm1194, %v2710, %v2712
      %v2714 = vrot.slane %v2629, 1
      %v2715 = vsel %vm1194, %v2712, %v2714
      %v2716 = vrot.slane %v2630, 1
      %v2717 = vsel %vm1194, %v2714, %v2716
      %v2718 = vrot.slane %v2631, 1
      %v2719 = vsel %vm1194, %v2716, %v2718
      %v2720 = vrot.slane %v2632, 1
      %v2721 = vsel %vm1194, %v2718, %v2720
      %v2722 = vrot.slane %v2633, 1
      %v2723 = vsel %vm1194, %v2720, %v2722
      %v2724 = vrot.slane %v2634, 1
      %v2725 = vsel %vm1194, %v2722, %v2724
      %v2726 = vrot.slane %v2635, 1
      %v2727 = vsel %vm1194, %v2724, %v2726
      %v2728 = vrot.slane %v2636, 1
      %v2729 = vsel %vm1194, %v2726, %v2728
      %v2730 = vrot.slane %v2637, 1
      %v2731 = vsel %vm1194, %v2728, %v2730
      %v2732 = vrot.slane %v2638, 1
      %v2733 = vsel %vm1194, %v2730, %v2732
      %v2734 = vrot.slane %v2639, 1
      %v2735 = vsel %vm1194, %v2732, %v2734
      %v2736 = vrot.slane %v2640, 1
      %v2737 = vsel %vm1194, %v2734, %v2736
      %v2738 = vrot.slane %v2641, 1
      %v2739 = vsel %vm1194, %v2736, %v2738
      %v2740 = vrot.slane %v2642, 1
      %v2741 = vsel %vm1194, %v2738, %v2740
      %v2742 = vrot.slane %v2643, 1
      %v2743 = vsel %vm1194, %v2740, %v2742
      %v2744 = vrot.slane %v2644, 1
      %v2745 = vsel %vm1194, %v2742, %v2744
      %v2746 = vrot.slane %v2645, 1
      %v2747 = vsel %vm1194, %v2744, %v2746
      %v2748 = vrot.slane %v2646, 1
      %v2749 = vsel %vm1194, %v2746, %v2748
      %v2750 = vrot.slane %v2647, 1
      %v2751 = vsel %vm1194, %v2748, %v2750
      %v2752 = vrot.slane %v2648, 1
      %v2753 = vsel %vm1194, %v2750, %v2752
      %v2754 = vrot.slane %v2649, 1
      %v2755 = vsel %vm1194, %v2752, %v2754
      %v2756 = vrot.slane %v2650, 1
      %v2757 = vsel %vm1194, %v2754, %v2756
      %v2758 = vrot.slane %v2651, 1
      %v2759 = vsel %vm1194, %v2756, %v2758
      %v2760 = vrot.slane %v2652, 1
      %v2761 = vsel %vm1194, %v2758, %v2760
      %v2762 = vrot.slane %v2653, 1
      %v2763 = vsel %vm1194, %v2760, %v2762
      %v2800 = vadd.f32 %v2581, %v2693
      %v2801 = vadd.f32 %v2582, %v2695
      %v2802 = vadd.f32 %v2583, %v2697
      %v2803 = vadd.f32 %v2584, %v2699
      %v2804 = vadd.f32 %v2585, %v2701
      %v2805 = vadd.f32 %v2586, %v2703
      %v2806 = vadd.f32 %v2587, %v2705
      %v2807 = vadd.f32 %v2588, %v2707
      %v2808 = vadd.f32 %v2589, %v2709
      %v2809 = vadd.f32 %v2590, %v2711
      %v2810 = vadd.f32 %v2591, %v2713
      %v2811 = vadd.f32 %v2592, %v2715
      %v2812 = vadd.f32 %v2593, %v2717
      %v2813 = vadd.f32 %v2594, %v2719
      %v2814 = vadd.f32 %v2595, %v2721
      %v2815 = vadd.f32 %v2596, %v2723
      %v2816 = vadd.f32 %v2597, %v2725
      %v2817 = vadd.f32 %v2598, %v2727
      %v2818 = vadd.f32 %v2599, %v2729
      %v2819 = vadd.f32 %v2600, %v2731
      %v2820 = vadd.f32 %v2601, %v2733
      %v2821 = vadd.f32 %v2602, %v2735
      %v2822 = vadd.f32 %v2603, %v2737
      %v2823 = vadd.f32 %v2604, %v2739
      %v2824 = vadd.f32 %v2605, %v2741
      %v2825 = vadd.f32 %v2606, %v2743
      %v2826 = vadd.f32 %v2607, %v2745
      %v2827 = vadd.f32 %v2608, %v2747
      %v2828 = vadd.f32 %v2609, %v2749
      %v2829 = vadd.f32 %v2610, %v2751
      %v2830 = vadd.f32 %v2611, %v2753
      %v2831 = vadd.f32 %v2612, %v2755
      %v2832 = vadd.f32 %v2613, %v2757
      %v2833 = vadd.f32 %v2614, %v2759
      %v2834 = vadd.f32 %v2615, %v2761
      %v2835 = vadd.f32 %v2616, %v2763
      %2836 = vst [vmem:[#allocation3] sm:$0xff] %v2800
      %2837 = vst [vmem:[#allocation3 + $0x8] sm:$0xff] %v2801
      %2838 = vst [vmem:[#allocation3 + $0x10] sm:$0xff] %v2802
      %2839 = vst [vmem:[#allocation3 + $0x18] sm:$0xff] %v2803
      %2840 = vst [vmem:[#allocation3 + $0x20] sm:$0xff] %v2804
      %2841 = vst [vmem:[#allocation3 + $0x28] sm:$0xff] %v2805
      %2842 = vst [vmem:[#allocation3 + $0x30] sm:$0xff] %v2806
      %2843 = vst [vmem:[#allocation3 + $0x38] sm:$0xff] %v2807
      %2844 = vst [vmem:[#allocation3 + $0x40] sm:$0xff] %v2808
      %2845 = vst [vmem:[#allocation3 + $0x48] sm:$0xff] %v2809
      %2846 = vst [vmem:[#allocation3 + $0x50] sm:$0xff] %v2810
      %2847 = vst [vmem:[#allocation3 + $0x58] sm:$0xff] %v2811
      %2848 = vst [vmem:[#allocation3 + $0x60] sm:$0xff] %v2812
      %2849 = vst [vmem:[#allocation3 + $0x68] sm:$0xff] %v2813
      %2850 = vst [vmem:[#allocation3 + $0x70] sm:$0xff] %v2814
      %2851 = vst [vmem:[#allocation3 + $0x78] sm:$0xff] %v2815
      %2852 = vst [vmem:[#allocation3 + $0x80] sm:$0xff] %v2816
      %2853 = vst [vmem:[#allocation3 + $0x88] sm:$0xff] %v2817
      %2854 = vst [vmem:[#allocation3 + $0x90] sm:$0xff] %v2818
      %2855 = vst [vmem:[#allocation3 + $0x98] sm:$0xff] %v2819
      %2856 = vst [vmem:[#allocation3 + $0xa0] sm:$0xff] %v2820
      %2857 = vst [vmem:[#allocation3 + $0xa8] sm:$0xff] %v2821
      %2858 = vst [vmem:[#allocation3 + $0xb0] sm:$0xff] %v2822
      %2859 = vst [vmem:[#allocation3 + $0xb8] sm:$0xff] %v2823
      %2860 = vst [vmem:[#allocation3 + $0xc0] sm:$0xff] %v2824
      %2861 = vst [vmem:[#allocation3 + $0xc8] sm:$0xff] %v2825
      %2862 = vst [vmem:[#allocation3 + $0xd0] sm:$0xff] %v2826
      %2863 = vst [vmem:[#allocation3 + $0xd8] sm:$0xff] %v2827
      %2864 = vst [vmem:[#allocation3 + $0xe0] sm:$0xff] %v2828
      %2865 = vst [vmem:[#allocation3 + $0xe8] sm:$0xff] %v2829
      %2866 = vst [vmem:[#allocation3 + $0xf0] sm:$0xff] %v2830
      %2867 = vst [vmem:[#allocation3 + $0xf8] sm:$0xff] %v2831
      %2868 = vst [vmem:[#allocation3 + $0x100] sm:$0xff] %v2832
      %2869 = vst [vmem:[#allocation3 + $0x108] sm:$0xff] %v2833
      %2870 = vst [vmem:[#allocation3 + $0x110] sm:$0xff] %v2834
      %2871 = vst [vmem:[#allocation3 + $0x118] sm:$0xff] %v2835
      %v2872 = vld [vmem:[#allocation3] sm:$0xff]
      %v2873 = vld [vmem:[#allocation3 + $0x8] sm:$0xff]
      %v2874 = vld [vmem:[#allocation3 + $0x10] sm:$0xff]
      %v2875 = vld [vmem:[#allocation3 + $0x18] sm:$0xff]
      %v2876 = vld [vmem:[#allocation3 + $0x20] sm:$0xff]
      %v2877 = vld [vmem:[#allocation3 + $0x28] sm:$0xff]
      %v2878 = vld [vmem:[#allocation3 + $0x30] sm:$0xff]
      %v2879 = vld [vmem:[#allocation3 + $0x38] sm:$0xff]
      %v2880 = vld [vmem:[#allocation3 + $0x40] sm:$0xff]
      %v2881 = vld [vmem:[#allocation3 + $0x48] sm:$0xff]
      %v2882 = vld [vmem:[#allocation3 + $0x50] sm:$0xff]
      %v2883 = vld [vmem:[#allocation3 + $0x58] sm:$0xff]
      %v2884 = vld [vmem:[#allocation3 + $0x60] sm:$0xff]
      %v2885 = vld [vmem:[#allocation3 + $0x68] sm:$0xff]
      %v2886 = vld [vmem:[#allocation3 + $0x70] sm:$0xff]
      %v2887 = vld [vmem:[#allocation3 + $0x78] sm:$0xff]
      %v2888 = vld [vmem:[#allocation3 + $0x80] sm:$0xff]
      %v2889 = vld [vmem:[#allocation3 + $0x88] sm:$0xff]
      %v2890 = vld [vmem:[#allocation3 + $0x90] sm:$0xff]
      %v2891 = vld [vmem:[#allocation3 + $0x98] sm:$0xff]
      %v2892 = vld [vmem:[#allocation3 + $0xa0] sm:$0xff]
      %v2893 = vld [vmem:[#allocation3 + $0xa8] sm:$0xff]
      %v2894 = vld [vmem:[#allocation3 + $0xb0] sm:$0xff]
      %v2895 = vld [vmem:[#allocation3 + $0xb8] sm:$0xff]
      %v2896 = vld [vmem:[#allocation3 + $0xc0] sm:$0xff]
      %v2897 = vld [vmem:[#allocation3 + $0xc8] sm:$0xff]
      %v2898 = vld [vmem:[#allocation3 + $0xd0] sm:$0xff]
      %v2899 = vld [vmem:[#allocation3 + $0xd8] sm:$0xff]
      %v2900 = vld [vmem:[#allocation3 + $0xe0] sm:$0xff]
      %v2901 = vld [vmem:[#allocation3 + $0xe8] sm:$0xff]
      %v2902 = vld [vmem:[#allocation3 + $0xf0] sm:$0xff]
      %v2903 = vld [vmem:[#allocation3 + $0xf8] sm:$0xff]
      %v2904 = vld [vmem:[#allocation3 + $0x100] sm:$0xff]
      %v2905 = vld [vmem:[#allocation3 + $0x108] sm:$0xff]
      %v2906 = vld [vmem:[#allocation3 + $0x110] sm:$0xff]
      %v2907 = vld [vmem:[#allocation3 + $0x118] sm:$0xff]
      %v2908 = vld [vmem:[#allocation2 + $0x10] sm:$0xfc]
      %v2909 = vld [vmem:[#allocation2 + $0x28] sm:$0xff]
      %v2910 = vld [vmem:[#allocation2 + $0x40] sm:$0xff]
      %v2911 = vld [vmem:[#allocation2 + $0x58] sm:$0xff]
      %v2912 = vld [vmem:[#allocation2 + $0x70] sm:$0xff]
      %v2913 = vld [vmem:[#allocation2 + $0x88] sm:$0xff]
      %v2914 = vld [vmem:[#allocation2 + $0xa0] sm:$0xff]
      %v2915 = vld [vmem:[#allocation2 + $0xb8] sm:$0xff]
      %v2916 = vld [vmem:[#allocation2 + $0xd0] sm:$0xff]
      %v2917 = vld [vmem:[#allocation2 + $0xe8] sm:$0xff]
      %v2918 = vld [vmem:[#allocation2 + $0x100] sm:$0xff]
      %v2919 = vld [vmem:[#allocation2 + $0x118] sm:$0xff]
      %v2920 = vld [vmem:[#allocation2 + $0x130] sm:$0xff]
      %v2921 = vld [vmem:[#allocation2 + $0x148] sm:$0xff]
      %v2922 = vld [vmem:[#allocation2 + $0x160] sm:$0xff]
      %v2923 = vld [vmem:[#allocation2 + $0x178] sm:$0xff]
      %v2924 = vld [vmem:[#allocation2 + $0x190] sm:$0xff]
      %v2925 = vld [vmem:[#allocation2 + $0x1a8] sm:$0xff]
      %v2926 = vld [vmem:[#allocation2 + $0x1c0] sm:$0xff]
      %v2927 = vld [vmem:[#allocation2 + $0x1d8] sm:$0xff]
      %v2928 = vld [vmem:[#allocation2 + $0x1f0] sm:$0xff]
      %v2929 = vld [vmem:[#allocation2 + $0x208] sm:$0xff]
      %v2930 = vld [vmem:[#allocation2 + $0x220] sm:$0xff]
      %v2931 = vld [vmem:[#allocation2 + $0x238] sm:$0xff]
      %v2932 = vld [vmem:[#allocation2 + $0x250] sm:$0xff]
      %v2933 = vld [vmem:[#allocation2 + $0x268] sm:$0xff]
      %v2934 = vld [vmem:[#allocation2 + $0x280] sm:$0xff]
      %v2935 = vld [vmem:[#allocation2 + $0x298] sm:$0xff]
      %v2936 = vld [vmem:[#allocation2 + $0x2b0] sm:$0xff]
      %v2937 = vld [vmem:[#allocation2 + $0x2c8] sm:$0xff]
      %v2938 = vld [vmem:[#allocation2 + $0x2e0] sm:$0xff]
      %v2939 = vld [vmem:[#allocation2 + $0x2f8] sm:$0xff]
      %v2940 = vld [vmem:[#allocation2 + $0x310] sm:$0xff]
      %v2941 = vld [vmem:[#allocation2 + $0x328] sm:$0xff]
      %v2942 = vld [vmem:[#allocation2 + $0x340] sm:$0xff]
      %v2943 = vld [vmem:[#allocation2 + $0x358] sm:$0xff]
      %v2944 = vld [vmem:[#allocation2 + $0x370] sm:$0x3]
      %v2982 = vrot.slane %v2908, 2
      %v2983 = vrot.slane %v2909, 2
      %v2984 = vsel %vm1486, %v2982, %v2983
      %v2985 = vrot.slane %v2910, 2
      %v2986 = vsel %vm1486, %v2983, %v2985
      %v2987 = vrot.slane %v2911, 2
      %v2988 = vsel %vm1486, %v2985, %v2987
      %v2989 = vrot.slane %v2912, 2
      %v2990 = vsel %vm1486, %v2987, %v2989
      %v2991 = vrot.slane %v2913, 2
      %v2992 = vsel %vm1486, %v2989, %v2991
      %v2993 = vrot.slane %v2914, 2
      %v2994 = vsel %vm1486, %v2991, %v2993
      %v2995 = vrot.slane %v2915, 2
      %v2996 = vsel %vm1486, %v2993, %v2995
      %v2997 = vrot.slane %v2916, 2
      %v2998 = vsel %vm1486, %v2995, %v2997
      %v2999 = vrot.slane %v2917, 2
      %v3000 = vsel %vm1486, %v2997, %v2999
      %v3001 = vrot.slane %v2918, 2
      %v3002 = vsel %vm1486, %v2999, %v3001
      %v3003 = vrot.slane %v2919, 2
      %v3004 = vsel %vm1486, %v3001, %v3003
      %v3005 = vrot.slane %v2920, 2
      %v3006 = vsel %vm1486, %v3003, %v3005
      %v3007 = vrot.slane %v2921, 2
      %v3008 = vsel %vm1486, %v3005, %v3007
      %v3009 = vrot.slane %v2922, 2
      %v3010 = vsel %vm1486, %v3007, %v3009
      %v3011 = vrot.slane %v2923, 2
      %v3012 = vsel %vm1486, %v3009, %v3011
      %v3013 = vrot.slane %v2924, 2
      %v3014 = vsel %vm1486, %v3011, %v3013
      %v3015 = vrot.slane %v2925, 2
      %v3016 = vsel %vm1486, %v3013, %v3015
      %v3017 = vrot.slane %v2926, 2
      %v3018 = vsel %vm1486, %v3015, %v3017
      %v3019 = vrot.slane %v2927, 2
      %v3020 = vsel %vm1486, %v3017, %v3019
      %v3021 = vrot.slane %v2928, 2
      %v3022 = vsel %vm1486, %v3019, %v3021
      %v3023 = vrot.slane %v2929, 2
      %v3024 = vsel %vm1486, %v3021, %v3023
      %v3025 = vrot.slane %v2930, 2
      %v3026 = vsel %vm1486, %v3023, %v3025
      %v3027 = vrot.slane %v2931, 2
      %v3028 = vsel %vm1486, %v3025, %v3027
      %v3029 = vrot.slane %v2932, 2
      %v3030 = vsel %vm1486, %v3027, %v3029
      %v3031 = vrot.slane %v2933, 2
      %v3032 = vsel %vm1486, %v3029, %v3031
      %v3033 = vrot.slane %v2934, 2
      %v3034 = vsel %vm1486, %v3031, %v3033
      %v3035 = vrot.slane %v2935, 2
      %v3036 = vsel %vm1486, %v3033, %v3035
      %v3037 = vrot.slane %v2936, 2
      %v3038 = vsel %vm1486, %v3035, %v3037
      %v3039 = vrot.slane %v2937, 2
      %v3040 = vsel %vm1486, %v3037, %v3039
      %v3041 = vrot.slane %v2938, 2
      %v3042 = vsel %vm1486, %v3039, %v3041
      %v3043 = vrot.slane %v2939, 2
      %v3044 = vsel %vm1486, %v3041, %v3043
      %v3045 = vrot.slane %v2940, 2
      %v3046 = vsel %vm1486, %v3043, %v3045
      %v3047 = vrot.slane %v2941, 2
      %v3048 = vsel %vm1486, %v3045, %v3047
      %v3049 = vrot.slane %v2942, 2
      %v3050 = vsel %vm1486, %v3047, %v3049
      %v3051 = vrot.slane %v2943, 2
      %v3052 = vsel %vm1486, %v3049, %v3051
      %v3053 = vrot.slane %v2944, 2
      %v3054 = vsel %vm1486, %v3051, %v3053
      %v3091 = vadd.f32 %v2872, %v2984
      %v3092 = vadd.f32 %v2873, %v2986
      %v3093 = vadd.f32 %v2874, %v2988
      %v3094 = vadd.f32 %v2875, %v2990
      %v3095 = vadd.f32 %v2876, %v2992
      %v3096 = vadd.f32 %v2877, %v2994
      %v3097 = vadd.f32 %v2878, %v2996
      %v3098 = vadd.f32 %v2879, %v2998
      %v3099 = vadd.f32 %v2880, %v3000
      %v3100 = vadd.f32 %v2881, %v3002
      %v3101 = vadd.f32 %v2882, %v3004
      %v3102 = vadd.f32 %v2883, %v3006
      %v3103 = vadd.f32 %v2884, %v3008
      %v3104 = vadd.f32 %v2885, %v3010
      %v3105 = vadd.f32 %v2886, %v3012
      %v3106 = vadd.f32 %v2887, %v3014
      %v3107 = vadd.f32 %v2888, %v3016
      %v3108 = vadd.f32 %v2889, %v3018
      %v3109 = vadd.f32 %v2890, %v3020
      %v3110 = vadd.f32 %v2891, %v3022
      %v3111 = vadd.f32 %v2892, %v3024
      %v3112 = vadd.f32 %v2893, %v3026
      %v3113 = vadd.f32 %v2894, %v3028
      %v3114 = vadd.f32 %v2895, %v3030
      %v3115 = vadd.f32 %v2896, %v3032
      %v3116 = vadd.f32 %v2897, %v3034
      %v3117 = vadd.f32 %v2898, %v3036
      %v3118 = vadd.f32 %v2899, %v3038
      %v3119 = vadd.f32 %v2900, %v3040
      %v3120 = vadd.f32 %v2901, %v3042
      %v3121 = vadd.f32 %v2902, %v3044
      %v3122 = vadd.f32 %v2903, %v3046
      %v3123 = vadd.f32 %v2904, %v3048
      %v3124 = vadd.f32 %v2905, %v3050
      %v3125 = vadd.f32 %v2906, %v3052
      %v3126 = vadd.f32 %v2907, %v3054
      %3127 = vst [vmem:[#allocation3] sm:$0xff] %v3091
      %3128 = vst [vmem:[#allocation3 + $0x8] sm:$0xff] %v3092
      %3129 = vst [vmem:[#allocation3 + $0x10] sm:$0xff] %v3093
      %3130 = vst [vmem:[#allocation3 + $0x18] sm:$0xff] %v3094
      %3131 = vst [vmem:[#allocation3 + $0x20] sm:$0xff] %v3095
      %3132 = vst [vmem:[#allocation3 + $0x28] sm:$0xff] %v3096
      %3133 = vst [vmem:[#allocation3 + $0x30] sm:$0xff] %v3097
      %3134 = vst [vmem:[#allocation3 + $0x38] sm:$0xff] %v3098
      %3135 = vst [vmem:[#allocation3 + $0x40] sm:$0xff] %v3099
      %3136 = vst [vmem:[#allocation3 + $0x48] sm:$0xff] %v3100
      %3137 = vst [vmem:[#allocation3 + $0x50] sm:$0xff] %v3101
      %3138 = vst [vmem:[#allocation3 + $0x58] sm:$0xff] %v3102
      %3139 = vst [vmem:[#allocation3 + $0x60] sm:$0xff] %v3103
      %3140 = vst [vmem:[#allocation3 + $0x68] sm:$0xff] %v3104
      %3141 = vst [vmem:[#allocation3 + $0x70] sm:$0xff] %v3105
      %3142 = vst [vmem:[#allocation3 + $0x78] sm:$0xff] %v3106
      %3143 = vst [vmem:[#allocation3 + $0x80] sm:$0xff] %v3107
      %3144 = vst [vmem:[#allocation3 + $0x88] sm:$0xff] %v3108
      %3145 = vst [vmem:[#allocation3 + $0x90] sm:$0xff] %v3109
      %3146 = vst [vmem:[#allocation3 + $0x98] sm:$0xff] %v3110
      %3147 = vst [vmem:[#allocation3 + $0xa0] sm:$0xff] %v3111
      %3148 = vst [vmem:[#allocation3 + $0xa8] sm:$0xff] %v3112
      %3149 = vst [vmem:[#allocation3 + $0xb0] sm:$0xff] %v3113
      %3150 = vst [vmem:[#allocation3 + $0xb8] sm:$0xff] %v3114
      %3151 = vst [vmem:[#allocation3 + $0xc0] sm:$0xff] %v3115
      %3152 = vst [vmem:[#allocation3 + $0xc8] sm:$0xff] %v3116
      %3153 = vst [vmem:[#allocation3 + $0xd0] sm:$0xff] %v3117
      %3154 = vst [vmem:[#allocation3 + $0xd8] sm:$0xff] %v3118
      %3155 = vst [vmem:[#allocation3 + $0xe0] sm:$0xff] %v3119
      %3156 = vst [vmem:[#allocation3 + $0xe8] sm:$0xff] %v3120
      %3157 = vst [vmem:[#allocation3 + $0xf0] sm:$0xff] %v3121
      %3158 = vst [vmem:[#allocation3 + $0xf8] sm:$0xff] %v3122
      %3159 = vst [vmem:[#allocation3 + $0x100] sm:$0xff] %v3123
      %3160 = vst [vmem:[#allocation3 + $0x108] sm:$0xff] %v3124
      %3161 = vst [vmem:[#allocation3 + $0x110] sm:$0xff] %v3125
      %3162 = vst [vmem:[#allocation3 + $0x118] sm:$0xff] %v3126
      %v3163 = vld [vmem:[%s165 + $0x10] sm:$0xc]
      %v3164 = vld [vmem:[%s165 + $0x14] sm:$0xf]
      %v3165 = vld [vmem:[%s165 + $0x18] sm:$0xf]
      %v3166 = vld [vmem:[%s165 + $0x1c] sm:$0xf]
      %v3167 = vld [vmem:[%s165 + $0x20] sm:$0xf]
      %v3168 = vld [vmem:[%s165 + $0x24] sm:$0xf]
      %v3169 = vld [vmem:[%s165 + $0x28] sm:$0xf]
      %v3170 = vld [vmem:[%s165 + $0x2c] sm:$0xf]
      %v3171 = vld [vmem:[%s165 + $0x30] sm:$0xf]
      %v3172 = vld [vmem:[%s165 + $0x34] sm:$0xf]
      %v3173 = vld [vmem:[%s165 + $0x38] sm:$0xf]
      %v3174 = vld [vmem:[%s165 + $0x3c] sm:$0xf]
      %v3175 = vld [vmem:[%s165 + $0x40] sm:$0xf]
      %v3176 = vld [vmem:[%s165 + $0x44] sm:$0xf]
      %v3177 = vld [vmem:[%s165 + $0x48] sm:$0xf]
      %v3178 = vld [vmem:[%s165 + $0x4c] sm:$0xf]
      %v3179 = vld [vmem:[%s165 + $0x50] sm:$0xf]
      %v3180 = vld [vmem:[%s165 + $0x54] sm:$0xf]
      %v3181 = vld [vmem:[%s165 + $0x58] sm:$0xf]
      %v3182 = vld [vmem:[%s165 + $0x5c] sm:$0xf]
      %v3183 = vld [vmem:[%s165 + $0x60] sm:$0xf]
      %v3184 = vld [vmem:[%s165 + $0x64] sm:$0xf]
      %v3185 = vld [vmem:[%s165 + $0x68] sm:$0xf]
      %v3186 = vld [vmem:[%s165 + $0x6c] sm:$0xf]
      %v3187 = vld [vmem:[%s165 + $0x70] sm:$0xf]
      %v3188 = vld [vmem:[%s165 + $0x74] sm:$0xf]
      %v3189 = vld [vmem:[%s165 + $0x78] sm:$0xf]
      %v3190 = vld [vmem:[%s165 + $0x7c] sm:$0xf]
      %v3191 = vld [vmem:[%s165 + $0x80] sm:$0xf]
      %v3192 = vld [vmem:[%s165 + $0x84] sm:$0xf]
      %v3193 = vld [vmem:[%s165 + $0x88] sm:$0xf]
      %v3194 = vld [vmem:[%s165 + $0x8c] sm:$0xf]
      %v3195 = vld [vmem:[%s165 + $0x90] sm:$0xf]
      %v3196 = vld [vmem:[%s165 + $0x94] sm:$0xf]
      %v3197 = vld [vmem:[%s165 + $0x98] sm:$0xf]
      %v3198 = vld [vmem:[%s165 + $0x9c] sm:$0xf]
      %v3199 = vld [vmem:[%s165 + $0xa0] sm:$0x7]
      %s3200 = scalar_lea.vmem %s1, 12
      %v3201 = vld [vmem:[%s3200] sm:$0x3f]
      %v3239 = vunpack.c.l.b16 %v3163
      %v3240 = vunpack.c.l.b16 %v3164
      %v3241 = vunpack.c.l.b16 %v3165
      %v3242 = vunpack.c.l.b16 %v3166
      %v3243 = vunpack.c.l.b16 %v3167
      %v3244 = vunpack.c.l.b16 %v3168
      %v3245 = vunpack.c.l.b16 %v3169
      %v3246 = vunpack.c.l.b16 %v3170
      %v3247 = vunpack.c.l.b16 %v3171
      %v3248 = vunpack.c.l.b16 %v3172
      %v3249 = vunpack.c.l.b16 %v3173
      %v3250 = vunpack.c.l.b16 %v3174
      %v3251 = vunpack.c.l.b16 %v3175
      %v3252 = vunpack.c.l.b16 %v3176
      %v3253 = vunpack.c.l.b16 %v3177
      %v3254 = vunpack.c.l.b16 %v3178
      %v3255 = vunpack.c.l.b16 %v3179
      %v3256 = vunpack.c.l.b16 %v3180
      %v3257 = vunpack.c.l.b16 %v3181
      %v3258 = vunpack.c.l.b16 %v3182
      %v3259 = vunpack.c.l.b16 %v3183
      %v3260 = vunpack.c.l.b16 %v3184
      %v3261 = vunpack.c.l.b16 %v3185
      %v3262 = vunpack.c.l.b16 %v3186
      %v3263 = vunpack.c.l.b16 %v3187
      %v3264 = vunpack.c.l.b16 %v3188
      %v3265 = vunpack.c.l.b16 %v3189
      %v3266 = vunpack.c.l.b16 %v3190
      %v3267 = vunpack.c.l.b16 %v3191
      %v3268 = vunpack.c.l.b16 %v3192
      %v3269 = vunpack.c.l.b16 %v3193
      %v3270 = vunpack.c.l.b16 %v3194
      %v3271 = vunpack.c.l.b16 %v3195
      %v3272 = vunpack.c.l.b16 %v3196
      %v3273 = vunpack.c.l.b16 %v3197
      %v3274 = vunpack.c.l.b16 %v3198
      %v3275 = vunpack.c.l.b16 %v3199
      %v3276 = vpack.c.b16 %v3240, %v3239
      %v3277 = vpack.c.b16 %v3242, %v3241
      %v3278 = vpack.c.b16 %v3244, %v3243
      %v3279 = vpack.c.b16 %v3246, %v3245
      %v3280 = vpack.c.b16 %v3248, %v3247
      %v3281 = vpack.c.b16 %v3250, %v3249
      %v3282 = vpack.c.b16 %v3252, %v3251
      %v3283 = vpack.c.b16 %v3254, %v3253
      %v3284 = vpack.c.b16 %v3256, %v3255
      %v3285 = vpack.c.b16 %v3258, %v3257
      %v3286 = vpack.c.b16 %v3260, %v3259
      %v3287 = vpack.c.b16 %v3262, %v3261
      %v3288 = vpack.c.b16 %v3264, %v3263
      %v3289 = vpack.c.b16 %v3266, %v3265
      %v3290 = vpack.c.b16 %v3268, %v3267
      %v3291 = vpack.c.b16 %v3270, %v3269
      %v3292 = vpack.c.b16 %v3272, %v3271
      %v3293 = vpack.c.b16 %v3274, %v3273
      %v3294 = vpack.c.b16 %v3275, %v3275
      %vm3295 = vcmask 1045504
      %v3296 = vrot.slane %v3276, 2
      %v3297 = vrot.slane %v3277, 2
      %v3298 = vsel %vm3295, %v3296, %v3297
      %v3299 = vrot.slane %v3278, 2
      %v3300 = vsel %vm3295, %v3297, %v3299
      %v3301 = vrot.slane %v3279, 2
      %v3302 = vsel %vm3295, %v3299, %v3301
      %v3303 = vrot.slane %v3280, 2
      %v3304 = vsel %vm3295, %v3301, %v3303
      %v3305 = vrot.slane %v3281, 2
      %v3306 = vsel %vm3295, %v3303, %v3305
      %v3307 = vrot.slane %v3282, 2
      %v3308 = vsel %vm3295, %v3305, %v3307
      %v3309 = vrot.slane %v3283, 2
      %v3310 = vsel %vm3295, %v3307, %v3309
      %v3311 = vrot.slane %v3284, 2
      %v3312 = vsel %vm3295, %v3309, %v3311
      %v3313 = vrot.slane %v3285, 2
      %v3314 = vsel %vm3295, %v3311, %v3313
      %v3315 = vrot.slane %v3286, 2
      %v3316 = vsel %vm3295, %v3313, %v3315
      %v3317 = vrot.slane %v3287, 2
      %v3318 = vsel %vm3295, %v3315, %v3317
      %v3319 = vrot.slane %v3288, 2
      %v3320 = vsel %vm3295, %v3317, %v3319
      %v3321 = vrot.slane %v3289, 2
      %v3322 = vsel %vm3295, %v3319, %v3321
      %v3323 = vrot.slane %v3290, 2
      %v3324 = vsel %vm3295, %v3321, %v3323
      %v3325 = vrot.slane %v3291, 2
      %v3326 = vsel %vm3295, %v3323, %v3325
      %v3327 = vrot.slane %v3292, 2
      %v3328 = vsel %vm3295, %v3325, %v3327
      %v3329 = vrot.slane %v3293, 2
      %v3330 = vsel %vm3295, %v3327, %v3329
      %v3331 = vrot.slane %v3294, 2
      %v3332 = vsel %vm3295, %v3329, %v3331
      %v3334 = vcombine.high %v3201, %v3201
      %v3336 = vunpack.c.l.s4 1983009808
      %v3337 = vunpack.c.0.s8 %v3336
      %v3338 = vlaneseq
      %v3339 = vshrl.u32 %v3338, 7
      %v3340 = vsub.s32 %v3337, %v3339
      %v3341 = vrot.slane %v3201, %v3340
      %v3343 = vunpack.c.l.s4 1983009808
      %v3344 = vunpack.c.0.s8 %v3343
      %v3345 = vlaneseq
      %v3346 = vshrl.u32 %v3345, 7
      %v3347 = vsub.s32 %v3344, %v3346
      %v3348 = vrot.slane %v3334, %v3347
      %v3349 = vcombine.high %v3341, %v3341
      %v3351 = vsel %vm356, %v3298, 0
      %v3354 = vsel %vm356, %v3300, 0
      %v3357 = vsel %vm356, %v3302, 0
      %v3360 = vsel %vm356, %v3304, 0
      %v3363 = vsel %vm356, %v3306, 0
      %v3366 = vsel %vm356, %v3308, 0
      %v3369 = vsel %vm356, %v3310, 0
      %v3372 = vsel %vm356, %v3312, 0
      %v3375 = vsel %vm356, %v3314, 0
      %v3378 = vsel %vm356, %v3316, 0
      %v3381 = vsel %vm356, %v3318, 0
      %v3384 = vsel %vm356, %v3320, 0
      %v3387 = vsel %vm356, %v3322, 0
      %v3390 = vsel %vm356, %v3324, 0
      %v3393 = vsel %vm356, %v3326, 0
      %v3396 = vsel %vm356, %v3328, 0
      %v3399 = vsel %vm356, %v3330, 0
      %v3402 = vsel %vm356, %v3332, 0
      %v3405 = vsel %vm356, %v3331, 0
      %v3408 = vsel %vm414, %v3341, 0
      %v3411 = vsel %vm414, %v3349, 0
      %v3414 = vsel %vm414, %v3348, 0
      %3416 = vmatprep.subr.bf16.mxu0 %v3411
      %3417 = vmatpush1.bf16.msra.mxu0 %v3408
      %3418 = vmatprep.subr.bf16.mxu0 0
      %3419 = vmatpush1.bf16.msra.mxu0 0
      %3420 = vmatprep.subr.bf16.mxu0 0
      %3421 = vmatpush1.bf16.msra.mxu0 0
      %3422 = vmatprep.subr.bf16.mxu0 0
      %3423 = vmatpush1.bf16.msra.mxu0 0
      %3424 = vmatprep.subr.bf16.mxu0 0
      %3425 = vmatpush1.bf16.msra.mxu0 0
      %3426 = vmatprep.subr.bf16.mxu0 0
      %3427 = vmatpush1.bf16.msra.mxu0 0
      %3428 = vmatprep.subr.bf16.mxu0 0
      %3429 = vmatpush1.bf16.msra.mxu0 0
      %3430 = vmatprep.subr.bf16.mxu0 0
      %3431 = vmatpush1.bf16.msra.mxu0 0
      %3432 = vmatprep.subr.bf16.mxu0 0
      %3433 = vmatpush1.bf16.msra.mxu0 0
      %3434 = vmatprep.subr.bf16.mxu0 0
      %3435 = vmatpush1.bf16.msra.mxu0 0
      %3436 = vmatprep.subr.bf16.mxu0 0
      %3437 = vmatpush1.bf16.msra.mxu0 0
      %3438 = vmatprep.subr.bf16.mxu0 0
      %3439 = vmatpush1.bf16.msra.mxu0 0
      %3440 = vmatprep.subr.bf16.mxu0 0
      %3441 = vmatpush1.bf16.msra.mxu0 0
      %3442 = vmatprep.subr.bf16.mxu0 0
      %3443 = vmatpush1.bf16.msra.mxu0 0
      %3444 = vmatprep.subr.bf16.mxu0 0
      %3445 = vmatpush1.bf16.msra.mxu0 0
      %3446 = vmatprep.subr.bf16.mxu0 0
      %3447 = vmatpush1.bf16.msra.mxu0 0
      %3448 = vmatprep.mubr.bf16.mxu0 0
      %3449 = vmatmul.mubr.bf16.gmra.mrb[0].mxu0 %v3351
      %v3450 = vpop.f32.mrb[0].mxu0
      %v3451 = vadd.f32 0.0, %v3450
      %v3452 = vpop.f32.mrb[0].mxu0
      %v3453 = vadd.f32 0.0, %v3452
      %v3454 = vpop.f32.mrb[0].mxu0
      %v3455 = vadd.f32 0.0, %v3454
      %v3456 = vpop.f32.mrb[0].mxu0
      %v3457 = vadd.f32 0.0, %v3456
      %3458 = vmatprep.mubr.bf16.mxu0 0
      %3459 = vmatmul.mubr.bf16.gmra.mrb[0].mxu0 %v3354
      %v3460 = vpop.f32.mrb[0].mxu0
      %v3461 = vadd.f32 0.0, %v3460
      %v3462 = vpop.f32.mrb[0].mxu0
      %v3463 = vadd.f32 0.0, %v3462
      %v3464 = vpop.f32.mrb[0].mxu0
      %v3465 = vadd.f32 0.0, %v3464
      %v3466 = vpop.f32.mrb[0].mxu0
      %v3467 = vadd.f32 0.0, %v3466
      %3468 = vmatprep.mubr.bf16.mxu0 0
      %3469 = vmatmul.mubr.bf16.gmra.mrb[0].mxu0 %v3357
      %v3470 = vpop.f32.mrb[0].mxu0
      %v3471 = vadd.f32 0.0, %v3470
      %v3472 = vpop.f32.mrb[0].mxu0
      %v3473 = vadd.f32 0.0, %v3472
      %v3474 = vpop.f32.mrb[0].mxu0
      %v3475 = vadd.f32 0.0, %v3474
      %v3476 = vpop.f32.mrb[0].mxu0
      %v3477 = vadd.f32 0.0, %v3476
      %3478 = vmatprep.mubr.bf16.mxu0 0
      %3479 = vmatmul.mubr.bf16.gmra.mrb[0].mxu0 %v3360
      %v3480 = vpop.f32.mrb[0].mxu0
      %v3481 = vadd.f32 0.0, %v3480
      %v3482 = vpop.f32.mrb[0].mxu0
      %v3483 = vadd.f32 0.0, %v3482
      %v3484 = vpop.f32.mrb[0].mxu0
      %v3485 = vadd.f32 0.0, %v3484
      %v3486 = vpop.f32.mrb[0].mxu0
      %v3487 = vadd.f32 0.0, %v3486
      %3488 = vmatprep.mubr.bf16.mxu0 0
      %3489 = vmatmul.mubr.bf16.gmra.mrb[0].mxu0 %v3363
      %v3490 = vpop.f32.mrb[0].mxu0
      %v3491 = vadd.f32 0.0, %v3490
      %v3492 = vpop.f32.mrb[0].mxu0
      %v3493 = vadd.f32 0.0, %v3492
      %v3494 = vpop.f32.mrb[0].mxu0
      %v3495 = vadd.f32 0.0, %v3494
      %v3496 = vpop.f32.mrb[0].mxu0
      %v3497 = vadd.f32 0.0, %v3496
      %3498 = vmatprep.mubr.bf16.mxu0 0
      %3499 = vmatmul.mubr.bf16.gmra.mrb[0].mxu0 %v3366
      %v3500 = vpop.f32.mrb[0].mxu0
      %v3501 = vadd.f32 0.0, %v3500
      %v3502 = vpop.f32.mrb[0].mxu0
      %v3503 = vadd.f32 0.0, %v3502
      %v3504 = vpop.f32.mrb[0].mxu0
      %v3505 = vadd.f32 0.0, %v3504
      %v3506 = vpop.f32.mrb[0].mxu0
      %v3507 = vadd.f32 0.0, %v3506
      %3508 = vmatprep.mubr.bf16.mxu0 0
      %3509 = vmatmul.mubr.bf16.gmra.mrb[0].mxu0 %v3369
      %v3510 = vpop.f32.mrb[0].mxu0
      %v3511 = vadd.f32 0.0, %v3510
      %v3512 = vpop.f32.mrb[0].mxu0
      %v3513 = vadd.f32 0.0, %v3512
      %v3514 = vpop.f32.mrb[0].mxu0
      %v3515 = vadd.f32 0.0, %v3514
      %v3516 = vpop.f32.mrb[0].mxu0
      %v3517 = vadd.f32 0.0, %v3516
      %3518 = vmatprep.mubr.bf16.mxu0 0
      %3519 = vmatmul.mubr.bf16.gmra.mrb[0].mxu0 %v3372
      %v3520 = vpop.f32.mrb[0].mxu0
      %v3521 = vadd.f32 0.0, %v3520
      %v3522 = vpop.f32.mrb[0].mxu0
      %v3523 = vadd.f32 0.0, %v3522
      %v3524 = vpop.f32.mrb[0].mxu0
      %v3525 = vadd.f32 0.0, %v3524
      %v3526 = vpop.f32.mrb[0].mxu0
      %v3527 = vadd.f32 0.0, %v3526
      %3528 = vmatprep.mubr.bf16.mxu0 0
      %3529 = vmatmul.mubr.bf16.gmra.mrb[0].mxu0 %v3375
      %v3530 = vpop.f32.mrb[0].mxu0
      %v3531 = vadd.f32 0.0, %v3530
      %v3532 = vpop.f32.mrb[0].mxu0
      %v3533 = vadd.f32 0.0, %v3532
      %v3534 = vpop.f32.mrb[0].mxu0
      %v3535 = vadd.f32 0.0, %v3534
      %v3536 = vpop.f32.mrb[0].mxu0
      %v3537 = vadd.f32 0.0, %v3536
      %3538 = vmatprep.mubr.bf16.mxu0 0
      %3539 = vmatmul.mubr.bf16.gmra.mrb[0].mxu0 %v3378
      %v3540 = vpop.f32.mrb[0].mxu0
      %v3541 = vadd.f32 0.0, %v3540
      %v3542 = vpop.f32.mrb[0].mxu0
      %v3543 = vadd.f32 0.0, %v3542
      %v3544 = vpop.f32.mrb[0].mxu0
      %v3545 = vadd.f32 0.0, %v3544
      %v3546 = vpop.f32.mrb[0].mxu0
      %v3547 = vadd.f32 0.0, %v3546
      %3548 = vmatprep.mubr.bf16.mxu0 0
      %3549 = vmatmul.mubr.bf16.gmra.mrb[0].mxu0 %v3381
      %v3550 = vpop.f32.mrb[0].mxu0
      %v3551 = vadd.f32 0.0, %v3550
      %v3552 = vpop.f32.mrb[0].mxu0
      %v3553 = vadd.f32 0.0, %v3552
      %v3554 = vpop.f32.mrb[0].mxu0
      %v3555 = vadd.f32 0.0, %v3554
      %v3556 = vpop.f32.mrb[0].mxu0
      %v3557 = vadd.f32 0.0, %v3556
      %3558 = vmatprep.mubr.bf16.mxu0 0
      %3559 = vmatmul.mubr.bf16.gmra.mrb[0].mxu0 %v3384
      %v3560 = vpop.f32.mrb[0].mxu0
      %v3561 = vadd.f32 0.0, %v3560
      %v3562 = vpop.f32.mrb[0].mxu0
      %v3563 = vadd.f32 0.0, %v3562
      %v3564 = vpop.f32.mrb[0].mxu0
      %v3565 = vadd.f32 0.0, %v3564
      %v3566 = vpop.f32.mrb[0].mxu0
      %v3567 = vadd.f32 0.0, %v3566
      %3568 = vmatprep.mubr.bf16.mxu0 0
      %3569 = vmatmul.mubr.bf16.gmra.mrb[0].mxu0 %v3387
      %v3570 = vpop.f32.mrb[0].mxu0
      %v3571 = vadd.f32 0.0, %v3570
      %v3572 = vpop.f32.mrb[0].mxu0
      %v3573 = vadd.f32 0.0, %v3572
      %v3574 = vpop.f32.mrb[0].mxu0
      %v3575 = vadd.f32 0.0, %v3574
      %v3576 = vpop.f32.mrb[0].mxu0
      %v3577 = vadd.f32 0.0, %v3576
      %3578 = vmatprep.mubr.bf16.mxu0 0
      %3579 = vmatmul.mubr.bf16.gmra.mrb[0].mxu0 %v3390
      %v3580 = vpop.f32.mrb[0].mxu0
      %v3581 = vadd.f32 0.0, %v3580
      %v3582 = vpop.f32.mrb[0].mxu0
      %v3583 = vadd.f32 0.0, %v3582
      %v3584 = vpop.f32.mrb[0].mxu0
      %v3585 = vadd.f32 0.0, %v3584
      %v3586 = vpop.f32.mrb[0].mxu0
      %v3587 = vadd.f32 0.0, %v3586
      %3588 = vmatprep.mubr.bf16.mxu0 0
      %3589 = vmatmul.mubr.bf16.gmra.mrb[0].mxu0 %v3393
      %v3590 = vpop.f32.mrb[0].mxu0
      %v3591 = vadd.f32 0.0, %v3590
      %v3592 = vpop.f32.mrb[0].mxu0
      %v3593 = vadd.f32 0.0, %v3592
      %v3594 = vpop.f32.mrb[0].mxu0
      %v3595 = vadd.f32 0.0, %v3594
      %v3596 = vpop.f32.mrb[0].mxu0
      %v3597 = vadd.f32 0.0, %v3596
      %3598 = vmatprep.mubr.bf16.mxu0 0
      %3599 = vmatmul.mubr.bf16.gmra.mrb[0].mxu0 %v3396
      %v3600 = vpop.f32.mrb[0].mxu0
      %v3601 = vadd.f32 0.0, %v3600
      %v3602 = vpop.f32.mrb[0].mxu0
      %v3603 = vadd.f32 0.0, %v3602
      %v3604 = vpop.f32.mrb[0].mxu0
      %v3605 = vadd.f32 0.0, %v3604
      %v3606 = vpop.f32.mrb[0].mxu0
      %v3607 = vadd.f32 0.0, %v3606
      %3608 = vmatprep.mubr.bf16.mxu0 0
      %3609 = vmatmul.mubr.bf16.gmra.mrb[0].mxu0 %v3399
      %v3610 = vpop.f32.mrb[0].mxu0
      %v3611 = vadd.f32 0.0, %v3610
      %v3612 = vpop.f32.mrb[0].mxu0
      %v3613 = vadd.f32 0.0, %v3612
      %v3614 = vpop.f32.mrb[0].mxu0
      %v3615 = vadd.f32 0.0, %v3614
      %v3616 = vpop.f32.mrb[0].mxu0
      %v3617 = vadd.f32 0.0, %v3616
      %3618 = vmatprep.mubr.bf16.mxu0 0
      %3619 = vmatmul.mubr.bf16.gmra.mrb[0].mxu0 %v3402
      %v3620 = vpop.f32.mrb[0].mxu0
      %v3621 = vadd.f32 0.0, %v3620
      %v3622 = vpop.f32.mrb[0].mxu0
      %v3623 = vadd.f32 0.0, %v3622
      %v3624 = vpop.f32.mrb[0].mxu0
      %v3625 = vadd.f32 0.0, %v3624
      %v3626 = vpop.f32.mrb[0].mxu0
      %v3627 = vadd.f32 0.0, %v3626
      %3628 = vmatprep.mubr.bf16.mxu0 0
      %3629 = vmatmul.mubr.bf16.gmra.mrb[0].mxu0 %v3405
      %v3630 = vpop.f32.mrb[0].mxu0
      %v3631 = vadd.f32 0.0, %v3630
      %v3632 = vpop.f32.mrb[0].mxu0
      %v3633 = vadd.f32 0.0, %v3632
      %v3634 = vpop.f32.mrb[0].mxu0
      %v3635 = vpop.f32.mrb[0].mxu0
      %3636 = vdwg.mxu0
      %3637 = vmatprep.subr.bf16.mxu0 0
      %3638 = vmatpush1.bf16.msra.mxu0 %v3414
      %3639 = vmatprep.subr.bf16.mxu0 0
      %3640 = vmatpush1.bf16.msra.mxu0 0
      %3641 = vmatprep.subr.bf16.mxu0 0
      %3642 = vmatpush1.bf16.msra.mxu0 0
      %3643 = vmatprep.subr.bf16.mxu0 0
      %3644 = vmatpush1.bf16.msra.mxu0 0
      %3645 = vmatprep.subr.bf16.mxu0 0
      %3646 = vmatpush1.bf16.msra.mxu0 0
      %3647 = vmatprep.subr.bf16.mxu0 0
      %3648 = vmatpush1.bf16.msra.mxu0 0
      %3649 = vmatprep.subr.bf16.mxu0 0
      %3650 = vmatpush1.bf16.msra.mxu0 0
      %3651 = vmatprep.subr.bf16.mxu0 0
      %3652 = vmatpush1.bf16.msra.mxu0 0
      %3653 = vmatprep.subr.bf16.mxu0 0
      %3654 = vmatpush1.bf16.msra.mxu0 0
      %3655 = vmatprep.subr.bf16.mxu0 0
      %3656 = vmatpush1.bf16.msra.mxu0 0
      %3657 = vmatprep.subr.bf16.mxu0 0
      %3658 = vmatpush1.bf16.msra.mxu0 0
      %3659 = vmatprep.subr.bf16.mxu0 0
      %3660 = vmatpush1.bf16.msra.mxu0 0
      %3661 = vmatprep.subr.bf16.mxu0 0
      %3662 = vmatpush1.bf16.msra.mxu0 0
      %3663 = vmatprep.subr.bf16.mxu0 0
      %3664 = vmatpush1.bf16.msra.mxu0 0
      %3665 = vmatprep.subr.bf16.mxu0 0
      %3666 = vmatpush1.bf16.msra.mxu0 0
      %3667 = vmatprep.subr.bf16.mxu0 0
      %3668 = vmatpush1.bf16.msra.mxu0 0
      %3669 = vmatprep.mubr.bf16.mxu0 0
      %3670 = vmatmul.mubr.bf16.gmra.mrb[0].mxu0 %v3351
      %v3671 = vpop.f32.mrb[0].mxu0
      %v3672 = vadd.f32 0.0, %v3671
      %v3673 = vpop.f32.mrb[0].mxu0
      %v3674 = vpop.f32.mrb[0].mxu0
      %v3675 = vadd.f32 0.0, %v3674
      %v3676 = vpop.f32.mrb[0].mxu0
      %3677 = vmatprep.mubr.bf16.mxu0 0
      %3678 = vmatmul.mubr.bf16.gmra.mrb[0].mxu0 %v3354
      %v3679 = vpop.f32.mrb[0].mxu0
      %v3680 = vadd.f32 0.0, %v3679
      %v3681 = vpop.f32.mrb[0].mxu0
      %v3682 = vpop.f32.mrb[0].mxu0
      %v3683 = vadd.f32 0.0, %v3682
      %v3684 = vpop.f32.mrb[0].mxu0
      %3685 = vmatprep.mubr.bf16.mxu0 0
      %3686 = vmatmul.mubr.bf16.gmra.mrb[0].mxu0 %v3357
      %v3687 = vpop.f32.mrb[0].mxu0
      %v3688 = vadd.f32 0.0, %v3687
      %v3689 = vpop.f32.mrb[0].mxu0
      %v3690 = vpop.f32.mrb[0].mxu0
      %v3691 = vadd.f32 0.0, %v3690
      %v3692 = vpop.f32.mrb[0].mxu0
      %3693 = vmatprep.mubr.bf16.mxu0 0
      %3694 = vmatmul.mubr.bf16.gmra.mrb[0].mxu0 %v3360
      %v3695 = vpop.f32.mrb[0].mxu0
      %v3696 = vadd.f32 0.0, %v3695
      %v3697 = vpop.f32.mrb[0].mxu0
      %v3698 = vpop.f32.mrb[0].mxu0
      %v3699 = vadd.f32 0.0, %v3698
      %v3700 = vpop.f32.mrb[0].mxu0
      %3701 = vmatprep.mubr.bf16.mxu0 0
      %3702 = vmatmul.mubr.bf16.gmra.mrb[0].mxu0 %v3363
      %v3703 = vpop.f32.mrb[0].mxu0
      %v3704 = vadd.f32 0.0, %v3703
      %v3705 = vpop.f32.mrb[0].mxu0
      %v3706 = vpop.f32.mrb[0].mxu0
      %v3707 = vadd.f32 0.0, %v3706
      %v3708 = vpop.f32.mrb[0].mxu0
      %3709 = vmatprep.mubr.bf16.mxu0 0
      %3710 = vmatmul.mubr.bf16.gmra.mrb[0].mxu0 %v3366
      %v3711 = vpop.f32.mrb[0].mxu0
      %v3712 = vadd.f32 0.0, %v3711
      %v3713 = vpop.f32.mrb[0].mxu0
      %v3714 = vpop.f32.mrb[0].mxu0
      %v3715 = vadd.f32 0.0, %v3714
      %v3716 = vpop.f32.mrb[0].mxu0
      %3717 = vmatprep.mubr.bf16.mxu0 0
      %3718 = vmatmul.mubr.bf16.gmra.mrb[0].mxu0 %v3369
      %v3719 = vpop.f32.mrb[0].mxu0
      %v3720 = vadd.f32 0.0, %v3719
      %v3721 = vpop.f32.mrb[0].mxu0
      %v3722 = vpop.f32.mrb[0].mxu0
      %v3723 = vadd.f32 0.0, %v3722
      %v3724 = vpop.f32.mrb[0].mxu0
      %3725 = vmatprep.mubr.bf16.mxu0 0
      %3726 = vmatmul.mubr.bf16.gmra.mrb[0].mxu0 %v3372
      %v3727 = vpop.f32.mrb[0].mxu0
      %v3728 = vadd.f32 0.0, %v3727
      %v3729 = vpop.f32.mrb[0].mxu0
      %v3730 = vpop.f32.mrb[0].mxu0
      %v3731 = vadd.f32 0.0, %v3730
      %v3732 = vpop.f32.mrb[0].mxu0
      %3733 = vmatprep.mubr.bf16.mxu0 0
      %3734 = vmatmul.mubr.bf16.gmra.mrb[0].mxu0 %v3375
      %v3735 = vpop.f32.mrb[0].mxu0
      %v3736 = vadd.f32 0.0, %v3735
      %v3737 = vpop.f32.mrb[0].mxu0
      %v3738 = vpop.f32.mrb[0].mxu0
      %v3739 = vadd.f32 0.0, %v3738
      %v3740 = vpop.f32.mrb[0].mxu0
      %3741 = vmatprep.mubr.bf16.mxu0 0
      %3742 = vmatmul.mubr.bf16.gmra.mrb[0].mxu0 %v3378
      %v3743 = vpop.f32.mrb[0].mxu0
      %v3744 = vadd.f32 0.0, %v3743
      %v3745 = vpop.f32.mrb[0].mxu0
      %v3746 = vpop.f32.mrb[0].mxu0
      %v3747 = vadd.f32 0.0, %v3746
      %v3748 = vpop.f32.mrb[0].mxu0
      %3749 = vmatprep.mubr.bf16.mxu0 0
      %3750 = vmatmul.mubr.bf16.gmra.mrb[0].mxu0 %v3381
      %v3751 = vpop.f32.mrb[0].mxu0
      %v3752 = vadd.f32 0.0, %v3751
      %v3753 = vpop.f32.mrb[0].mxu0
      %v3754 = vpop.f32.mrb[0].mxu0
      %v3755 = vadd.f32 0.0, %v3754
      %v3756 = vpop.f32.mrb[0].mxu0
      %3757 = vmatprep.mubr.bf16.mxu0 0
      %3758 = vmatmul.mubr.bf16.gmra.mrb[0].mxu0 %v3384
      %v3759 = vpop.f32.mrb[0].mxu0
      %v3760 = vadd.f32 0.0, %v3759
      %v3761 = vpop.f32.mrb[0].mxu0
      %v3762 = vpop.f32.mrb[0].mxu0
      %v3763 = vadd.f32 0.0, %v3762
      %v3764 = vpop.f32.mrb[0].mxu0
      %3765 = vmatprep.mubr.bf16.mxu0 0
      %3766 = vmatmul.mubr.bf16.gmra.mrb[0].mxu0 %v3387
      %v3767 = vpop.f32.mrb[0].mxu0
      %v3768 = vadd.f32 0.0, %v3767
      %v3769 = vpop.f32.mrb[0].mxu0
      %v3770 = vpop.f32.mrb[0].mxu0
      %v3771 = vadd.f32 0.0, %v3770
      %v3772 = vpop.f32.mrb[0].mxu0
      %3773 = vmatprep.mubr.bf16.mxu0 0
      %3774 = vmatmul.mubr.bf16.gmra.mrb[0].mxu0 %v3390
      %v3775 = vpop.f32.mrb[0].mxu0
      %v3776 = vadd.f32 0.0, %v3775
      %v3777 = vpop.f32.mrb[0].mxu0
      %v3778 = vpop.f32.mrb[0].mxu0
      %v3779 = vadd.f32 0.0, %v3778
      %v3780 = vpop.f32.mrb[0].mxu0
      %3781 = vmatprep.mubr.bf16.mxu0 0
      %3782 = vmatmul.mubr.bf16.gmra.mrb[0].mxu0 %v3393
      %v3783 = vpop.f32.mrb[0].mxu0
      %v3784 = vadd.f32 0.0, %v3783
      %v3785 = vpop.f32.mrb[0].mxu0
      %v3786 = vpop.f32.mrb[0].mxu0
      %v3787 = vadd.f32 0.0, %v3786
      %v3788 = vpop.f32.mrb[0].mxu0
      %3789 = vmatprep.mubr.bf16.mxu0 0
      %3790 = vmatmul.mubr.bf16.gmra.mrb[0].mxu0 %v3396
      %v3791 = vpop.f32.mrb[0].mxu0
      %v3792 = vadd.f32 0.0, %v3791
      %v3793 = vpop.f32.mrb[0].mxu0
      %v3794 = vpop.f32.mrb[0].mxu0
      %v3795 = vadd.f32 0.0, %v3794
      %v3796 = vpop.f32.mrb[0].mxu0
      %3797 = vmatprep.mubr.bf16.mxu0 0
      %3798 = vmatmul.mubr.bf16.gmra.mrb[0].mxu0 %v3399
      %v3799 = vpop.f32.mrb[0].mxu0
      %v3800 = vadd.f32 0.0, %v3799
      %v3801 = vpop.f32.mrb[0].mxu0
      %v3802 = vpop.f32.mrb[0].mxu0
      %v3803 = vadd.f32 0.0, %v3802
      %v3804 = vpop.f32.mrb[0].mxu0
      %3805 = vmatprep.mubr.bf16.mxu0 0
      %3806 = vmatmul.mubr.bf16.gmra.mrb[0].mxu0 %v3402
      %v3807 = vpop.f32.mrb[0].mxu0
      %v3808 = vadd.f32 0.0, %v3807
      %v3809 = vpop.f32.mrb[0].mxu0
      %v3810 = vpop.f32.mrb[0].mxu0
      %v3811 = vadd.f32 0.0, %v3810
      %v3812 = vpop.f32.mrb[0].mxu0
      %3813 = vmatprep.mubr.bf16.mxu0 0
      %3814 = vmatmul.mubr.bf16.gmra.mrb[0].mxu0 %v3405
      %v3815 = vpop.f32.mrb[0].mxu0
      %v3816 = vadd.f32 0.0, %v3815
      %v3817 = vpop.f32.mrb[0].mxu0
      %v3818 = vpop.f32.mrb[0].mxu0
      %v3819 = vpop.f32.mrb[0].mxu0
      %3820 = vdwg.mxu0
      %3821 = vst [vmem:[#allocation2] sm:$0xff] %v3451
      %3822 = vst [vmem:[#allocation2 + $0x8] sm:$0xff] %v3453
      %3823 = vst [vmem:[#allocation2 + $0x10] sm:$0xff] %v3672
      %3824 = vst [vmem:[#allocation2 + $0x18] sm:$0xff] %v3455
      %3825 = vst [vmem:[#allocation2 + $0x20] sm:$0xff] %v3457
      %3826 = vst [vmem:[#allocation2 + $0x28] sm:$0xff] %v3675
      %3827 = vst [vmem:[#allocation2 + $0x30] sm:$0xff] %v3461
      %3828 = vst [vmem:[#allocation2 + $0x38] sm:$0xff] %v3463
      %3829 = vst [vmem:[#allocation2 + $0x40] sm:$0xff] %v3680
      %3830 = vst [vmem:[#allocation2 + $0x48] sm:$0xff] %v3465
      %3831 = vst [vmem:[#allocation2 + $0x50] sm:$0xff] %v3467
      %3832 = vst [vmem:[#allocation2 + $0x58] sm:$0xff] %v3683
      %3833 = vst [vmem:[#allocation2 + $0x60] sm:$0xff] %v3471
      %3834 = vst [vmem:[#allocation2 + $0x68] sm:$0xff] %v3473
      %3835 = vst [vmem:[#allocation2 + $0x70] sm:$0xff] %v3688
      %3836 = vst [vmem:[#allocation2 + $0x78] sm:$0xff] %v3475
      %3837 = vst [vmem:[#allocation2 + $0x80] sm:$0xff] %v3477
      %3838 = vst [vmem:[#allocation2 + $0x88] sm:$0xff] %v3691
      %3839 = vst [vmem:[#allocation2 + $0x90] sm:$0xff] %v3481
      %3840 = vst [vmem:[#allocation2 + $0x98] sm:$0xff] %v3483
      %3841 = vst [vmem:[#allocation2 + $0xa0] sm:$0xff] %v3696
      %3842 = vst [vmem:[#allocation2 + $0xa8] sm:$0xff] %v3485
      %3843 = vst [vmem:[#allocation2 + $0xb0] sm:$0xff] %v3487
      %3844 = vst [vmem:[#allocation2 + $0xb8] sm:$0xff] %v3699
      %3845 = vst [vmem:[#allocation2 + $0xc0] sm:$0xff] %v3491
      %3846 = vst [vmem:[#allocation2 + $0xc8] sm:$0xff] %v3493
      %3847 = vst [vmem:[#allocation2 + $0xd0] sm:$0xff] %v3704
      %3848 = vst [vmem:[#allocation2 + $0xd8] sm:$0xff] %v3495
      %3849 = vst [vmem:[#allocation2 + $0xe0] sm:$0xff] %v3497
      %3850 = vst [vmem:[#allocation2 + $0xe8] sm:$0xff] %v3707
      %3851 = vst [vmem:[#allocation2 + $0xf0] sm:$0xff] %v3501
      %3852 = vst [vmem:[#allocation2 + $0xf8] sm:$0xff] %v3503
      %3853 = vst [vmem:[#allocation2 + $0x100] sm:$0xff] %v3712
      %3854 = vst [vmem:[#allocation2 + $0x108] sm:$0xff] %v3505
      %3855 = vst [vmem:[#allocation2 + $0x110] sm:$0xff] %v3507
      %3856 = vst [vmem:[#allocation2 + $0x118] sm:$0xff] %v3715
      %3857 = vst [vmem:[#allocation2 + $0x120] sm:$0xff] %v3511
      %3858 = vst [vmem:[#allocation2 + $0x128] sm:$0xff] %v3513
      %3859 = vst [vmem:[#allocation2 + $0x130] sm:$0xff] %v3720
      %3860 = vst [vmem:[#allocation2 + $0x138] sm:$0xff] %v3515
      %3861 = vst [vmem:[#allocation2 + $0x140] sm:$0xff] %v3517
      %3862 = vst [vmem:[#allocation2 + $0x148] sm:$0xff] %v3723
      %3863 = vst [vmem:[#allocation2 + $0x150] sm:$0xff] %v3521
      %3864 = vst [vmem:[#allocation2 + $0x158] sm:$0xff] %v3523
      %3865 = vst [vmem:[#allocation2 + $0x160] sm:$0xff] %v3728
      %3866 = vst [vmem:[#allocation2 + $0x168] sm:$0xff] %v3525
      %3867 = vst [vmem:[#allocation2 + $0x170] sm:$0xff] %v3527
      %3868 = vst [vmem:[#allocation2 + $0x178] sm:$0xff] %v3731
      %3869 = vst [vmem:[#allocation2 + $0x180] sm:$0xff] %v3531
      %3870 = vst [vmem:[#allocation2 + $0x188] sm:$0xff] %v3533
      %3871 = vst [vmem:[#allocation2 + $0x190] sm:$0xff] %v3736
      %3872 = vst [vmem:[#allocation2 + $0x198] sm:$0xff] %v3535
      %3873 = vst [vmem:[#allocation2 + $0x1a0] sm:$0xff] %v3537
      %3874 = vst [vmem:[#allocation2 + $0x1a8] sm:$0xff] %v3739
      %3875 = vst [vmem:[#allocation2 + $0x1b0] sm:$0xff] %v3541
      %3876 = vst [vmem:[#allocation2 + $0x1b8] sm:$0xff] %v3543
      %3877 = vst [vmem:[#allocation2 + $0x1c0] sm:$0xff] %v3744
      %3878 = vst [vmem:[#allocation2 + $0x1c8] sm:$0xff] %v3545
      %3879 = vst [vmem:[#allocation2 + $0x1d0] sm:$0xff] %v3547
      %3880 = vst [vmem:[#allocation2 + $0x1d8] sm:$0xff] %v3747
      %3881 = vst [vmem:[#allocation2 + $0x1e0] sm:$0xff] %v3551
      %3882 = vst [vmem:[#allocation2 + $0x1e8] sm:$0xff] %v3553
      %3883 = vst [vmem:[#allocation2 + $0x1f0] sm:$0xff] %v3752
      %3884 = vst [vmem:[#allocation2 + $0x1f8] sm:$0xff] %v3555
      %3885 = vst [vmem:[#allocation2 + $0x200] sm:$0xff] %v3557
      %3886 = vst [vmem:[#allocation2 + $0x208] sm:$0xff] %v3755
      %3887 = vst [vmem:[#allocation2 + $0x210] sm:$0xff] %v3561
      %3888 = vst [vmem:[#allocation2 + $0x218] sm:$0xff] %v3563
      %3889 = vst [vmem:[#allocation2 + $0x220] sm:$0xff] %v3760
      %3890 = vst [vmem:[#allocation2 + $0x228] sm:$0xff] %v3565
      %3891 = vst [vmem:[#allocation2 + $0x230] sm:$0xff] %v3567
      %3892 = vst [vmem:[#allocation2 + $0x238] sm:$0xff] %v3763
      %3893 = vst [vmem:[#allocation2 + $0x240] sm:$0xff] %v3571
      %3894 = vst [vmem:[#allocation2 + $0x248] sm:$0xff] %v3573
      %3895 = vst [vmem:[#allocation2 + $0x250] sm:$0xff] %v3768
      %3896 = vst [vmem:[#allocation2 + $0x258] sm:$0xff] %v3575
      %3897 = vst [vmem:[#allocation2 + $0x260] sm:$0xff] %v3577
      %3898 = vst [vmem:[#allocation2 + $0x268] sm:$0xff] %v3771
      %3899 = vst [vmem:[#allocation2 + $0x270] sm:$0xff] %v3581
      %3900 = vst [vmem:[#allocation2 + $0x278] sm:$0xff] %v3583
      %3901 = vst [vmem:[#allocation2 + $0x280] sm:$0xff] %v3776
      %3902 = vst [vmem:[#allocation2 + $0x288] sm:$0xff] %v3585
      %3903 = vst [vmem:[#allocation2 + $0x290] sm:$0xff] %v3587
      %3904 = vst [vmem:[#allocation2 + $0x298] sm:$0xff] %v3779
      %3905 = vst [vmem:[#allocation2 + $0x2a0] sm:$0xff] %v3591
      %3906 = vst [vmem:[#allocation2 + $0x2a8] sm:$0xff] %v3593
      %3907 = vst [vmem:[#allocation2 + $0x2b0] sm:$0xff] %v3784
      %3908 = vst [vmem:[#allocation2 + $0x2b8] sm:$0xff] %v3595
      %3909 = vst [vmem:[#allocation2 + $0x2c0] sm:$0xff] %v3597
      %3910 = vst [vmem:[#allocation2 + $0x2c8] sm:$0xff] %v3787
      %3911 = vst [vmem:[#allocation2 + $0x2d0] sm:$0xff] %v3601
      %3912 = vst [vmem:[#allocation2 + $0x2d8] sm:$0xff] %v3603
      %3913 = vst [vmem:[#allocation2 + $0x2e0] sm:$0xff] %v3792
      %3914 = vst [vmem:[#allocation2 + $0x2e8] sm:$0xff] %v3605
      %3915 = vst [vmem:[#allocation2 + $0x2f0] sm:$0xff] %v3607
      %3916 = vst [vmem:[#allocation2 + $0x2f8] sm:$0xff] %v3795
      %3917 = vst [vmem:[#allocation2 + $0x300] sm:$0xff] %v3611
      %3918 = vst [vmem:[#allocation2 + $0x308] sm:$0xff] %v3613
      %3919 = vst [vmem:[#allocation2 + $0x310] sm:$0xff] %v3800
      %3920 = vst [vmem:[#allocation2 + $0x318] sm:$0xff] %v3615
      %3921 = vst [vmem:[#allocation2 + $0x320] sm:$0xff] %v3617
      %3922 = vst [vmem:[#allocation2 + $0x328] sm:$0xff] %v3803
      %3923 = vst [vmem:[#allocation2 + $0x330] sm:$0xff] %v3621
      %3924 = vst [vmem:[#allocation2 + $0x338] sm:$0xff] %v3623
      %3925 = vst [vmem:[#allocation2 + $0x340] sm:$0xff] %v3808
      %3926 = vst [vmem:[#allocation2 + $0x348] sm:$0xff] %v3625
      %3927 = vst [vmem:[#allocation2 + $0x350] sm:$0xff] %v3627
      %3928 = vst [vmem:[#allocation2 + $0x358] sm:$0xff] %v3811
      %3929 = vst [vmem:[#allocation2 + $0x360] sm:$0x3] %v3631
      %3930 = vst [vmem:[#allocation2 + $0x368] sm:$0x3] %v3633
      %3931 = vst [vmem:[#allocation2 + $0x370] sm:$0x3] %v3816
      %v3932 = vld [vmem:[#allocation3] sm:$0xff]
      %v3933 = vld [vmem:[#allocation3 + $0x8] sm:$0xff]
      %v3934 = vld [vmem:[#allocation3 + $0x10] sm:$0xff]
      %v3935 = vld [vmem:[#allocation3 + $0x18] sm:$0xff]
      %v3936 = vld [vmem:[#allocation3 + $0x20] sm:$0xff]
      %v3937 = vld [vmem:[#allocation3 + $0x28] sm:$0xff]
      %v3938 = vld [vmem:[#allocation3 + $0x30] sm:$0xff]
      %v3939 = vld [vmem:[#allocation3 + $0x38] sm:$0xff]
      %v3940 = vld [vmem:[#allocation3 + $0x40] sm:$0xff]
      %v3941 = vld [vmem:[#allocation3 + $0x48] sm:$0xff]
      %v3942 = vld [vmem:[#allocation3 + $0x50] sm:$0xff]
      %v3943 = vld [vmem:[#allocation3 + $0x58] sm:$0xff]
      %v3944 = vld [vmem:[#allocation3 + $0x60] sm:$0xff]
      %v3945 = vld [vmem:[#allocation3 + $0x68] sm:$0xff]
      %v3946 = vld [vmem:[#allocation3 + $0x70] sm:$0xff]
      %v3947 = vld [vmem:[#allocation3 + $0x78] sm:$0xff]
      %v3948 = vld [vmem:[#allocation3 + $0x80] sm:$0xff]
      %v3949 = vld [vmem:[#allocation3 + $0x88] sm:$0xff]
      %v3950 = vld [vmem:[#allocation3 + $0x90] sm:$0xff]
      %v3951 = vld [vmem:[#allocation3 + $0x98] sm:$0xff]
      %v3952 = vld [vmem:[#allocation3 + $0xa0] sm:$0xff]
      %v3953 = vld [vmem:[#allocation3 + $0xa8] sm:$0xff]
      %v3954 = vld [vmem:[#allocation3 + $0xb0] sm:$0xff]
      %v3955 = vld [vmem:[#allocation3 + $0xb8] sm:$0xff]
      %v3956 = vld [vmem:[#allocation3 + $0xc0] sm:$0xff]
      %v3957 = vld [vmem:[#allocation3 + $0xc8] sm:$0xff]
      %v3958 = vld [vmem:[#allocation3 + $0xd0] sm:$0xff]
      %v3959 = vld [vmem:[#allocation3 + $0xd8] sm:$0xff]
      %v3960 = vld [vmem:[#allocation3 + $0xe0] sm:$0xff]
      %v3961 = vld [vmem:[#allocation3 + $0xe8] sm:$0xff]
      %v3962 = vld [vmem:[#allocation3 + $0xf0] sm:$0xff]
      %v3963 = vld [vmem:[#allocation3 + $0xf8] sm:$0xff]
      %v3964 = vld [vmem:[#allocation3 + $0x100] sm:$0xff]
      %v3965 = vld [vmem:[#allocation3 + $0x108] sm:$0xff]
      %v3966 = vld [vmem:[#allocation3 + $0x110] sm:$0xff]
      %v3967 = vld [vmem:[#allocation3 + $0x118] sm:$0xff]
      %v3968 = vld [vmem:[#allocation2] sm:$0xff]
      %v3969 = vld [vmem:[#allocation2 + $0x18] sm:$0xff]
      %v3970 = vld [vmem:[#allocation2 + $0x30] sm:$0xff]
      %v3971 = vld [vmem:[#allocation2 + $0x48] sm:$0xff]
      %v3972 = vld [vmem:[#allocation2 + $0x60] sm:$0xff]
      %v3973 = vld [vmem:[#allocation2 + $0x78] sm:$0xff]
      %v3974 = vld [vmem:[#allocation2 + $0x90] sm:$0xff]
      %v3975 = vld [vmem:[#allocation2 + $0xa8] sm:$0xff]
      %v3976 = vld [vmem:[#allocation2 + $0xc0] sm:$0xff]
      %v3977 = vld [vmem:[#allocation2 + $0xd8] sm:$0xff]
      %v3978 = vld [vmem:[#allocation2 + $0xf0] sm:$0xff]
      %v3979 = vld [vmem:[#allocation2 + $0x108] sm:$0xff]
      %v3980 = vld [vmem:[#allocation2 + $0x120] sm:$0xff]
      %v3981 = vld [vmem:[#allocation2 + $0x138] sm:$0xff]
      %v3982 = vld [vmem:[#allocation2 + $0x150] sm:$0xff]
      %v3983 = vld [vmem:[#allocation2 + $0x168] sm:$0xff]
      %v3984 = vld [vmem:[#allocation2 + $0x180] sm:$0xff]
      %v3985 = vld [vmem:[#allocation2 + $0x198] sm:$0xff]
      %v3986 = vld [vmem:[#allocation2 + $0x1b0] sm:$0xff]
      %v3987 = vld [vmem:[#allocation2 + $0x1c8] sm:$0xff]
      %v3988 = vld [vmem:[#allocation2 + $0x1e0] sm:$0xff]
      %v3989 = vld [vmem:[#allocation2 + $0x1f8] sm:$0xff]
      %v3990 = vld [vmem:[#allocation2 + $0x210] sm:$0xff]
      %v3991 = vld [vmem:[#allocation2 + $0x228] sm:$0xff]
      %v3992 = vld [vmem:[#allocation2 + $0x240] sm:$0xff]
      %v3993 = vld [vmem:[#allocation2 + $0x258] sm:$0xff]
      %v3994 = vld [vmem:[#allocation2 + $0x270] sm:$0xff]
      %v3995 = vld [vmem:[#allocation2 + $0x288] sm:$0xff]
      %v3996 = vld [vmem:[#allocation2 + $0x2a0] sm:$0xff]
      %v3997 = vld [vmem:[#allocation2 + $0x2b8] sm:$0xff]
      %v3998 = vld [vmem:[#allocation2 + $0x2d0] sm:$0xff]
      %v3999 = vld [vmem:[#allocation2 + $0x2e8] sm:$0xff]
      %v4000 = vld [vmem:[#allocation2 + $0x300] sm:$0xff]
      %v4001 = vld [vmem:[#allocation2 + $0x318] sm:$0xff]
      %v4002 = vld [vmem:[#allocation2 + $0x330] sm:$0xff]
      %v4003 = vld [vmem:[#allocation2 + $0x348] sm:$0xff]
      %v4004 = vadd.f32 %v3932, %v3968
      %v4005 = vadd.f32 %v3933, %v3969
      %v4006 = vadd.f32 %v3934, %v3970
      %v4007 = vadd.f32 %v3935, %v3971
      %v4008 = vadd.f32 %v3936, %v3972
      %v4009 = vadd.f32 %v3937, %v3973
      %v4010 = vadd.f32 %v3938, %v3974
      %v4011 = vadd.f32 %v3939, %v3975
      %v4012 = vadd.f32 %v3940, %v3976
      %v4013 = vadd.f32 %v3941, %v3977
      %v4014 = vadd.f32 %v3942, %v3978
      %v4015 = vadd.f32 %v3943, %v3979
      %v4016 = vadd.f32 %v3944, %v3980
      %v4017 = vadd.f32 %v3945, %v3981
      %v4018 = vadd.f32 %v3946, %v3982
      %v4019 = vadd.f32 %v3947, %v3983
      %v4020 = vadd.f32 %v3948, %v3984
      %v4021 = vadd.f32 %v3949, %v3985
      %v4022 = vadd.f32 %v3950, %v3986
      %v4023 = vadd.f32 %v3951, %v3987
      %v4024 = vadd.f32 %v3952, %v3988
      %v4025 = vadd.f32 %v3953, %v3989
      %v4026 = vadd.f32 %v3954, %v3990
      %v4027 = vadd.f32 %v3955, %v3991
      %v4028 = vadd.f32 %v3956, %v3992
      %v4029 = vadd.f32 %v3957, %v3993
      %v4030 = vadd.f32 %v3958, %v3994
      %v4031 = vadd.f32 %v3959, %v3995
      %v4032 = vadd.f32 %v3960, %v3996
      %v4033 = vadd.f32 %v3961, %v3997
      %v4034 = vadd.f32 %v3962, %v3998
      %v4035 = vadd.f32 %v3963, %v3999
      %v4036 = vadd.f32 %v3964, %v4000
      %v4037 = vadd.f32 %v3965, %v4001
      %v4038 = vadd.f32 %v3966, %v4002
      %v4039 = vadd.f32 %v3967, %v4003
      %4040 = vst [vmem:[#allocation3] sm:$0xff] %v4004
      %4041 = vst [vmem:[#allocation3 + $0x8] sm:$0xff] %v4005
      %4042 = vst [vmem:[#allocation3 + $0x10] sm:$0xff] %v4006
      %4043 = vst [vmem:[#allocation3 + $0x18] sm:$0xff] %v4007
      %4044 = vst [vmem:[#allocation3 + $0x20] sm:$0xff] %v4008
      %4045 = vst [vmem:[#allocation3 + $0x28] sm:$0xff] %v4009
      %4046 = vst [vmem:[#allocation3 + $0x30] sm:$0xff] %v4010
      %4047 = vst [vmem:[#allocation3 + $0x38] sm:$0xff] %v4011
      %4048 = vst [vmem:[#allocation3 + $0x40] sm:$0xff] %v4012
      %4049 = vst [vmem:[#allocation3 + $0x48] sm:$0xff] %v4013
      %4050 = vst [vmem:[#allocation3 + $0x50] sm:$0xff] %v4014
      %4051 = vst [vmem:[#allocation3 + $0x58] sm:$0xff] %v4015
      %4052 = vst [vmem:[#allocation3 + $0x60] sm:$0xff] %v4016
      %4053 = vst [vmem:[#allocation3 + $0x68] sm:$0xff] %v4017
      %4054 = vst [vmem:[#allocation3 + $0x70] sm:$0xff] %v4018
      %4055 = vst [vmem:[#allocation3 + $0x78] sm:$0xff] %v4019
      %4056 = vst [vmem:[#allocation3 + $0x80] sm:$0xff] %v4020
      %4057 = vst [vmem:[#allocation3 + $0x88] sm:$0xff] %v4021
      %4058 = vst [vmem:[#allocation3 + $0x90] sm:$0xff] %v4022
      %4059 = vst [vmem:[#allocation3 + $0x98] sm:$0xff] %v4023
      %4060 = vst [vmem:[#allocation3 + $0xa0] sm:$0xff] %v4024
      %4061 = vst [vmem:[#allocation3 + $0xa8] sm:$0xff] %v4025
      %4062 = vst [vmem:[#allocation3 + $0xb0] sm:$0xff] %v4026
      %4063 = vst [vmem:[#allocation3 + $0xb8] sm:$0xff] %v4027
      %4064 = vst [vmem:[#allocation3 + $0xc0] sm:$0xff] %v4028
      %4065 = vst [vmem:[#allocation3 + $0xc8] sm:$0xff] %v4029
      %4066 = vst [vmem:[#allocation3 + $0xd0] sm:$0xff] %v4030
      %4067 = vst [vmem:[#allocation3 + $0xd8] sm:$0xff] %v4031
      %4068 = vst [vmem:[#allocation3 + $0xe0] sm:$0xff] %v4032
      %4069 = vst [vmem:[#allocation3 + $0xe8] sm:$0xff] %v4033
      %4070 = vst [vmem:[#allocation3 + $0xf0] sm:$0xff] %v4034
      %4071 = vst [vmem:[#allocation3 + $0xf8] sm:$0xff] %v4035
      %4072 = vst [vmem:[#allocation3 + $0x100] sm:$0xff] %v4036
      %4073 = vst [vmem:[#allocation3 + $0x108] sm:$0xff] %v4037
      %4074 = vst [vmem:[#allocation3 + $0x110] sm:$0xff] %v4038
      %4075 = vst [vmem:[#allocation3 + $0x118] sm:$0xff] %v4039
      %v4076 = vld [vmem:[#allocation3] sm:$0xff]
      %v4077 = vld [vmem:[#allocation3 + $0x8] sm:$0xff]
      %v4078 = vld [vmem:[#allocation3 + $0x10] sm:$0xff]
      %v4079 = vld [vmem:[#allocation3 + $0x18] sm:$0xff]
      %v4080 = vld [vmem:[#allocation3 + $0x20] sm:$0xff]
      %v4081 = vld [vmem:[#allocation3 + $0x28] sm:$0xff]
      %v4082 = vld [vmem:[#allocation3 + $0x30] sm:$0xff]
      %v4083 = vld [vmem:[#allocation3 + $0x38] sm:$0xff]
      %v4084 = vld [vmem:[#allocation3 + $0x40] sm:$0xff]
      %v4085 = vld [vmem:[#allocation3 + $0x48] sm:$0xff]
      %v4086 = vld [vmem:[#allocation3 + $0x50] sm:$0xff]
      %v4087 = vld [vmem:[#allocation3 + $0x58] sm:$0xff]
      %v4088 = vld [vmem:[#allocation3 + $0x60] sm:$0xff]
      %v4089 = vld [vmem:[#allocation3 + $0x68] sm:$0xff]
      %v4090 = vld [vmem:[#allocation3 + $0x70] sm:$0xff]
      %v4091 = vld [vmem:[#allocation3 + $0x78] sm:$0xff]
      %v4092 = vld [vmem:[#allocation3 + $0x80] sm:$0xff]
      %v4093 = vld [vmem:[#allocation3 + $0x88] sm:$0xff]
      %v4094 = vld [vmem:[#allocation3 + $0x90] sm:$0xff]
      %v4095 = vld [vmem:[#allocation3 + $0x98] sm:$0xff]
      %v4096 = vld [vmem:[#allocation3 + $0xa0] sm:$0xff]
      %v4097 = vld [vmem:[#allocation3 + $0xa8] sm:$0xff]
      %v4098 = vld [vmem:[#allocation3 + $0xb0] sm:$0xff]
      %v4099 = vld [vmem:[#allocation3 + $0xb8] sm:$0xff]
      %v4100 = vld [vmem:[#allocation3 + $0xc0] sm:$0xff]
      %v4101 = vld [vmem:[#allocation3 + $0xc8] sm:$0xff]
      %v4102 = vld [vmem:[#allocation3 + $0xd0] sm:$0xff]
      %v4103 = vld [vmem:[#allocation3 + $0xd8] sm:$0xff]
      %v4104 = vld [vmem:[#allocation3 + $0xe0] sm:$0xff]
      %v4105 = vld [vmem:[#allocation3 + $0xe8] sm:$0xff]
      %v4106 = vld [vmem:[#allocation3 + $0xf0] sm:$0xff]
      %v4107 = vld [vmem:[#allocation3 + $0xf8] sm:$0xff]
      %v4108 = vld [vmem:[#allocation3 + $0x100] sm:$0xff]
      %v4109 = vld [vmem:[#allocation3 + $0x108] sm:$0xff]
      %v4110 = vld [vmem:[#allocation3 + $0x110] sm:$0xff]
      %v4111 = vld [vmem:[#allocation3 + $0x118] sm:$0xff]
      %v4112 = vld [vmem:[#allocation2 + $0x8] sm:$0xfe]
      %v4113 = vld [vmem:[#allocation2 + $0x20] sm:$0xff]
      %v4114 = vld [vmem:[#allocation2 + $0x38] sm:$0xff]
      %v4115 = vld [vmem:[#allocation2 + $0x50] sm:$0xff]
      %v4116 = vld [vmem:[#allocation2 + $0x68] sm:$0xff]
      %v4117 = vld [vmem:[#allocation2 + $0x80] sm:$0xff]
      %v4118 = vld [vmem:[#allocation2 + $0x98] sm:$0xff]
      %v4119 = vld [vmem:[#allocation2 + $0xb0] sm:$0xff]
      %v4120 = vld [vmem:[#allocation2 + $0xc8] sm:$0xff]
      %v4121 = vld [vmem:[#allocation2 + $0xe0] sm:$0xff]
      %v4122 = vld [vmem:[#allocation2 + $0xf8] sm:$0xff]
      %v4123 = vld [vmem:[#allocation2 + $0x110] sm:$0xff]
      %v4124 = vld [vmem:[#allocation2 + $0x128] sm:$0xff]
      %v4125 = vld [vmem:[#allocation2 + $0x140] sm:$0xff]
      %v4126 = vld [vmem:[#allocation2 + $0x158] sm:$0xff]
      %v4127 = vld [vmem:[#allocation2 + $0x170] sm:$0xff]
      %v4128 = vld [vmem:[#allocation2 + $0x188] sm:$0xff]
      %v4129 = vld [vmem:[#allocation2 + $0x1a0] sm:$0xff]
      %v4130 = vld [vmem:[#allocation2 + $0x1b8] sm:$0xff]
      %v4131 = vld [vmem:[#allocation2 + $0x1d0] sm:$0xff]
      %v4132 = vld [vmem:[#allocation2 + $0x1e8] sm:$0xff]
      %v4133 = vld [vmem:[#allocation2 + $0x200] sm:$0xff]
      %v4134 = vld [vmem:[#allocation2 + $0x218] sm:$0xff]
      %v4135 = vld [vmem:[#allocation2 + $0x230] sm:$0xff]
      %v4136 = vld [vmem:[#allocation2 + $0x248] sm:$0xff]
      %v4137 = vld [vmem:[#allocation2 + $0x260] sm:$0xff]
      %v4138 = vld [vmem:[#allocation2 + $0x278] sm:$0xff]
      %v4139 = vld [vmem:[#allocation2 + $0x290] sm:$0xff]
      %v4140 = vld [vmem:[#allocation2 + $0x2a8] sm:$0xff]
      %v4141 = vld [vmem:[#allocation2 + $0x2c0] sm:$0xff]
      %v4142 = vld [vmem:[#allocation2 + $0x2d8] sm:$0xff]
      %v4143 = vld [vmem:[#allocation2 + $0x2f0] sm:$0xff]
      %v4144 = vld [vmem:[#allocation2 + $0x308] sm:$0xff]
      %v4145 = vld [vmem:[#allocation2 + $0x320] sm:$0xff]
      %v4146 = vld [vmem:[#allocation2 + $0x338] sm:$0xff]
      %v4147 = vld [vmem:[#allocation2 + $0x350] sm:$0xff]
      %v4148 = vld [vmem:[#allocation2 + $0x368] sm:$0x1]
      %v4186 = vrot.slane %v4112, 1
      %v4187 = vrot.slane %v4113, 1
      %v4188 = vsel %vm1194, %v4186, %v4187
      %v4189 = vrot.slane %v4114, 1
      %v4190 = vsel %vm1194, %v4187, %v4189
      %v4191 = vrot.slane %v4115, 1
      %v4192 = vsel %vm1194, %v4189, %v4191
      %v4193 = vrot.slane %v4116, 1
      %v4194 = vsel %vm1194, %v4191, %v4193
      %v4195 = vrot.slane %v4117, 1
      %v4196 = vsel %vm1194, %v4193, %v4195
      %v4197 = vrot.slane %v4118, 1
      %v4198 = vsel %vm1194, %v4195, %v4197
      %v4199 = vrot.slane %v4119, 1
      %v4200 = vsel %vm1194, %v4197, %v4199
      %v4201 = vrot.slane %v4120, 1
      %v4202 = vsel %vm1194, %v4199, %v4201
      %v4203 = vrot.slane %v4121, 1
      %v4204 = vsel %vm1194, %v4201, %v4203
      %v4205 = vrot.slane %v4122, 1
      %v4206 = vsel %vm1194, %v4203, %v4205
      %v4207 = vrot.slane %v4123, 1
      %v4208 = vsel %vm1194, %v4205, %v4207
      %v4209 = vrot.slane %v4124, 1
      %v4210 = vsel %vm1194, %v4207, %v4209
      %v4211 = vrot.slane %v4125, 1
      %v4212 = vsel %vm1194, %v4209, %v4211
      %v4213 = vrot.slane %v4126, 1
      %v4214 = vsel %vm1194, %v4211, %v4213
      %v4215 = vrot.slane %v4127, 1
      %v4216 = vsel %vm1194, %v4213, %v4215
      %v4217 = vrot.slane %v4128, 1
      %v4218 = vsel %vm1194, %v4215, %v4217
      %v4219 = vrot.slane %v4129, 1
      %v4220 = vsel %vm1194, %v4217, %v4219
      %v4221 = vrot.slane %v4130, 1
      %v4222 = vsel %vm1194, %v4219, %v4221
      %v4223 = vrot.slane %v4131, 1
      %v4224 = vsel %vm1194, %v4221, %v4223
      %v4225 = vrot.slane %v4132, 1
      %v4226 = vsel %vm1194, %v4223, %v4225
      %v4227 = vrot.slane %v4133, 1
      %v4228 = vsel %vm1194, %v4225, %v4227
      %v4229 = vrot.slane %v4134, 1
      %v4230 = vsel %vm1194, %v4227, %v4229
      %v4231 = vrot.slane %v4135, 1
      %v4232 = vsel %vm1194, %v4229, %v4231
      %v4233 = vrot.slane %v4136, 1
      %v4234 = vsel %vm1194, %v4231, %v4233
      %v4235 = vrot.slane %v4137, 1
      %v4236 = vsel %vm1194, %v4233, %v4235
      %v4237 = vrot.slane %v4138, 1
      %v4238 = vsel %vm1194, %v4235, %v4237
      %v4239 = vrot.slane %v4139, 1
      %v4240 = vsel %vm1194, %v4237, %v4239
      %v4241 = vrot.slane %v4140, 1
      %v4242 = vsel %vm1194, %v4239, %v4241
      %v4243 = vrot.slane %v4141, 1
      %v4244 = vsel %vm1194, %v4241, %v4243
      %v4245 = vrot.slane %v4142, 1
      %v4246 = vsel %vm1194, %v4243, %v4245
      %v4247 = vrot.slane %v4143, 1
      %v4248 = vsel %vm1194, %v4245, %v4247
      %v4249 = vrot.slane %v4144, 1
      %v4250 = vsel %vm1194, %v4247, %v4249
      %v4251 = vrot.slane %v4145, 1
      %v4252 = vsel %vm1194, %v4249, %v4251
      %v4253 = vrot.slane %v4146, 1
      %v4254 = vsel %vm1194, %v4251, %v4253
      %v4255 = vrot.slane %v4147, 1
      %v4256 = vsel %vm1194, %v4253, %v4255
      %v4257 = vrot.slane %v4148, 1
      %v4258 = vsel %vm1194, %v4255, %v4257
      %v4295 = vadd.f32 %v4076, %v4188
      %v4296 = vadd.f32 %v4077, %v4190
      %v4297 = vadd.f32 %v4078, %v4192
      %v4298 = vadd.f32 %v4079, %v4194
      %v4299 = vadd.f32 %v4080, %v4196
      %v4300 = vadd.f32 %v4081, %v4198
      %v4301 = vadd.f32 %v4082, %v4200
      %v4302 = vadd.f32 %v4083, %v4202
      %v4303 = vadd.f32 %v4084, %v4204
      %v4304 = vadd.f32 %v4085, %v4206
      %v4305 = vadd.f32 %v4086, %v4208
      %v4306 = vadd.f32 %v4087, %v4210
      %v4307 = vadd.f32 %v4088, %v4212
      %v4308 = vadd.f32 %v4089, %v4214
      %v4309 = vadd.f32 %v4090, %v4216
      %v4310 = vadd.f32 %v4091, %v4218
      %v4311 = vadd.f32 %v4092, %v4220
      %v4312 = vadd.f32 %v4093, %v4222
      %v4313 = vadd.f32 %v4094, %v4224
      %v4314 = vadd.f32 %v4095, %v4226
      %v4315 = vadd.f32 %v4096, %v4228
      %v4316 = vadd.f32 %v4097, %v4230
      %v4317 = vadd.f32 %v4098, %v4232
      %v4318 = vadd.f32 %v4099, %v4234
      %v4319 = vadd.f32 %v4100, %v4236
      %v4320 = vadd.f32 %v4101, %v4238
      %v4321 = vadd.f32 %v4102, %v4240
      %v4322 = vadd.f32 %v4103, %v4242
      %v4323 = vadd.f32 %v4104, %v4244
      %v4324 = vadd.f32 %v4105, %v4246
      %v4325 = vadd.f32 %v4106, %v4248
      %v4326 = vadd.f32 %v4107, %v4250
      %v4327 = vadd.f32 %v4108, %v4252
      %v4328 = vadd.f32 %v4109, %v4254
      %v4329 = vadd.f32 %v4110, %v4256
      %v4330 = vadd.f32 %v4111, %v4258
      %4331 = vst [vmem:[#allocation3] sm:$0xff] %v4295
      %4332 = vst [vmem:[#allocation3 + $0x8] sm:$0xff] %v4296
      %4333 = vst [vmem:[#allocation3 + $0x10] sm:$0xff] %v4297
      %4334 = vst [vmem:[#allocation3 + $0x18] sm:$0xff] %v4298
      %4335 = vst [vmem:[#allocation3 + $0x20] sm:$0xff] %v4299
      %4336 = vst [vmem:[#allocation3 + $0x28] sm:$0xff] %v4300
      %4337 = vst [vmem:[#allocation3 + $0x30] sm:$0xff] %v4301
      %4338 = vst [vmem:[#allocation3 + $0x38] sm:$0xff] %v4302
      %4339 = vst [vmem:[#allocation3 + $0x40] sm:$0xff] %v4303
      %4340 = vst [vmem:[#allocation3 + $0x48] sm:$0xff] %v4304
      %4341 = vst [vmem:[#allocation3 + $0x50] sm:$0xff] %v4305
      %4342 = vst [vmem:[#allocation3 + $0x58] sm:$0xff] %v4306
      %4343 = vst [vmem:[#allocation3 + $0x60] sm:$0xff] %v4307
      %4344 = vst [vmem:[#allocation3 + $0x68] sm:$0xff] %v4308
      %4345 = vst [vmem:[#allocation3 + $0x70] sm:$0xff] %v4309
      %4346 = vst [vmem:[#allocation3 + $0x78] sm:$0xff] %v4310
      %4347 = vst [vmem:[#allocation3 + $0x80] sm:$0xff] %v4311
      %4348 = vst [vmem:[#allocation3 + $0x88] sm:$0xff] %v4312
      %4349 = vst [vmem:[#allocation3 + $0x90] sm:$0xff] %v4313
      %4350 = vst [vmem:[#allocation3 + $0x98] sm:$0xff] %v4314
      %4351 = vst [vmem:[#allocation3 + $0xa0] sm:$0xff] %v4315
      %4352 = vst [vmem:[#allocation3 + $0xa8] sm:$0xff] %v4316
      %4353 = vst [vmem:[#allocation3 + $0xb0] sm:$0xff] %v4317
      %4354 = vst [vmem:[#allocation3 + $0xb8] sm:$0xff] %v4318
      %4355 = vst [vmem:[#allocation3 + $0xc0] sm:$0xff] %v4319
      %4356 = vst [vmem:[#allocation3 + $0xc8] sm:$0xff] %v4320
      %4357 = vst [vmem:[#allocation3 + $0xd0] sm:$0xff] %v4321
      %4358 = vst [vmem:[#allocation3 + $0xd8] sm:$0xff] %v4322
      %4359 = vst [vmem:[#allocation3 + $0xe0] sm:$0xff] %v4323
      %4360 = vst [vmem:[#allocation3 + $0xe8] sm:$0xff] %v4324
      %4361 = vst [vmem:[#allocation3 + $0xf0] sm:$0xff] %v4325
      %4362 = vst [vmem:[#allocation3 + $0xf8] sm:$0xff] %v4326
      %4363 = vst [vmem:[#allocation3 + $0x100] sm:$0xff] %v4327
      %4364 = vst [vmem:[#allocation3 + $0x108] sm:$0xff] %v4328
      %4365 = vst [vmem:[#allocation3 + $0x110] sm:$0xff] %v4329
      %4366 = vst [vmem:[#allocation3 + $0x118] sm:$0xff] %v4330
      %v4367 = vld [vmem:[#allocation3] sm:$0xff]
      %v4368 = vld [vmem:[#allocation3 + $0x8] sm:$0xff]
      %v4369 = vld [vmem:[#allocation3 + $0x10] sm:$0xff]
      %v4370 = vld [vmem:[#allocation3 + $0x18] sm:$0xff]
      %v4371 = vld [vmem:[#allocation3 + $0x20] sm:$0xff]
      %v4372 = vld [vmem:[#allocation3 + $0x28] sm:$0xff]
      %v4373 = vld [vmem:[#allocation3 + $0x30] sm:$0xff]
      %v4374 = vld [vmem:[#allocation3 + $0x38] sm:$0xff]
      %v4375 = vld [vmem:[#allocation3 + $0x40] sm:$0xff]
      %v4376 = vld [vmem:[#allocation3 + $0x48] sm:$0xff]
      %v4377 = vld [vmem:[#allocation3 + $0x50] sm:$0xff]
      %v4378 = vld [vmem:[#allocation3 + $0x58] sm:$0xff]
      %v4379 = vld [vmem:[#allocation3 + $0x60] sm:$0xff]
      %v4380 = vld [vmem:[#allocation3 + $0x68] sm:$0xff]
      %v4381 = vld [vmem:[#allocation3 + $0x70] sm:$0xff]
      %v4382 = vld [vmem:[#allocation3 + $0x78] sm:$0xff]
      %v4383 = vld [vmem:[#allocation3 + $0x80] sm:$0xff]
      %v4384 = vld [vmem:[#allocation3 + $0x88] sm:$0xff]
      %v4385 = vld [vmem:[#allocation3 + $0x90] sm:$0xff]
      %v4386 = vld [vmem:[#allocation3 + $0x98] sm:$0xff]
      %v4387 = vld [vmem:[#allocation3 + $0xa0] sm:$0xff]
      %v4388 = vld [vmem:[#allocation3 + $0xa8] sm:$0xff]
      %v4389 = vld [vmem:[#allocation3 + $0xb0] sm:$0xff]
      %v4390 = vld [vmem:[#allocation3 + $0xb8] sm:$0xff]
      %v4391 = vld [vmem:[#allocation3 + $0xc0] sm:$0xff]
      %v4392 = vld [vmem:[#allocation3 + $0xc8] sm:$0xff]
      %v4393 = vld [vmem:[#allocation3 + $0xd0] sm:$0xff]
      %v4394 = vld [vmem:[#allocation3 + $0xd8] sm:$0xff]
      %v4395 = vld [vmem:[#allocation3 + $0xe0] sm:$0xff]
      %v4396 = vld [vmem:[#allocation3 + $0xe8] sm:$0xff]
      %v4397 = vld [vmem:[#allocation3 + $0xf0] sm:$0xff]
      %v4398 = vld [vmem:[#allocation3 + $0xf8] sm:$0xff]
      %v4399 = vld [vmem:[#allocation3 + $0x100] sm:$0xff]
      %v4400 = vld [vmem:[#allocation3 + $0x108] sm:$0xff]
      %v4401 = vld [vmem:[#allocation3 + $0x110] sm:$0xff]
      %v4402 = vld [vmem:[#allocation3 + $0x118] sm:$0xff]
      %v4403 = vld [vmem:[#allocation2 + $0x10] sm:$0xfc]
      %v4404 = vld [vmem:[#allocation2 + $0x28] sm:$0xff]
      %v4405 = vld [vmem:[#allocation2 + $0x40] sm:$0xff]
      %v4406 = vld [vmem:[#allocation2 + $0x58] sm:$0xff]
      %v4407 = vld [vmem:[#allocation2 + $0x70] sm:$0xff]
      %v4408 = vld [vmem:[#allocation2 + $0x88] sm:$0xff]
      %v4409 = vld [vmem:[#allocation2 + $0xa0] sm:$0xff]
      %v4410 = vld [vmem:[#allocation2 + $0xb8] sm:$0xff]
      %v4411 = vld [vmem:[#allocation2 + $0xd0] sm:$0xff]
      %v4412 = vld [vmem:[#allocation2 + $0xe8] sm:$0xff]
      %v4413 = vld [vmem:[#allocation2 + $0x100] sm:$0xff]
      %v4414 = vld [vmem:[#allocation2 + $0x118] sm:$0xff]
      %v4415 = vld [vmem:[#allocation2 + $0x130] sm:$0xff]
      %v4416 = vld [vmem:[#allocation2 + $0x148] sm:$0xff]
      %v4417 = vld [vmem:[#allocation2 + $0x160] sm:$0xff]
      %v4418 = vld [vmem:[#allocation2 + $0x178] sm:$0xff]
      %v4419 = vld [vmem:[#allocation2 + $0x190] sm:$0xff]
      %v4420 = vld [vmem:[#allocation2 + $0x1a8] sm:$0xff]
      %v4421 = vld [vmem:[#allocation2 + $0x1c0] sm:$0xff]
      %v4422 = vld [vmem:[#allocation2 + $0x1d8] sm:$0xff]
      %v4423 = vld [vmem:[#allocation2 + $0x1f0] sm:$0xff]
      %v4424 = vld [vmem:[#allocation2 + $0x208] sm:$0xff]
      %v4425 = vld [vmem:[#allocation2 + $0x220] sm:$0xff]
      %v4426 = vld [vmem:[#allocation2 + $0x238] sm:$0xff]
      %v4427 = vld [vmem:[#allocation2 + $0x250] sm:$0xff]
      %v4428 = vld [vmem:[#allocation2 + $0x268] sm:$0xff]
      %v4429 = vld [vmem:[#allocation2 + $0x280] sm:$0xff]
      %v4430 = vld [vmem:[#allocation2 + $0x298] sm:$0xff]
      %v4431 = vld [vmem:[#allocation2 + $0x2b0] sm:$0xff]
      %v4432 = vld [vmem:[#allocation2 + $0x2c8] sm:$0xff]
      %v4433 = vld [vmem:[#allocation2 + $0x2e0] sm:$0xff]
      %v4434 = vld [vmem:[#allocation2 + $0x2f8] sm:$0xff]
      %v4435 = vld [vmem:[#allocation2 + $0x310] sm:$0xff]
      %v4436 = vld [vmem:[#allocation2 + $0x328] sm:$0xff]
      %v4437 = vld [vmem:[#allocation2 + $0x340] sm:$0xff]
      %v4438 = vld [vmem:[#allocation2 + $0x358] sm:$0xff]
      %v4439 = vld [vmem:[#allocation2 + $0x370] sm:$0x3]
      %v4477 = vrot.slane %v4403, 2
      %v4478 = vrot.slane %v4404, 2
      %v4479 = vsel %vm1486, %v4477, %v4478
      %v4480 = vrot.slane %v4405, 2
      %v4481 = vsel %vm1486, %v4478, %v4480
      %v4482 = vrot.slane %v4406, 2
      %v4483 = vsel %vm1486, %v4480, %v4482
      %v4484 = vrot.slane %v4407, 2
      %v4485 = vsel %vm1486, %v4482, %v4484
      %v4486 = vrot.slane %v4408, 2
      %v4487 = vsel %vm1486, %v4484, %v4486
      %v4488 = vrot.slane %v4409, 2
      %v4489 = vsel %vm1486, %v4486, %v4488
      %v4490 = vrot.slane %v4410, 2
      %v4491 = vsel %vm1486, %v4488, %v4490
      %v4492 = vrot.slane %v4411, 2
      %v4493 = vsel %vm1486, %v4490, %v4492
      %v4494 = vrot.slane %v4412, 2
      %v4495 = vsel %vm1486, %v4492, %v4494
      %v4496 = vrot.slane %v4413, 2
      %v4497 = vsel %vm1486, %v4494, %v4496
      %v4498 = vrot.slane %v4414, 2
      %v4499 = vsel %vm1486, %v4496, %v4498
      %v4500 = vrot.slane %v4415, 2
      %v4501 = vsel %vm1486, %v4498, %v4500
      %v4502 = vrot.slane %v4416, 2
      %v4503 = vsel %vm1486, %v4500, %v4502
      %v4504 = vrot.slane %v4417, 2
      %v4505 = vsel %vm1486, %v4502, %v4504
      %v4506 = vrot.slane %v4418, 2
      %v4507 = vsel %vm1486, %v4504, %v4506
      %v4508 = vrot.slane %v4419, 2
      %v4509 = vsel %vm1486, %v4506, %v4508
      %v4510 = vrot.slane %v4420, 2
      %v4511 = vsel %vm1486, %v4508, %v4510
      %v4512 = vrot.slane %v4421, 2
      %v4513 = vsel %vm1486, %v4510, %v4512
      %v4514 = vrot.slane %v4422, 2
      %v4515 = vsel %vm1486, %v4512, %v4514
      %v4516 = vrot.slane %v4423, 2
      %v4517 = vsel %vm1486, %v4514, %v4516
      %v4518 = vrot.slane %v4424, 2
      %v4519 = vsel %vm1486, %v4516, %v4518
      %v4520 = vrot.slane %v4425, 2
      %v4521 = vsel %vm1486, %v4518, %v4520
      %v4522 = vrot.slane %v4426, 2
      %v4523 = vsel %vm1486, %v4520, %v4522
      %v4524 = vrot.slane %v4427, 2
      %v4525 = vsel %vm1486, %v4522, %v4524
      %v4526 = vrot.slane %v4428, 2
      %v4527 = vsel %vm1486, %v4524, %v4526
      %v4528 = vrot.slane %v4429, 2
      %v4529 = vsel %vm1486, %v4526, %v4528
      %v4530 = vrot.slane %v4430, 2
      %v4531 = vsel %vm1486, %v4528, %v4530
      %v4532 = vrot.slane %v4431, 2
      %v4533 = vsel %vm1486, %v4530, %v4532
      %v4534 = vrot.slane %v4432, 2
      %v4535 = vsel %vm1486, %v4532, %v4534
      %v4536 = vrot.slane %v4433, 2
      %v4537 = vsel %vm1486, %v4534, %v4536
      %v4538 = vrot.slane %v4434, 2
      %v4539 = vsel %vm1486, %v4536, %v4538
      %v4540 = vrot.slane %v4435, 2
      %v4541 = vsel %vm1486, %v4538, %v4540
      %v4542 = vrot.slane %v4436, 2
      %v4543 = vsel %vm1486, %v4540, %v4542
      %v4544 = vrot.slane %v4437, 2
      %v4545 = vsel %vm1486, %v4542, %v4544
      %v4546 = vrot.slane %v4438, 2
      %v4547 = vsel %vm1486, %v4544, %v4546
      %v4548 = vrot.slane %v4439, 2
      %v4549 = vsel %vm1486, %v4546, %v4548
      %v4586 = vadd.f32 %v4367, %v4479
      %v4587 = vadd.f32 %v4368, %v4481
      %v4588 = vadd.f32 %v4369, %v4483
      %v4589 = vadd.f32 %v4370, %v4485
      %v4590 = vadd.f32 %v4371, %v4487
      %v4591 = vadd.f32 %v4372, %v4489
      %v4592 = vadd.f32 %v4373, %v4491
      %v4593 = vadd.f32 %v4374, %v4493
      %v4594 = vadd.f32 %v4375, %v4495
      %v4595 = vadd.f32 %v4376, %v4497
      %v4596 = vadd.f32 %v4377, %v4499
      %v4597 = vadd.f32 %v4378, %v4501
      %v4598 = vadd.f32 %v4379, %v4503
      %v4599 = vadd.f32 %v4380, %v4505
      %v4600 = vadd.f32 %v4381, %v4507
      %v4601 = vadd.f32 %v4382, %v4509
      %v4602 = vadd.f32 %v4383, %v4511
      %v4603 = vadd.f32 %v4384, %v4513
      %v4604 = vadd.f32 %v4385, %v4515
      %v4605 = vadd.f32 %v4386, %v4517
      %v4606 = vadd.f32 %v4387, %v4519
      %v4607 = vadd.f32 %v4388, %v4521
      %v4608 = vadd.f32 %v4389, %v4523
      %v4609 = vadd.f32 %v4390, %v4525
      %v4610 = vadd.f32 %v4391, %v4527
      %v4611 = vadd.f32 %v4392, %v4529
      %v4612 = vadd.f32 %v4393, %v4531
      %v4613 = vadd.f32 %v4394, %v4533
      %v4614 = vadd.f32 %v4395, %v4535
      %v4615 = vadd.f32 %v4396, %v4537
      %v4616 = vadd.f32 %v4397, %v4539
      %v4617 = vadd.f32 %v4398, %v4541
      %v4618 = vadd.f32 %v4399, %v4543
      %v4619 = vadd.f32 %v4400, %v4545
      %v4620 = vadd.f32 %v4401, %v4547
      %v4621 = vadd.f32 %v4402, %v4549
      %4622 = vst [vmem:[#allocation3] sm:$0xff] %v4586
      %4623 = vst [vmem:[#allocation3 + $0x8] sm:$0xff] %v4587
      %4624 = vst [vmem:[#allocation3 + $0x10] sm:$0xff] %v4588
      %4625 = vst [vmem:[#allocation3 + $0x18] sm:$0xff] %v4589
      %4626 = vst [vmem:[#allocation3 + $0x20] sm:$0xff] %v4590
      %4627 = vst [vmem:[#allocation3 + $0x28] sm:$0xff] %v4591
      %4628 = vst [vmem:[#allocation3 + $0x30] sm:$0xff] %v4592
      %4629 = vst [vmem:[#allocation3 + $0x38] sm:$0xff] %v4593
      %4630 = vst [vmem:[#allocation3 + $0x40] sm:$0xff] %v4594
      %4631 = vst [vmem:[#allocation3 + $0x48] sm:$0xff] %v4595
      %4632 = vst [vmem:[#allocation3 + $0x50] sm:$0xff] %v4596
      %4633 = vst [vmem:[#allocation3 + $0x58] sm:$0xff] %v4597
      %4634 = vst [vmem:[#allocation3 + $0x60] sm:$0xff] %v4598
      %4635 = vst [vmem:[#allocation3 + $0x68] sm:$0xff] %v4599
      %4636 = vst [vmem:[#allocation3 + $0x70] sm:$0xff] %v4600
      %4637 = vst [vmem:[#allocation3 + $0x78] sm:$0xff] %v4601
      %4638 = vst [vmem:[#allocation3 + $0x80] sm:$0xff] %v4602
      %4639 = vst [vmem:[#allocation3 + $0x88] sm:$0xff] %v4603
      %4640 = vst [vmem:[#allocation3 + $0x90] sm:$0xff] %v4604
      %4641 = vst [vmem:[#allocation3 + $0x98] sm:$0xff] %v4605
      %4642 = vst [vmem:[#allocation3 + $0xa0] sm:$0xff] %v4606
      %4643 = vst [vmem:[#allocation3 + $0xa8] sm:$0xff] %v4607
      %4644 = vst [vmem:[#allocation3 + $0xb0] sm:$0xff] %v4608
      %4645 = vst [vmem:[#allocation3 + $0xb8] sm:$0xff] %v4609
      %4646 = vst [vmem:[#allocation3 + $0xc0] sm:$0xff] %v4610
      %4647 = vst [vmem:[#allocation3 + $0xc8] sm:$0xff] %v4611
      %4648 = vst [vmem:[#allocation3 + $0xd0] sm:$0xff] %v4612
      %4649 = vst [vmem:[#allocation3 + $0xd8] sm:$0xff] %v4613
      %4650 = vst [vmem:[#allocation3 + $0xe0] sm:$0xff] %v4614
      %4651 = vst [vmem:[#allocation3 + $0xe8] sm:$0xff] %v4615
      %4652 = vst [vmem:[#allocation3 + $0xf0] sm:$0xff] %v4616
      %4653 = vst [vmem:[#allocation3 + $0xf8] sm:$0xff] %v4617
      %4654 = vst [vmem:[#allocation3 + $0x100] sm:$0xff] %v4618
      %4655 = vst [vmem:[#allocation3 + $0x108] sm:$0xff] %v4619
      %4656 = vst [vmem:[#allocation3 + $0x110] sm:$0xff] %v4620
      %4657 = vst [vmem:[#allocation3 + $0x118] sm:$0xff] %v4621
      %v4658 = vld [vmem:[#allocation3] sm:$0xff]
      %v4659 = vld [vmem:[#allocation3 + $0x8] sm:$0xff]
      %v4660 = vld [vmem:[#allocation3 + $0x10] sm:$0xff]
      %v4661 = vld [vmem:[#allocation3 + $0x18] sm:$0xff]
      %v4662 = vld [vmem:[#allocation3 + $0x20] sm:$0xff]
      %v4663 = vld [vmem:[#allocation3 + $0x28] sm:$0xff]
      %v4664 = vld [vmem:[#allocation3 + $0x30] sm:$0xff]
      %v4665 = vld [vmem:[#allocation3 + $0x38] sm:$0xff]
      %v4666 = vld [vmem:[#allocation3 + $0x40] sm:$0xff]
      %v4667 = vld [vmem:[#allocation3 + $0x48] sm:$0xff]
      %v4668 = vld [vmem:[#allocation3 + $0x50] sm:$0xff]
      %v4669 = vld [vmem:[#allocation3 + $0x58] sm:$0xff]
      %v4670 = vld [vmem:[#allocation3 + $0x60] sm:$0xff]
      %v4671 = vld [vmem:[#allocation3 + $0x68] sm:$0xff]
      %v4672 = vld [vmem:[#allocation3 + $0x70] sm:$0xff]
      %v4673 = vld [vmem:[#allocation3 + $0x78] sm:$0xff]
      %v4674 = vld [vmem:[#allocation3 + $0x80] sm:$0xff]
      %v4675 = vld [vmem:[#allocation3 + $0x88] sm:$0xff]
      %v4676 = vld [vmem:[#allocation3 + $0x90] sm:$0xff]
      %v4677 = vld [vmem:[#allocation3 + $0x98] sm:$0xff]
      %v4678 = vld [vmem:[#allocation3 + $0xa0] sm:$0xff]
      %v4679 = vld [vmem:[#allocation3 + $0xa8] sm:$0xff]
      %v4680 = vld [vmem:[#allocation3 + $0xb0] sm:$0xff]
      %v4681 = vld [vmem:[#allocation3 + $0xb8] sm:$0xff]
      %v4682 = vld [vmem:[#allocation3 + $0xc0] sm:$0xff]
      %v4683 = vld [vmem:[#allocation3 + $0xc8] sm:$0xff]
      %v4684 = vld [vmem:[#allocation3 + $0xd0] sm:$0xff]
      %v4685 = vld [vmem:[#allocation3 + $0xd8] sm:$0xff]
      %v4686 = vld [vmem:[#allocation3 + $0xe0] sm:$0xff]
      %v4687 = vld [vmem:[#allocation3 + $0xe8] sm:$0xff]
      %v4688 = vld [vmem:[#allocation3 + $0xf0] sm:$0xff]
      %v4689 = vld [vmem:[#allocation3 + $0xf8] sm:$0xff]
      %v4690 = vld [vmem:[#allocation3 + $0x100] sm:$0xff]
      %v4691 = vld [vmem:[#allocation3 + $0x108] sm:$0xff]
      %v4692 = vld [vmem:[#allocation3 + $0x110] sm:$0xff]
      %v4693 = vld [vmem:[#allocation3 + $0x118] sm:$0xff]
      %v4694 = vld [vmem:[%s2] sm:$0x1]
      %v4696 = vlaneseq
      %v4697 = vshrl.u32 %v4696, 7
      %v4698 = vsub.s32 0, %v4697
      %v4699 = vrot.slane %v4694, %v4698
      %v4701 = vadd.f32 %v4658, %v4699
      %v4702 = vadd.f32 %v4659, %v4699
      %v4703 = vadd.f32 %v4660, %v4699
      %v4704 = vadd.f32 %v4661, %v4699
      %v4705 = vadd.f32 %v4662, %v4699
      %v4706 = vadd.f32 %v4663, %v4699
      %v4707 = vadd.f32 %v4664, %v4699
      %v4708 = vadd.f32 %v4665, %v4699
      %v4709 = vadd.f32 %v4666, %v4699
      %v4710 = vadd.f32 %v4667, %v4699
      %v4711 = vadd.f32 %v4668, %v4699
      %v4712 = vadd.f32 %v4669, %v4699
      %v4713 = vadd.f32 %v4670, %v4699
      %v4714 = vadd.f32 %v4671, %v4699
      %v4715 = vadd.f32 %v4672, %v4699
      %v4716 = vadd.f32 %v4673, %v4699
      %v4717 = vadd.f32 %v4674, %v4699
      %v4718 = vadd.f32 %v4675, %v4699
      %v4719 = vadd.f32 %v4676, %v4699
      %v4720 = vadd.f32 %v4677, %v4699
      %v4721 = vadd.f32 %v4678, %v4699
      %v4722 = vadd.f32 %v4679, %v4699
      %v4723 = vadd.f32 %v4680, %v4699
      %v4724 = vadd.f32 %v4681, %v4699
      %v4725 = vadd.f32 %v4682, %v4699
      %v4726 = vadd.f32 %v4683, %v4699
      %v4727 = vadd.f32 %v4684, %v4699
      %v4728 = vadd.f32 %v4685, %v4699
      %v4729 = vadd.f32 %v4686, %v4699
      %v4730 = vadd.f32 %v4687, %v4699
      %v4731 = vadd.f32 %v4688, %v4699
      %v4732 = vadd.f32 %v4689, %v4699
      %v4733 = vadd.f32 %v4690, %v4699
      %v4734 = vadd.f32 %v4691, %v4699
      %v4735 = vadd.f32 %v4692, %v4699
      %v4736 = vadd.f32 %v4693, %v4699
      %v4737 = vmax.f32 %v4701, 0.0
      %v4738 = vmax.f32 %v4702, 0.0
      %v4739 = vmax.f32 %v4703, 0.0
      %v4740 = vmax.f32 %v4704, 0.0
      %v4741 = vmax.f32 %v4705, 0.0
      %v4742 = vmax.f32 %v4706, 0.0
      %v4743 = vmax.f32 %v4707, 0.0
      %v4744 = vmax.f32 %v4708, 0.0
      %v4745 = vmax.f32 %v4709, 0.0
      %v4746 = vmax.f32 %v4710, 0.0
      %v4747 = vmax.f32 %v4711, 0.0
      %v4748 = vmax.f32 %v4712, 0.0
      %v4749 = vmax.f32 %v4713, 0.0
      %v4750 = vmax.f32 %v4714, 0.0
      %v4751 = vmax.f32 %v4715, 0.0
      %v4752 = vmax.f32 %v4716, 0.0
      %v4753 = vmax.f32 %v4717, 0.0
      %v4754 = vmax.f32 %v4718, 0.0
      %v4755 = vmax.f32 %v4719, 0.0
      %v4756 = vmax.f32 %v4720, 0.0
      %v4757 = vmax.f32 %v4721, 0.0
      %v4758 = vmax.f32 %v4722, 0.0
      %v4759 = vmax.f32 %v4723, 0.0
      %v4760 = vmax.f32 %v4724, 0.0
      %v4761 = vmax.f32 %v4725, 0.0
      %v4762 = vmax.f32 %v4726, 0.0
      %v4763 = vmax.f32 %v4727, 0.0
      %v4764 = vmax.f32 %v4728, 0.0
      %v4765 = vmax.f32 %v4729, 0.0
      %v4766 = vmax.f32 %v4730, 0.0
      %v4767 = vmax.f32 %v4731, 0.0
      %v4768 = vmax.f32 %v4732, 0.0
      %v4769 = vmax.f32 %v4733, 0.0
      %v4770 = vmax.f32 %v4734, 0.0
      %v4771 = vmax.f32 %v4735, 0.0
      %v4772 = vmax.f32 %v4736, 0.0
      %v4773 = vpack.c.bf16 %v4738, %v4737
      %v4774 = vpack.c.bf16 %v4740, %v4739
      %v4775 = vpack.c.bf16 %v4742, %v4741
      %v4776 = vpack.c.bf16 %v4744, %v4743
      %v4777 = vpack.c.bf16 %v4746, %v4745
      %v4778 = vpack.c.bf16 %v4748, %v4747
      %v4779 = vpack.c.bf16 %v4750, %v4749
      %v4780 = vpack.c.bf16 %v4752, %v4751
      %v4781 = vpack.c.bf16 %v4754, %v4753
      %v4782 = vpack.c.bf16 %v4756, %v4755
      %v4783 = vpack.c.bf16 %v4758, %v4757
      %v4784 = vpack.c.bf16 %v4760, %v4759
      %v4785 = vpack.c.bf16 %v4762, %v4761
      %v4786 = vpack.c.bf16 %v4764, %v4763
      %v4787 = vpack.c.bf16 %v4766, %v4765
      %v4788 = vpack.c.bf16 %v4768, %v4767
      %v4789 = vpack.c.bf16 %v4770, %v4769
      %v4790 = vpack.c.bf16 %v4772, %v4771
      %v4809 = vunpack.c.l.b16 %v4773
      %v4810 = vunpack.c.h.b16 %v4773
      %v4811 = vunpack.c.l.b16 %v4774
      %v4812 = vunpack.c.h.b16 %v4774
      %v4813 = vunpack.c.l.b16 %v4775
      %v4814 = vunpack.c.h.b16 %v4775
      %v4815 = vunpack.c.l.b16 %v4776
      %v4816 = vunpack.c.h.b16 %v4776
      %v4817 = vunpack.c.l.b16 %v4777
      %v4818 = vunpack.c.h.b16 %v4777
      %v4819 = vunpack.c.l.b16 %v4778
      %v4820 = vunpack.c.h.b16 %v4778
      %v4821 = vunpack.c.l.b16 %v4779
      %v4822 = vunpack.c.h.b16 %v4779
      %v4823 = vunpack.c.l.b16 %v4780
      %v4824 = vunpack.c.h.b16 %v4780
      %v4825 = vunpack.c.l.b16 %v4781
      %v4826 = vunpack.c.h.b16 %v4781
      %v4827 = vunpack.c.l.b16 %v4782
      %v4828 = vunpack.c.h.b16 %v4782
      %v4829 = vunpack.c.l.b16 %v4783
      %v4830 = vunpack.c.h.b16 %v4783
      %v4831 = vunpack.c.l.b16 %v4784
      %v4832 = vunpack.c.h.b16 %v4784
      %v4833 = vunpack.c.l.b16 %v4785
      %v4834 = vunpack.c.h.b16 %v4785
      %v4835 = vunpack.c.l.b16 %v4786
      %v4836 = vunpack.c.h.b16 %v4786
      %v4837 = vunpack.c.l.b16 %v4787
      %v4838 = vunpack.c.h.b16 %v4787
      %v4839 = vunpack.c.l.b16 %v4788
      %v4840 = vunpack.c.h.b16 %v4788
      %v4841 = vunpack.c.l.b16 %v4789
      %v4842 = vunpack.c.h.b16 %v4789
      %v4843 = vunpack.c.l.b16 %v4790
      %v4844 = vunpack.c.h.b16 %v4790
      %v4845 = vpack.c.b16 %v4809, %v4809
      %v4846 = vpack.c.b16 %v4810, %v4810
      %v4847 = vpack.c.b16 %v4811, %v4811
      %v4848 = vpack.c.b16 %v4812, %v4812
      %v4849 = vpack.c.b16 %v4813, %v4813
      %v4850 = vpack.c.b16 %v4814, %v4814
      %v4851 = vpack.c.b16 %v4815, %v4815
      %v4852 = vpack.c.b16 %v4816, %v4816
      %v4853 = vpack.c.b16 %v4817, %v4817
      %v4854 = vpack.c.b16 %v4818, %v4818
      %v4855 = vpack.c.b16 %v4819, %v4819
      %v4856 = vpack.c.b16 %v4820, %v4820
      %v4857 = vpack.c.b16 %v4821, %v4821
      %v4858 = vpack.c.b16 %v4822, %v4822
      %v4859 = vpack.c.b16 %v4823, %v4823
      %v4860 = vpack.c.b16 %v4824, %v4824
      %v4861 = vpack.c.b16 %v4825, %v4825
      %v4862 = vpack.c.b16 %v4826, %v4826
      %v4863 = vpack.c.b16 %v4827, %v4827
      %v4864 = vpack.c.b16 %v4828, %v4828
      %v4865 = vpack.c.b16 %v4829, %v4829
      %v4866 = vpack.c.b16 %v4830, %v4830
      %v4867 = vpack.c.b16 %v4831, %v4831
      %v4868 = vpack.c.b16 %v4832, %v4832
      %v4869 = vpack.c.b16 %v4833, %v4833
      %v4870 = vpack.c.b16 %v4834, %v4834
      %v4871 = vpack.c.b16 %v4835, %v4835
      %v4872 = vpack.c.b16 %v4836, %v4836
      %v4873 = vpack.c.b16 %v4837, %v4837
      %v4874 = vpack.c.b16 %v4838, %v4838
      %v4875 = vpack.c.b16 %v4839, %v4839
      %v4876 = vpack.c.b16 %v4840, %v4840
      %v4877 = vpack.c.b16 %v4841, %v4841
      %v4878 = vpack.c.b16 %v4842, %v4842
      %v4879 = vpack.c.b16 %v4843, %v4843
      %v4880 = vpack.c.b16 %v4844, %v4844
      %4917 = vst [vmem:[%s170] sm:$0xf] %v4845
      %4918 = vst [vmem:[%s170 + $0x4] sm:$0xf] %v4846
      %4919 = vst [vmem:[%s170 + $0x8] sm:$0xf] %v4847
      %4920 = vst [vmem:[%s170 + $0xc] sm:$0xf] %v4848
      %4921 = vst [vmem:[%s170 + $0x10] sm:$0xf] %v4849
      %4922 = vst [vmem:[%s170 + $0x14] sm:$0xf] %v4850
      %4923 = vst [vmem:[%s170 + $0x18] sm:$0xf] %v4851
      %4924 = vst [vmem:[%s170 + $0x1c] sm:$0xf] %v4852
      %4925 = vst [vmem:[%s170 + $0x20] sm:$0xf] %v4853
      %4926 = vst [vmem:[%s170 + $0x24] sm:$0xf] %v4854
      %4927 = vst [vmem:[%s170 + $0x28] sm:$0xf] %v4855
      %4928 = vst [vmem:[%s170 + $0x2c] sm:$0xf] %v4856
      %4929 = vst [vmem:[%s170 + $0x30] sm:$0xf] %v4857
      %4930 = vst [vmem:[%s170 + $0x34] sm:$0xf] %v4858
      %4931 = vst [vmem:[%s170 + $0x38] sm:$0xf] %v4859
      %4932 = vst [vmem:[%s170 + $0x3c] sm:$0xf] %v4860
      %4933 = vst [vmem:[%s170 + $0x40] sm:$0xf] %v4861
      %4934 = vst [vmem:[%s170 + $0x44] sm:$0xf] %v4862
      %4935 = vst [vmem:[%s170 + $0x48] sm:$0xf] %v4863
      %4936 = vst [vmem:[%s170 + $0x4c] sm:$0xf] %v4864
      %4937 = vst [vmem:[%s170 + $0x50] sm:$0xf] %v4865
      %4938 = vst [vmem:[%s170 + $0x54] sm:$0xf] %v4866
      %4939 = vst [vmem:[%s170 + $0x58] sm:$0xf] %v4867
      %4940 = vst [vmem:[%s170 + $0x5c] sm:$0xf] %v4868
      %4941 = vst [vmem:[%s170 + $0x60] sm:$0xf] %v4869
      %4942 = vst [vmem:[%s170 + $0x64] sm:$0xf] %v4870
      %4943 = vst [vmem:[%s170 + $0x68] sm:$0xf] %v4871
      %4944 = vst [vmem:[%s170 + $0x6c] sm:$0xf] %v4872
      %4945 = vst [vmem:[%s170 + $0x70] sm:$0xf] %v4873
      %4946 = vst [vmem:[%s170 + $0x74] sm:$0xf] %v4874
      %4947 = vst [vmem:[%s170 + $0x78] sm:$0xf] %v4875
      %4948 = vst [vmem:[%s170 + $0x7c] sm:$0xf] %v4876
      %4949 = vst [vmem:[%s170 + $0x80] sm:$0xf] %v4877
      %4950 = vst [vmem:[%s170 + $0x84] sm:$0xf] %v4878
      %4951 = vst [vmem:[%s170 + $0x88] sm:$0xf] %v4879
      %4952 = vst [vmem:[%s170 + $0x8c] sm:$0xf] %v4880
      %p4953 = scmp.lt.s32.totalorder %s14, 1
      %s4954 = scalar_select %p4953, %s14, 1
      %s4955 = smul.addr %s4954, 36
      %s4956 = smul.addr %s4955, 4
      %s4957 = scalar_lea.vmem %s3, %s4956
      // Predicated region
      $region33: #{mix2_inception_block_c.1} parent=31 // pred_check
        %p4958 = pneg %p100
      $region34: #{mix2_inception_block_c.1} parent=31 // pred_check_branch
        %4960 = sbr.rel (%p4958) target = $region36
      $region35: #{mix2_inception_block_c.1} parent=31 // pred_region
        _
      $region36: #{mix2_inception_block_c.1} parent=31 // pred_fallthru
        _
    $region32: #{mix2_inception_block_c.1} parent=5 // pred_fallthru
      _
    %p4961 = scmp.le.s32.totalorder 2, %s9
    // Predicated region
    $region37: #{mix2_inception_block_c.1} parent=5 // pred_check
      %p4962 = pneg %p4961
    $region38: #{mix2_inception_block_c.1} parent=5 // pred_check_branch
      %4964 = sbr.rel (%p4962) target = $region40
    $region39: #{mix2_inception_block_c.1} parent=5 // pred_region
      %s4965 = ssub.s32 %s9, 2
      // Predicated region
      $region41: #{mix2_inception_block_c.1} parent=39 // pred_check
        %p4966 = pneg %p106
      $region42: #{mix2_inception_block_c.1} parent=39 // pred_check_branch
        %4968 = sbr.rel (%p4966) target = $region44
      $region43: #{mix2_inception_block_c.1} parent=39 // pred_region
        %p4969 = scmp.lt.s32.totalorder %s15, 1
        %s4970 = scalar_select %p4969, %s15, 1
        %s4971 = smul.addr %s4970, 36
        %s4972 = smul.addr %s4971, 4
        %s4973 = scalar_lea.vmem %s3, %s4972
      $region44: #{mix2_inception_block_c.1} parent=39 // pred_fallthru
        _
    $region40: #{mix2_inception_block_c.1} parent=5 // pred_fallthru
      _
  $region6: #{mix2_inception_block_c.1} parent=0 // loop_footer
    %s13 = sadd.s32 1, %s9
  $region7: #{mix2_inception_block_c.1} parent=0 // loop_footer_branch
    %8 = sbr.rel target = $region3
  $region8: #{mix2_inception_block_c.1} parent=0 // loop_exit
    _

</llo_original>
